<compile_context>
chip_gen: v6e
topology: v6e:2x2x1
jax: 0.10.0
libtpu: 0.0.40
codegen_flags: <defaults>
</compile_context>

<pallas_src>
from functools import partial

import jax
import jax.numpy as jnp
from jax import lax
from jax.experimental import pallas as pl
from jax.experimental.pallas import tpu as pltpu

F32 = jnp.float32
LN_EPS = 1e-5
BN_EPS = 1e-5


# ----------------------------------------------------------------------------
# small in-kernel helpers
# ----------------------------------------------------------------------------

def _layernorm(x):
    mu = jnp.mean(x, axis=-1, keepdims=True)
    var = jnp.mean((x - mu) ** 2, axis=-1, keepdims=True)
    return (x - mu) * lax.rsqrt(var + LN_EPS)


def _softmax(x):
    m = jnp.max(x, axis=-1, keepdims=True)
    e = jnp.exp(x - m)
    return e * pl.reciprocal(jnp.sum(e, axis=-1, keepdims=True), approx=True)


def _gelu(x):
    # tanh-approx GELU (runs on the EUP).
    # TODO(synk): PyTorch nn.GELU default is the exact erf formulation.
    return 0.5 * x * (1.0 + jnp.tanh(0.7978845608028654 * (x + 0.044715 * x * x * x)))


def _full_spec(a):
    nd = a.ndim
    return pl.BlockSpec(a.shape, lambda i: (0,) * nd)


# ----------------------------------------------------------------------------
# Kernel 1: fused front-end (audio_fc / visual_fc / audio_visual_fc / delegate)
# ----------------------------------------------------------------------------

def _frontend_kernel(v_ref, a_ref,
                     a_w1_ref, a_b1_ref, a_s_ref, a_t_ref, a_w2_ref, a_b2_ref,
                     v_w_ref, v_b_ref, v_g_ref, v_be_ref,
                     av_wa_ref, av_wv_ref, av_b1_ref, av_s_ref, av_t_ref,
                     av_w2_ref, av_b2_ref, dlg_ref,
                     att1_ref, att22_ref, nav2_ref):
    # ---- audio_fc: Linear(512,512) -> BN(eval, folded) -> ReLU -> Linear(512,8)
    xa = a_ref[0]                                                    # (1, 512)
    ha = jnp.dot(xa, a_w1_ref[...], preferred_element_type=jnp.float32) + a_b1_ref[...]
    ha = jnp.maximum(ha * a_s_ref[...] + a_t_ref[...], 0.0)
    att1 = jnp.dot(ha, a_w2_ref[...], preferred_element_type=jnp.float32) + a_b2_ref[...]
    att1_ref[0] = att1.astype(att1_ref.dtype)                        # (1, 8)

    # softmax(audio_att1) @ delegate, shared by this batch element's n visual
    # rows (equivalent to the repeat(1,5,1) + einsum in the reference model).
    nav = jnp.dot(_softmax(att1), dlg_ref[...],
                  preferred_element_type=jnp.float32)                # (1, 512)

    # ---- visual_fc: Linear(2048,64) -> LayerNorm(64) -> ReLU
    xv = v_ref[0]                                                    # (n, 2048)
    hv = jnp.dot(xv, v_w_ref[...], preferred_element_type=jnp.float32) + v_b_ref[...]
    hv = jnp.maximum(_layernorm(hv) * v_g_ref[...] + v_be_ref[...], 0.0)   # (n, 64)

    # ---- audio_visual_fc on concat([nav, hv]); the first Linear is split along
    #      its 576-wide input so the concat never materializes.
    pre = (jnp.dot(nav, av_wa_ref[...], preferred_element_type=jnp.float32)
           + jnp.dot(hv, av_wv_ref[...], preferred_element_type=jnp.float32)
           + av_b1_ref[...])                                         # (n, 512)
    hav = jnp.maximum(pre * av_s_ref[...] + av_t_ref[...], 0.0)
    att22 = (jnp.dot(hav, av_w2_ref[...], preferred_element_type=jnp.float32)
             + av_b2_ref[...])                                       # (n, 8)
    att22_ref[0] = att22.astype(att22_ref.dtype)

    nav2_ref[0] = jnp.dot(_softmax(att22), dlg_ref[...],
                          preferred_element_type=jnp.float32).astype(nav2_ref.dtype)


def frontend_call(params, visual_feat, audio_feat3):
    b, n, dv = visual_feat.shape
    da = audio_feat3.shape[-1]
    weights = [params["a_w1"], params["a_b1"], params["a_bn_s"], params["a_bn_t"],
               params["a_w2"], params["a_b2"],
               params["v_w"], params["v_b"], params["v_g"], params["v_be"],
               params["av_w1_a"], params["av_w1_v"], params["av_b1"],
               params["av_bn_s"], params["av_bn_t"], params["av_w2"], params["av_b2"],
               params["delegate"]]
    in_specs = ([pl.BlockSpec((1, n, dv), lambda i: (i, 0, 0)),
                 pl.BlockSpec((1, 1, da), lambda i: (i, 0, 0))]
                + [_full_spec(w) for w in weights])
    out_shape = (jax.ShapeDtypeStruct((b, 1, 8), F32),
                 jax.ShapeDtypeStruct((b, n, 8), F32),
                 jax.ShapeDtypeStruct((b, n, 512), F32))
    out_specs = (pl.BlockSpec((1, 1, 8), lambda i: (i, 0, 0)),
                 pl.BlockSpec((1, n, 8), lambda i: (i, 0, 0)),
                 pl.BlockSpec((1, n, 512), lambda i: (i, 0, 0)))
    return pl.pallas_call(
        _frontend_kernel,
        grid=(b,),
        in_specs=in_specs,
        out_specs=out_specs,
        out_shape=out_shape,
        compiler_params=pltpu.CompilerParams(dimension_semantics=("parallel",)),
    )(visual_feat, audio_feat3, *weights)


# ----------------------------------------------------------------------------
# Kernel 2: fused ViT (token embed + depth x (MHA + MLP) + head) per batch elem
# ----------------------------------------------------------------------------

def _vit_kernel(v_ref, a_ref,
                wv_ref, bv_ref, wa_ref, ba_ref, selv_ref, sela_ref, poscls_ref,
                l1g_ref, l1b_ref, wq_ref, bq_ref, wk_ref, bk_ref, wvh_ref, bvh_ref,
                wo_ref, bo_ref, l2g_ref, l2b_ref, w1_ref, b1_ref, w2_ref, b2_ref,
                hg_ref, hbe_ref, hw_ref, hb_ref,
                out_ref, *, depth, heads, dim_head):
    # ---- token embedding: visual/audio projections scattered into the (t, dim)
    #      token slab with tiny selection matmuls (no in-kernel concat); the
    #      batch-independent CLS token is pre-folded into pos_cls row 0.
    xv = v_ref[0]                                                    # (n, 2048)
    xa = a_ref[0]                                                    # (n, 512)
    v_tok = jnp.dot(xv, wv_ref[...], preferred_element_type=jnp.float32) + bv_ref[...]
    a_tok = jnp.dot(xa, wa_ref[...], preferred_element_type=jnp.float32) + ba_ref[...]
    x = (jnp.dot(selv_ref[...], v_tok, preferred_element_type=jnp.float32)
         + jnp.dot(sela_ref[...], a_tok, preferred_element_type=jnp.float32)
         + poscls_ref[0])                                            # (t, dim)
    t, dim = x.shape
    scale = 1.0 / (dim_head ** 0.5)

    for l in range(depth):   # static unroll; all layer weights stay in VMEM
        # --- pre-LN multi-head attention, head-batched (no lane slices/concat)
        h = _layernorm(x) * l1g_ref[l] + l1b_ref[l]                  # (t, dim)
        hb = jnp.broadcast_to(h[None, :, :], (heads, t, dim))        # (h, t, dim)
        q = jnp.einsum('htd,hkd->htk', hb, wq_ref[l],
                       preferred_element_type=jnp.float32) + bq_ref[l]
        k = jnp.einsum('htd,hkd->htk', hb, wk_ref[l],
                       preferred_element_type=jnp.float32) + bk_ref[l]
        v = jnp.einsum('htd,hkd->htk', hb, wvh_ref[l],
                       preferred_element_type=jnp.float32) + bvh_ref[l]
        s = jnp.einsum('hqd,hkd->hqk', q, k,
                       preferred_element_type=jnp.float32) * scale   # (h, t, t)
        p = _softmax(s)
        o = jnp.einsum('hqk,hkd->hqd', p, v,
                       preferred_element_type=jnp.float32)           # (h, t, dh)
        proj = jnp.einsum('htd,hdn->htn', o, wo_ref[l],
                          preferred_element_type=jnp.float32)        # (h, t, dim)
        x = x + jnp.sum(proj, axis=0) + bo_ref[l]

        # --- pre-LN MLP: Linear -> GELU -> Linear
        h = _layernorm(x) * l2g_ref[l] + l2b_ref[l]
        h = jnp.dot(h, w1_ref[l], preferred_element_type=jnp.float32) + b1_ref[l]
        h = _gelu(h)
        x = x + jnp.dot(h, w2_ref[l], preferred_element_type=jnp.float32) + b2_ref[l]

    # ---- classification head on the CLS token
    c = _layernorm(x[0:1, :]) * hg_ref[...] + hbe_ref[...]           # (1, dim)
    out_ref[0] = (jnp.dot(c, hw_ref[...], preferred_element_type=jnp.float32)
                  + hb_ref[...]).astype(out_ref.dtype)


def vit_call(params, visual_feat, audio_vec, heads=8):
    # TODO(synk): ViTCls is undefined in the snippet; a standard pre-norm ViT
    # classifier is implemented and the `target` flag has unknown semantics.
    b, n, dv = visual_feat.shape
    da = audio_vec.shape[-1]
    dim = params["vit_wv"].shape[1]
    depth = params["ln1_g"].shape[0]
    num_classes = params["h_w"].shape[1]
    weights = [params["vit_wv"], params["vit_bv"], params["vit_wa"], params["vit_ba"],
               params["sel_v"], params["sel_a"], params["pos_cls"],
               params["ln1_g"], params["ln1_b"],
               params["wq"], params["bq"], params["wk"], params["bk"],
               params["wv_h"], params["bv_h"], params["wo_h"], params["bo"],
               params["ln2_g"], params["ln2_b"],
               params["w1"], params["b1"], params["w2"], params["b2"],
               params["h_g"], params["h_be"], params["h_w"], params["h_b"]]
    in_specs = ([pl.BlockSpec((1, n, dv), lambda i: (i, 0, 0)),
                 pl.BlockSpec((1, n, da), lambda i: (i, 0, 0))]
                + [_full_spec(w) for w in weights])
    return pl.pallas_call(
        partial(_vit_kernel, depth=depth, heads=heads, dim_head=dim // heads),
        grid=(b,),
        in_specs=in_specs,
        out_specs=pl.BlockSpec((1, 1, num_classes), lambda i: (i, 0, 0)),
        out_shape=jax.ShapeDtypeStruct((b, 1, num_classes), F32),
        compiler_params=pltpu.CompilerParams(
            dimension_semantics=("parallel",),
            vmem_limit_bytes=48 * 1024 * 1024),
    )(visual_feat, audio_vec, *weights)


# ----------------------------------------------------------------------------
# Parameter initialization (deterministic, synthetic)
# ----------------------------------------------------------------------------

def init_params(key, n, dim=256, depth=3, heads=8, mlp_dim=512, num_classes=8):
    keys = iter(jax.random.split(key, 64))
    nrm = lambda shape, s=0.02: s * jax.random.normal(next(keys), shape, F32)
    dh = dim // heads
    t = 2 * n + 1

    # BatchNorm1d in eval mode with fresh running stats (mean=0, var=1), folded
    # into a per-feature scale/shift.  Real checkpoints fold their stats here.
    bn_scale = jnp.ones((1, 512), F32) / jnp.sqrt(1.0 + BN_EPS)
    bn_shift = jnp.zeros((1, 512), F32)

    av_w1 = nrm((576, 512))                       # audio_visual_fc first Linear

    p = {
        "delegate": jax.random.normal(next(keys), (8, 512), F32),
        # audio_fc: Linear(512,512) BN ReLU Linear(512,8)
        "a_w1": nrm((512, 512)), "a_b1": jnp.zeros((1, 512), F32),
        "a_bn_s": bn_scale, "a_bn_t": bn_shift,
        "a_w2": nrm((512, 8)), "a_b2": jnp.zeros((1, 8), F32),
        # visual_fc: Linear(2048,64) LN ReLU
        "v_w": nrm((2048, 64)), "v_b": jnp.zeros((1, 64), F32),
        "v_g": jnp.ones((1, 64), F32), "v_be": jnp.zeros((1, 64), F32),
        # audio_visual_fc first Linear split along its 576-wide input:
        # rows 0..511 act on the delegate-mixed audio vector, rows 512..575 on
        # the 64-d visual features (== concat([audio, visual]) @ av_w1).
        "av_w1_a": av_w1[:512], "av_w1_v": av_w1[512:],
        "av_b1": jnp.zeros((1, 512), F32),
        "av_bn_s": bn_scale, "av_bn_t": bn_shift,
        "av_w2": nrm((512, 8)), "av_b2": jnp.zeros((1, 8), F32),
        # ViT token embeddings
        "vit_wv": nrm((2048, dim)), "vit_bv": jnp.zeros((1, dim), F32),
        "vit_wa": nrm((512, dim)), "vit_ba": jnp.zeros((1, dim), F32),
        # ViT head
        "h_g": jnp.ones((1, dim), F32), "h_be": jnp.zeros((1, dim), F32),
        "h_w": nrm((dim, num_classes)), "h_b": jnp.zeros((1, num_classes), F32),
    }

    # CLS token + positional embedding, with the batch-independent CLS token
    # folded into row 0 of the positional table (so the kernel never concats).
    cls_tok = jax.random.normal(next(keys), (dim,), F32)
    pos_emb = jax.random.normal(next(keys), (1, t, dim), F32)
    p["pos_cls"] = pos_emb.at[0, 0, :].add(cls_tok)
    # Selection matrices placing the n visual / n audio tokens at token rows
    # 1..n and n+1..2n of the (t, dim) slab (row 0 is the CLS token).
    eye_n = jnp.eye(n, dtype=F32)
    p["sel_v"] = jnp.zeros((t, n), F32).at[1:1 + n, :].set(eye_n)
    p["sel_a"] = jnp.zeros((t, n), F32).at[1 + n:, :].set(eye_n)

    # Transformer layer weights: head-major (heads, dim_head, dim) layout and
    # depth-stacked so the whole ViT is one pallas_call with static in-kernel
    # indexing (no per-head lane slicing or concat inside the kernel).
    def head_major(w):        # (dim, dim) -> (heads, dh, dim); w[:, h*dh+j] -> [h, j, :]
        return jnp.transpose(w.reshape(dim, heads, dh), (1, 2, 0))

    acc = {k: [] for k in ("ln1_g", "ln1_b", "wq", "bq", "wk", "bk", "wv_h", "bv_h",
                           "wo_h", "bo", "ln2_g", "ln2_b", "w1", "b1", "w2", "b2")}
    for _ in range(depth):
        wqkv = nrm((dim, 3 * dim))
        bqkv = jnp.zeros((3 * dim,), F32)
        wo = nrm((dim, dim))
        acc["ln1_g"].append(jnp.ones((1, dim), F32))
        acc["ln1_b"].append(jnp.zeros((1, dim), F32))
        acc["wq"].append(head_major(wqkv[:, :dim]))
        acc["wk"].append(head_major(wqkv[:, dim:2 * dim]))
        acc["wv_h"].append(head_major(wqkv[:, 2 * dim:]))
        acc["bq"].append(bqkv[:dim].reshape(heads, 1, dh))
        acc["bk"].append(bqkv[dim:2 * dim].reshape(heads, 1, dh))
        acc["bv_h"].append(bqkv[2 * dim:].reshape(heads, 1, dh))
        acc["wo_h"].append(wo.reshape(heads, dh, dim))
        acc["bo"].append(jnp.zeros((1, dim), F32))
        acc["ln2_g"].append(jnp.ones((1, dim), F32))
        acc["ln2_b"].append(jnp.zeros((1, dim), F32))
        acc["w1"].append(nrm((dim, mlp_dim)))
        acc["b1"].append(jnp.zeros((1, mlp_dim), F32))
        acc["w2"].append(nrm((mlp_dim, dim)))
        acc["b2"].append(jnp.zeros((1, dim), F32))
    for k, v in acc.items():
        p[k] = jnp.stack(v, axis=0)
    return p


# ----------------------------------------------------------------------------
# Forward pass (only host-side reshapes remain outside the two fused kernels)
# ----------------------------------------------------------------------------

def recognizer_forward(params, visual_feat, audio_feat, target=True):
    b, n, _ = visual_feat.shape
    b1, da = audio_feat.shape
    assert b1 == b and n == 5, "forward hard-codes a repeat factor of 5 (n=5, b1=b)"

    att1, att22, nav2 = frontend_call(params, visual_feat,
                                      audio_feat.reshape(b1, 1, da))
    pred = vit_call(params, visual_feat, nav2)
    # TODO(synk): `target` flag of ViTCls has unknown semantics in the source repo.
    return (pred.reshape(b, -1),
            att1.reshape(b1, -1),
            att22.reshape(b * n, -1))


# ----------------------------------------------------------------------------

if __name__ == "__main__":
    key = jax.random.PRNGKey(0)
    kv, ka, kp = jax.random.split(key, 3)

    b, n = 2, 5          # n=5 is required by the hard-coded repeat(1,5,1); b1=b
    visual_feat = jax.random.normal(kv, (b, n, 2048), F32)
    audio_feat = jax.random.normal(ka, (b, 512), F32)

    params = init_params(kp, n=n)

    pred, audio_att1, audio_att22 = recognizer_forward(params, visual_feat, audio_feat)
    jax.block_until_ready((pred, audio_att1, audio_att22))

    assert pred.shape == (b, 8)
    assert audio_att1.shape == (b, 8)
    assert audio_att22.shape == (b * n, 8)
    assert bool(jnp.all(jnp.isfinite(pred)))
    assert bool(jnp.all(jnp.isfinite(audio_att1)))
    assert bool(jnp.all(jnp.isfinite(audio_att22)))
    print("KERNEL_OK")
</pallas_src>

<mosaic_0001>
module attributes {stable_mosaic.version = 11 : i64} {
  func.func @_frontend_kernel(%arg0: i32, %arg1: memref<1x5x2048xf32, #tpu.memory_space<vmem>>, %arg2: memref<1x1x512xf32, #tpu.memory_space<vmem>>, %arg3: memref<512x512xf32, #tpu.memory_space<vmem>>, %arg4: memref<1x512xf32, #tpu.memory_space<vmem>>, %arg5: memref<1x512xf32, #tpu.memory_space<vmem>>, %arg6: memref<1x512xf32, #tpu.memory_space<vmem>>, %arg7: memref<512x8xf32, #tpu.memory_space<vmem>>, %arg8: memref<1x8xf32, #tpu.memory_space<vmem>>, %arg9: memref<2048x64xf32, #tpu.memory_space<vmem>>, %arg10: memref<1x64xf32, #tpu.memory_space<vmem>>, %arg11: memref<1x64xf32, #tpu.memory_space<vmem>>, %arg12: memref<1x64xf32, #tpu.memory_space<vmem>>, %arg13: memref<512x512xf32, #tpu.memory_space<vmem>>, %arg14: memref<64x512xf32, #tpu.memory_space<vmem>>, %arg15: memref<1x512xf32, #tpu.memory_space<vmem>>, %arg16: memref<1x512xf32, #tpu.memory_space<vmem>>, %arg17: memref<1x512xf32, #tpu.memory_space<vmem>>, %arg18: memref<512x8xf32, #tpu.memory_space<vmem>>, %arg19: memref<1x8xf32, #tpu.memory_space<vmem>>, %arg20: memref<8x512xf32, #tpu.memory_space<vmem>>, %arg21: memref<1x1x8xf32, #tpu.memory_space<vmem>>, %arg22: memref<1x5x8xf32, #tpu.memory_space<vmem>>, %arg23: memref<1x5x512xf32, #tpu.memory_space<vmem>>) attributes {dimension_semantics = [#tpu.dimension_semantics<parallel>], iteration_bounds = array<i64: 2>, scalar_prefetch = 0 : i64, scratch_operands = 0 : i64, tpu.core_type = #tpu.core_type<tc>, window_params = [{transform_indices = @transform_0, window_bounds = array<i64: 1, 5, 2048>}, {transform_indices = @transform_1, window_bounds = array<i64: 1, 1, 512>}, {pipeline_mode = #tpu.pipeline_mode<synchronous>, transform_indices = @transform_2, window_bounds = array<i64: 512, 512>}, {pipeline_mode = #tpu.pipeline_mode<synchronous>, transform_indices = @transform_3, window_bounds = array<i64: 1, 512>}, {pipeline_mode = #tpu.pipeline_mode<synchronous>, transform_indices = @transform_4, window_bounds = array<i64: 1, 512>}, {pipeline_mode = #tpu.pipeline_mode<synchronous>, transform_indices = @transform_5, window_bounds = array<i64: 1, 512>}, {pipeline_mode = #tpu.pipeline_mode<synchronous>, transform_indices = @transform_6, window_bounds = array<i64: 512, 8>}, {pipeline_mode = #tpu.pipeline_mode<synchronous>, transform_indices = @transform_7, window_bounds = array<i64: 1, 8>}, {pipeline_mode = #tpu.pipeline_mode<synchronous>, transform_indices = @transform_8, window_bounds = array<i64: 2048, 64>}, {pipeline_mode = #tpu.pipeline_mode<synchronous>, transform_indices = @transform_9, window_bounds = array<i64: 1, 64>}, {pipeline_mode = #tpu.pipeline_mode<synchronous>, transform_indices = @transform_10, window_bounds = array<i64: 1, 64>}, {pipeline_mode = #tpu.pipeline_mode<synchronous>, transform_indices = @transform_11, window_bounds = array<i64: 1, 64>}, {pipeline_mode = #tpu.pipeline_mode<synchronous>, transform_indices = @transform_12, window_bounds = array<i64: 512, 512>}, {pipeline_mode = #tpu.pipeline_mode<synchronous>, transform_indices = @transform_13, window_bounds = array<i64: 64, 512>}, {pipeline_mode = #tpu.pipeline_mode<synchronous>, transform_indices = @transform_14, window_bounds = array<i64: 1, 512>}, {pipeline_mode = #tpu.pipeline_mode<synchronous>, transform_indices = @transform_15, window_bounds = array<i64: 1, 512>}, {pipeline_mode = #tpu.pipeline_mode<synchronous>, transform_indices = @transform_16, window_bounds = array<i64: 1, 512>}, {pipeline_mode = #tpu.pipeline_mode<synchronous>, transform_indices = @transform_17, window_bounds = array<i64: 512, 8>}, {pipeline_mode = #tpu.pipeline_mode<synchronous>, transform_indices = @transform_18, window_bounds = array<i64: 1, 8>}, {pipeline_mode = #tpu.pipeline_mode<synchronous>, transform_indices = @transform_19, window_bounds = array<i64: 8, 512>}, {transform_indices = @transform_20, window_bounds = array<i64: 1, 1, 8>}, {transform_indices = @transform_21, window_bounds = array<i64: 1, 5, 8>}, {transform_indices = @transform_22, window_bounds = array<i64: 1, 5, 512>}]} {
    %c0 = arith.constant 0 : index
    %c0_0 = arith.constant 0 : index
    %c0_1 = arith.constant 0 : index
    %0 = vector.load %arg2[%c0, %c0_0, %c0_1] : memref<1x1x512xf32, #tpu.memory_space<vmem>>, vector<1x1x512xf32>
    %1 = vector.shape_cast %0 : vector<1x1x512xf32> to vector<1x512xf32>
    %c0_2 = arith.constant 0 : index
    %c0_3 = arith.constant 0 : index
    %2 = vector.load %arg3[%c0_2, %c0_3] : memref<512x512xf32, #tpu.memory_space<vmem>>, vector<512x512xf32>
    %cst = arith.constant dense<0.000000e+00> : vector<1x512xf32>
    %3 = tpu.matmul %1, %2, %cst {dimension_numbers = #tpu.dot_dimension_numbers<[1], [0], [0], [1], [0, 0, 1, 1], [], []>} : vector<1x512xf32>, vector<512x512xf32>, vector<1x512xf32> -> vector<1x512xf32>
    %c0_4 = arith.constant 0 : index
    %c0_5 = arith.constant 0 : index
    %4 = vector.load %arg4[%c0_4, %c0_5] : memref<1x512xf32, #tpu.memory_space<vmem>>, vector<1x512xf32>
    %5 = arith.addf %3, %4 : vector<1x512xf32>
    %c0_6 = arith.constant 0 : index
    %c0_7 = arith.constant 0 : index
    %6 = vector.load %arg5[%c0_6, %c0_7] : memref<1x512xf32, #tpu.memory_space<vmem>>, vector<1x512xf32>
    %7 = arith.mulf %5, %6 : vector<1x512xf32>
    %c0_8 = arith.constant 0 : index
    %c0_9 = arith.constant 0 : index
    %8 = vector.load %arg6[%c0_8, %c0_9] : memref<1x512xf32, #tpu.memory_space<vmem>>, vector<1x512xf32>
    %9 = arith.addf %7, %8 : vector<1x512xf32>
    %cst_10 = arith.constant 0.000000e+00 : f32
    %10 = vector.broadcast %cst_10 : f32 to vector<1x512xf32>
    %11 = arith.maximumf %9, %10 : vector<1x512xf32>
    %c0_11 = arith.constant 0 : index
    %c0_12 = arith.constant 0 : index
    %12 = vector.load %arg7[%c0_11, %c0_12] : memref<512x8xf32, #tpu.memory_space<vmem>>, vector<512x8xf32>
    %cst_13 = arith.constant dense<0.000000e+00> : vector<1x8xf32>
    %13 = tpu.matmul %11, %12, %cst_13 {dimension_numbers = #tpu.dot_dimension_numbers<[1], [0], [0], [1], [0, 0, 1, 1], [], []>} : vector<1x512xf32>, vector<512x8xf32>, vector<1x8xf32> -> vector<1x8xf32>
    %c0_14 = arith.constant 0 : index
    %c0_15 = arith.constant 0 : index
    %14 = vector.load %arg8[%c0_14, %c0_15] : memref<1x8xf32, #tpu.memory_space<vmem>>, vector<1x8xf32>
    %15 = arith.addf %13, %14 : vector<1x8xf32>
    %c0_16 = arith.constant 0 : index
    %c0_17 = arith.constant 0 : index
    %c0_18 = arith.constant 0 : index
    %16 = vector.load %arg21[%c0_16, %c0_17, %c0_18] : memref<1x1x8xf32, #tpu.memory_space<vmem>>, vector<1x1x8xf32>
    %17 = vector.shape_cast %16 : vector<1x1x8xf32> to vector<1x8xf32>
    %18 = vector.shape_cast %15 : vector<1x8xf32> to vector<1x1x8xf32>
    tpu.vector_store %arg21[%c0_16, %c0_17, %c0_18], %18 {strides = array<i32>} : memref<1x1x8xf32, #tpu.memory_space<vmem>>, vector<1x1x8xf32>,
    %cst_19 = arith.constant dense<0xFF800000> : vector<1xf32>
    %19 = vector.multi_reduction <maximumf>, %15, %cst_19 [1] : vector<1x8xf32> to vector<1xf32>
    %20 = vector.shape_cast %19 : vector<1xf32> to vector<1x1xf32>
    %21 = vector.broadcast %20 : vector<1x1xf32> to vector<1x8xf32>
    %22 = arith.subf %15, %21 : vector<1x8xf32>
    %23 = math.exp %22 : vector<1x8xf32>
    %cst_20 = arith.constant dense<0.000000e+00> : vector<1xf32>
    %24 = vector.multi_reduction <add>, %23, %cst_20 [1] : vector<1x8xf32> to vector<1xf32>
    %25 = vector.shape_cast %24 : vector<1xf32> to vector<1x1xf32>
    %26 = tpu.reciprocal %25 {approx = true} : vector<1x1xf32> -> vector<1x1xf32>
    %27 = vector.broadcast %26 : vector<1x1xf32> to vector<1x8xf32>
    %28 = arith.mulf %23, %27 : vector<1x8xf32>
    %c0_21 = arith.constant 0 : index
    %c0_22 = arith.constant 0 : index
    %29 = vector.load %arg20[%c0_21, %c0_22] : memref<8x512xf32, #tpu.memory_space<vmem>>, vector<8x512xf32>
    %cst_23 = arith.constant dense<0.000000e+00> : vector<1x512xf32>
    %30 = tpu.matmul %28, %29, %cst_23 {dimension_numbers = #tpu.dot_dimension_numbers<[1], [0], [0], [1], [0, 0, 1, 1], [], []>} : vector<1x8xf32>, vector<8x512xf32>, vector<1x512xf32> -> vector<1x512xf32>
    %c0_24 = arith.constant 0 : index
    %c0_25 = arith.constant 0 : index
    %c0_26 = arith.constant 0 : index
    %31 = vector.load %arg1[%c0_24, %c0_25, %c0_26] : memref<1x5x2048xf32, #tpu.memory_space<vmem>>, vector<1x5x2048xf32>
    %32 = vector.shape_cast %31 : vector<1x5x2048xf32> to vector<5x2048xf32>
    %c0_27 = arith.constant 0 : index
    %c0_28 = arith.constant 0 : index
    %33 = vector.load %arg9[%c0_27, %c0_28] : memref<2048x64xf32, #tpu.memory_space<vmem>>, vector<2048x64xf32>
    %cst_29 = arith.constant dense<0.000000e+00> : vector<5x64xf32>
    %34 = tpu.matmul %32, %33, %cst_29 {dimension_numbers = #tpu.dot_dimension_numbers<[1], [0], [0], [1], [0, 0, 1, 1], [], []>} : vector<5x2048xf32>, vector<2048x64xf32>, vector<5x64xf32> -> vector<5x64xf32>
    %c0_30 = arith.constant 0 : index
    %c0_31 = arith.constant 0 : index
    %35 = vector.load %arg10[%c0_30, %c0_31] : memref<1x64xf32, #tpu.memory_space<vmem>>, vector<1x64xf32>
    %36 = vector.broadcast %35 : vector<1x64xf32> to vector<5x64xf32>
    %37 = arith.addf %34, %36 : vector<5x64xf32>
    %cst_32 = arith.constant dense<0.000000e+00> : vector<5xf32>
    %38 = vector.multi_reduction <add>, %37, %cst_32 [1] : vector<5x64xf32> to vector<5xf32>
    %39 = vector.shape_cast %38 : vector<5xf32> to vector<5x1xf32>
    %cst_33 = arith.constant 6.400000e+01 : f32
    %40 = vector.broadcast %cst_33 : f32 to vector<5x1xf32>
    %41 = arith.divf %39, %40 : vector<5x1xf32>
    %42 = vector.broadcast %41 : vector<5x1xf32> to vector<5x64xf32>
    %43 = arith.subf %37, %42 : vector<5x64xf32>
    %44 = arith.mulf %43, %43 : vector<5x64xf32>
    %cst_34 = arith.constant dense<0.000000e+00> : vector<5xf32>
    %45 = vector.multi_reduction <add>, %44, %cst_34 [1] : vector<5x64xf32> to vector<5xf32>
    %46 = vector.shape_cast %45 : vector<5xf32> to vector<5x1xf32>
    %cst_35 = arith.constant 6.400000e+01 : f32
    %47 = vector.broadcast %cst_35 : f32 to vector<5x1xf32>
    %48 = arith.divf %46, %47 : vector<5x1xf32>
    %49 = vector.broadcast %41 : vector<5x1xf32> to vector<5x64xf32>
    %50 = arith.subf %37, %49 : vector<5x64xf32>
    %cst_36 = arith.constant 9.99999974E-6 : f32
    %51 = vector.broadcast %cst_36 : f32 to vector<5x1xf32>
    %52 = arith.addf %48, %51 : vector<5x1xf32>
    %53 = math.rsqrt %52 : vector<5x1xf32>
    %54 = vector.broadcast %53 : vector<5x1xf32> to vector<5x64xf32>
    %55 = arith.mulf %50, %54 : vector<5x64xf32>
    %c0_37 = arith.constant 0 : index
    %c0_38 = arith.constant 0 : index
    %56 = vector.load %arg11[%c0_37, %c0_38] : memref<1x64xf32, #tpu.memory_space<vmem>>, vector<1x64xf32>
    %57 = vector.broadcast %56 : vector<1x64xf32> to vector<5x64xf32>
    %58 = arith.mulf %55, %57 : vector<5x64xf32>
    %c0_39 = arith.constant 0 : index
    %c0_40 = arith.constant 0 : index
    %59 = vector.load %arg12[%c0_39, %c0_40] : memref<1x64xf32, #tpu.memory_space<vmem>>, vector<1x64xf32>
    %60 = vector.broadcast %59 : vector<1x64xf32> to vector<5x64xf32>
    %61 = arith.addf %58, %60 : vector<5x64xf32>
    %cst_41 = arith.constant 0.000000e+00 : f32
    %62 = vector.broadcast %cst_41 : f32 to vector<5x64xf32>
    %63 = arith.maximumf %61, %62 : vector<5x64xf32>
    %c0_42 = arith.constant 0 : index
    %c0_43 = arith.constant 0 : index
    %64 = vector.load %arg13[%c0_42, %c0_43] : memref<512x512xf32, #tpu.memory_space<vmem>>, vector<512x512xf32>
    %cst_44 = arith.constant dense<0.000000e+00> : vector<1x512xf32>
    %65 = tpu.matmul %30, %64, %cst_44 {dimension_numbers = #tpu.dot_dimension_numbers<[1], [0], [0], [1], [0, 0, 1, 1], [], []>} : vector<1x512xf32>, vector<512x512xf32>, vector<1x512xf32> -> vector<1x512xf32>
    %c0_45 = arith.constant 0 : index
    %c0_46 = arith.constant 0 : index
    %66 = vector.load %arg14[%c0_45, %c0_46] : memref<64x512xf32, #tpu.memory_space<vmem>>, vector<64x512xf32>
    %cst_47 = arith.constant dense<0.000000e+00> : vector<5x512xf32>
    %67 = tpu.matmul %63, %66, %cst_47 {dimension_numbers = #tpu.dot_dimension_numbers<[1], [0], [0], [1], [0, 0, 1, 1], [], []>} : vector<5x64xf32>, vector<64x512xf32>, vector<5x512xf32> -> vector<5x512xf32>
    %68 = vector.broadcast %65 : vector<1x512xf32> to vector<5x512xf32>
    %69 = arith.addf %68, %67 : vector<5x512xf32>
    %c0_48 = arith.constant 0 : index
    %c0_49 = arith.constant 0 : index
    %70 = vector.load %arg15[%c0_48, %c0_49] : memref<1x512xf32, #tpu.memory_space<vmem>>, vector<1x512xf32>
    %71 = vector.broadcast %70 : vector<1x512xf32> to vector<5x512xf32>
    %72 = arith.addf %69, %71 : vector<5x512xf32>
    %c0_50 = arith.constant 0 : index
    %c0_51 = arith.constant 0 : index
    %73 = vector.load %arg16[%c0_50, %c0_51] : memref<1x512xf32, #tpu.memory_space<vmem>>, vector<1x512xf32>
    %74 = vector.broadcast %73 : vector<1x512xf32> to vector<5x512xf32>
    %75 = arith.mulf %72, %74 : vector<5x512xf32>
    %c0_52 = arith.constant 0 : index
    %c0_53 = arith.constant 0 : index
    %76 = vector.load %arg17[%c0_52, %c0_53] : memref<1x512xf32, #tpu.memory_space<vmem>>, vector<1x512xf32>
    %77 = vector.broadcast %76 : vector<1x512xf32> to vector<5x512xf32>
    %78 = arith.addf %75, %77 : vector<5x512xf32>
    %cst_54 = arith.constant 0.000000e+00 : f32
    %79 = vector.broadcast %cst_54 : f32 to vector<5x512xf32>
    %80 = arith.maximumf %78, %79 : vector<5x512xf32>
    %c0_55 = arith.constant 0 : index
    %c0_56 = arith.constant 0 : index
    %81 = vector.load %arg18[%c0_55, %c0_56] : memref<512x8xf32, #tpu.memory_space<vmem>>, vector<512x8xf32>
    %cst_57 = arith.constant dense<0.000000e+00> : vector<5x8xf32>
    %82 = tpu.matmul %80, %81, %cst_57 {dimension_numbers = #tpu.dot_dimension_numbers<[1], [0], [0], [1], [0, 0, 1, 1], [], []>} : vector<5x512xf32>, vector<512x8xf32>, vector<5x8xf32> -> vector<5x8xf32>
    %c0_58 = arith.constant 0 : index
    %c0_59 = arith.constant 0 : index
    %83 = vector.load %arg19[%c0_58, %c0_59] : memref<1x8xf32, #tpu.memory_space<vmem>>, vector<1x8xf32>
    %84 = vector.broadcast %83 : vector<1x8xf32> to vector<5x8xf32>
    %85 = arith.addf %82, %84 : vector<5x8xf32>
    %c0_60 = arith.constant 0 : index
    %c0_61 = arith.constant 0 : index
    %c0_62 = arith.constant 0 : index
    %86 = vector.load %arg22[%c0_60, %c0_61, %c0_62] : memref<1x5x8xf32, #tpu.memory_space<vmem>>, vector<1x5x8xf32>
    %87 = vector.shape_cast %86 : vector<1x5x8xf32> to vector<5x8xf32>
    %88 = vector.shape_cast %85 : vector<5x8xf32> to vector<1x5x8xf32>
    tpu.vector_store %arg22[%c0_60, %c0_61, %c0_62], %88 {strides = array<i32>} : memref<1x5x8xf32, #tpu.memory_space<vmem>>, vector<1x5x8xf32>,
    %cst_63 = arith.constant dense<0xFF800000> : vector<5xf32>
    %89 = vector.multi_reduction <maximumf>, %85, %cst_63 [1] : vector<5x8xf32> to vector<5xf32>
    %90 = vector.shape_cast %89 : vector<5xf32> to vector<5x1xf32>
    %91 = vector.broadcast %90 : vector<5x1xf32> to vector<5x8xf32>
    %92 = arith.subf %85, %91 : vector<5x8xf32>
    %93 = math.exp %92 : vector<5x8xf32>
    %cst_64 = arith.constant dense<0.000000e+00> : vector<5xf32>
    %94 = vector.multi_reduction <add>, %93, %cst_64 [1] : vector<5x8xf32> to vector<5xf32>
    %95 = vector.shape_cast %94 : vector<5xf32> to vector<5x1xf32>
    %96 = tpu.reciprocal %95 {approx = true} : vector<5x1xf32> -> vector<5x1xf32>
    %97 = vector.broadcast %96 : vector<5x1xf32> to vector<5x8xf32>
    %98 = arith.mulf %93, %97 : vector<5x8xf32>
    %c0_65 = arith.constant 0 : index
    %c0_66 = arith.constant 0 : index
    %99 = vector.load %arg20[%c0_65, %c0_66] : memref<8x512xf32, #tpu.memory_space<vmem>>, vector<8x512xf32>
    %cst_67 = arith.constant dense<0.000000e+00> : vector<5x512xf32>
    %100 = tpu.matmul %98, %99, %cst_67 {dimension_numbers = #tpu.dot_dimension_numbers<[1], [0], [0], [1], [0, 0, 1, 1], [], []>} : vector<5x8xf32>, vector<8x512xf32>, vector<5x512xf32> -> vector<5x512xf32>
    %c0_68 = arith.constant 0 : index
    %c0_69 = arith.constant 0 : index
    %c0_70 = arith.constant 0 : index
    %101 = vector.load %arg23[%c0_68, %c0_69, %c0_70] : memref<1x5x512xf32, #tpu.memory_space<vmem>>, vector<1x5x512xf32>
    %102 = vector.shape_cast %101 : vector<1x5x512xf32> to vector<5x512xf32>
    %103 = vector.shape_cast %100 : vector<5x512xf32> to vector<1x5x512xf32>
    tpu.vector_store %arg23[%c0_68, %c0_69, %c0_70], %103 {strides = array<i32>} : memref<1x5x512xf32, #tpu.memory_space<vmem>>, vector<1x5x512xf32>,
    return
  }
  func.func @transform_0(%arg0: i32) -> (i32, i32, i32) {
    %c0_i32 = arith.constant 0 : i32
    %c0_i32_0 = arith.constant 0 : i32
    %c0_i32_1 = arith.constant 0 : i32
    return %arg0, %c0_i32, %c0_i32_0 : i32, i32, i32
  }
  func.func @transform_1(%arg0: i32) -> (i32, i32, i32) {
    %c0_i32 = arith.constant 0 : i32
    %c0_i32_0 = arith.constant 0 : i32
    %c0_i32_1 = arith.constant 0 : i32
    return %arg0, %c0_i32, %c0_i32_0 : i32, i32, i32
  }
  func.func @transform_2(%arg0: i32) -> (i32, i32) {
    %c0_i32 = arith.constant 0 : i32
    %c0_i32_0 = arith.constant 0 : i32
    %c0_i32_1 = arith.constant 0 : i32
    return %c0_i32, %c0_i32_0 : i32, i32
  }
  func.func @transform_3(%arg0: i32) -> (i32, i32) {
    %c0_i32 = arith.constant 0 : i32
    %c0_i32_0 = arith.constant 0 : i32
    %c0_i32_1 = arith.constant 0 : i32
    return %c0_i32, %c0_i32_0 : i32, i32
  }
  func.func @transform_4(%arg0: i32) -> (i32, i32) {
    %c0_i32 = arith.constant 0 : i32
    %c0_i32_0 = arith.constant 0 : i32
    %c0_i32_1 = arith.constant 0 : i32
    return %c0_i32, %c0_i32_0 : i32, i32
  }
  func.func @transform_5(%arg0: i32) -> (i32, i32) {
    %c0_i32 = arith.constant 0 : i32
    %c0_i32_0 = arith.constant 0 : i32
    %c0_i32_1 = arith.constant 0 : i32
    return %c0_i32, %c0_i32_0 : i32, i32
  }
  func.func @transform_6(%arg0: i32) -> (i32, i32) {
    %c0_i32 = arith.constant 0 : i32
    %c0_i32_0 = arith.constant 0 : i32
    %c0_i32_1 = arith.constant 0 : i32
    return %c0_i32, %c0_i32_0 : i32, i32
  }
  func.func @transform_7(%arg0: i32) -> (i32, i32) {
    %c0_i32 = arith.constant 0 : i32
    %c0_i32_0 = arith.constant 0 : i32
    %c0_i32_1 = arith.constant 0 : i32
    return %c0_i32, %c0_i32_0 : i32, i32
  }
  func.func @transform_8(%arg0: i32) -> (i32, i32) {
    %c0_i32 = arith.constant 0 : i32
    %c0_i32_0 = arith.constant 0 : i32
    %c0_i32_1 = arith.constant 0 : i32
    return %c0_i32, %c0_i32_0 : i32, i32
  }
  func.func @transform_9(%arg0: i32) -> (i32, i32) {
    %c0_i32 = arith.constant 0 : i32
    %c0_i32_0 = arith.constant 0 : i32
    %c0_i32_1 = arith.constant 0 : i32
    return %c0_i32, %c0_i32_0 : i32, i32
  }
  func.func @transform_10(%arg0: i32) -> (i32, i32) {
    %c0_i32 = arith.constant 0 : i32
    %c0_i32_0 = arith.constant 0 : i32
    %c0_i32_1 = arith.constant 0 : i32
    return %c0_i32, %c0_i32_0 : i32, i32
  }
  func.func @transform_11(%arg0: i32) -> (i32, i32) {
    %c0_i32 = arith.constant 0 : i32
    %c0_i32_0 = arith.constant 0 : i32
    %c0_i32_1 = arith.constant 0 : i32
    return %c0_i32, %c0_i32_0 : i32, i32
  }
  func.func @transform_12(%arg0: i32) -> (i32, i32) {
    %c0_i32 = arith.constant 0 : i32
    %c0_i32_0 = arith.constant 0 : i32
    %c0_i32_1 = arith.constant 0 : i32
    return %c0_i32, %c0_i32_0 : i32, i32
  }
  func.func @transform_13(%arg0: i32) -> (i32, i32) {
    %c0_i32 = arith.constant 0 : i32
    %c0_i32_0 = arith.constant 0 : i32
    %c0_i32_1 = arith.constant 0 : i32
    return %c0_i32, %c0_i32_0 : i32, i32
  }
  func.func @transform_14(%arg0: i32) -> (i32, i32) {
    %c0_i32 = arith.constant 0 : i32
    %c0_i32_0 = arith.constant 0 : i32
    %c0_i32_1 = arith.constant 0 : i32
    return %c0_i32, %c0_i32_0 : i32, i32
  }
  func.func @transform_15(%arg0: i32) -> (i32, i32) {
    %c0_i32 = arith.constant 0 : i32
    %c0_i32_0 = arith.constant 0 : i32
    %c0_i32_1 = arith.constant 0 : i32
    return %c0_i32, %c0_i32_0 : i32, i32
  }
  func.func @transform_16(%arg0: i32) -> (i32, i32) {
    %c0_i32 = arith.constant 0 : i32
    %c0_i32_0 = arith.constant 0 : i32
    %c0_i32_1 = arith.constant 0 : i32
    return %c0_i32, %c0_i32_0 : i32, i32
  }
  func.func @transform_17(%arg0: i32) -> (i32, i32) {
    %c0_i32 = arith.constant 0 : i32
    %c0_i32_0 = arith.constant 0 : i32
    %c0_i32_1 = arith.constant 0 : i32
    return %c0_i32, %c0_i32_0 : i32, i32
  }
  func.func @transform_18(%arg0: i32) -> (i32, i32) {
    %c0_i32 = arith.constant 0 : i32
    %c0_i32_0 = arith.constant 0 : i32
    %c0_i32_1 = arith.constant 0 : i32
    return %c0_i32, %c0_i32_0 : i32, i32
  }
  func.func @transform_19(%arg0: i32) -> (i32, i32) {
    %c0_i32 = arith.constant 0 : i32
    %c0_i32_0 = arith.constant 0 : i32
    %c0_i32_1 = arith.constant 0 : i32
    return %c0_i32, %c0_i32_0 : i32, i32
  }
  func.func @transform_20(%arg0: i32) -> (i32, i32, i32) {
    %c0_i32 = arith.constant 0 : i32
    %c0_i32_0 = arith.constant 0 : i32
    %c0_i32_1 = arith.constant 0 : i32
    return %arg0, %c0_i32, %c0_i32_0 : i32, i32, i32
  }
  func.func @transform_21(%arg0: i32) -> (i32, i32, i32) {
    %c0_i32 = arith.constant 0 : i32
    %c0_i32_0 = arith.constant 0 : i32
    %c0_i32_1 = arith.constant 0 : i32
    return %arg0, %c0_i32, %c0_i32_0 : i32, i32, i32
  }
  func.func @transform_22(%arg0: i32) -> (i32, i32, i32) {
    %c0_i32 = arith.constant 0 : i32
    %c0_i32_0 = arith.constant 0 : i32
    %c0_i32_1 = arith.constant 0 : i32
    return %arg0, %c0_i32, %c0_i32_0 : i32, i32, i32
  }
}

</mosaic_0001>

<llo_original>
// kernel: tpu_custom_call.1
$region0: #{tpu_custom_call.1}
  #allocation0 [shape = 'u32[]', space=smem, size = 0x4, offset = 0x4, fixed_abs, tag = 'smem constant byte address 0x4 - core index']
  #allocation1 [shape = 'u32[144,128]{1,0:T(1,128)}', space=vmem, size = 0x12000, scoped, tag = 'internal scratch']
  %s0 = inlined_call_operand.vmem [shape: f32[2,5,2048], index: 0, kind: input, shape index: {}]
  %s1 = inlined_call_operand.vmem [shape: f32[2,1,512], index: 1, kind: input, shape index: {}]
  %s2 = inlined_call_operand.vmem [shape: f32[512,512], index: 2, kind: input, shape index: {}]
  %s3 = inlined_call_operand.vmem [shape: f32[1,512], index: 3, kind: input, shape index: {}]
  %s4 = inlined_call_operand.vmem [shape: f32[1,512], index: 4, kind: input, shape index: {}]
  %s5 = inlined_call_operand.vmem [shape: f32[1,512], index: 5, kind: input, shape index: {}]
  %s6 = inlined_call_operand.vmem [shape: f32[512,8], index: 6, kind: input, shape index: {}]
  %s7 = inlined_call_operand.vmem [shape: f32[1,8], index: 7, kind: input, shape index: {}]
  %s8 = inlined_call_operand.vmem [shape: f32[2048,64], index: 8, kind: input, shape index: {}]
  %s9 = inlined_call_operand.vmem [shape: f32[1,64], index: 9, kind: input, shape index: {}]
  %s10 = inlined_call_operand.vmem [shape: f32[1,64], index: 10, kind: input, shape index: {}]
  %s11 = inlined_call_operand.vmem [shape: f32[1,64], index: 11, kind: input, shape index: {}]
  %s12 = inlined_call_operand.vmem [shape: f32[512,512], index: 12, kind: input, shape index: {}]
  %s13 = inlined_call_operand.vmem [shape: f32[64,512], index: 13, kind: input, shape index: {}]
  %s14 = inlined_call_operand.vmem [shape: f32[1,512], index: 14, kind: input, shape index: {}]
  %s15 = inlined_call_operand.vmem [shape: f32[1,512], index: 15, kind: input, shape index: {}]
  %s16 = inlined_call_operand.vmem [shape: f32[1,512], index: 16, kind: input, shape index: {}]
  %s17 = inlined_call_operand.vmem [shape: f32[512,8], index: 17, kind: input, shape index: {}]
  %s18 = inlined_call_operand.vmem [shape: f32[1,8], index: 18, kind: input, shape index: {}]
  %s19 = inlined_call_operand.vmem [shape: f32[8,512], index: 19, kind: input, shape index: {}]
  %s20 = inlined_call_operand.hbm [shape: f32[2,1,8], index: 20, kind: output, shape index: {0}]
  %s21 = inlined_call_operand.vmem [shape: f32[2,5,8], index: 21, kind: output, shape index: {1}]
  %s22 = inlined_call_operand.vmem [shape: f32[2,5,512], index: 22, kind: output, shape index: {2}]
  %23 = xla_tuple %s20, %s21, %s22
  %s24 = sld [smem:[#allocation0]]
  $region129: #{tpu_custom_call.1} parent=0
    _
  %s26 = ssub.s32 1, %s24
  %s27 = scalar_select 0, %s26, %s24
  $region1: #{tpu_custom_call.1} parent=0
    #allocation2 [shape = 'u8[1024]{0}', space=vmem, size = 0x400, scoped, tag = 'output window, operand 0']
    #allocation3 [shape = 's32[2]{0}', space=sflag, size = 0x8, scoped, tag = 'scoped memory for tpu_custom_call.1']
    %28 = vsyncpa [#allocation3], 0
    %s29 = scalar_lea.sflag [#allocation3], 1
    %30 = vsyncpa %s29, 0
    loop: start=0, step=1, limit=4
    $region2: #{tpu_custom_call.1} parent=1 // loop_pre_header
      _
    $region3: #{tpu_custom_call.1} parent=1 // loop_header
      %s32 = sphi 0, %s36
      %p33 = scmp.ge.s32.totalorder %s32, 4
      %s42 = sphi 0, %s44
      %s45 = sphi 0, %s42
      %s46 = sphi 0, %s45
      %s62 = sphi 0, %s46
      %s68 = sphi 0, %s70
      %s71 = sphi 0, %s68
      %s72 = sphi 0, %s71
      %s88 = sphi 0, %s72
      %s92 = sphi 0, %s92
      %s94 = sphi 0, %s92
      %s95 = sphi 0, %s94
      %s109 = sphi 0, %s95
      %s113 = sphi 0, %s113
      %s115 = sphi 0, %s113
      %s116 = sphi 0, %s115
      %s130 = sphi 0, %s116
      %s134 = sphi 0, %s134
      %s136 = sphi 0, %s134
      %s137 = sphi 0, %s136
      %s151 = sphi 0, %s137
      %s155 = sphi 0, %s155
      %s157 = sphi 0, %s155
      %s158 = sphi 0, %s157
      %s172 = sphi 0, %s158
      %s176 = sphi 0, %s176
      %s178 = sphi 0, %s176
      %s179 = sphi 0, %s178
      %s193 = sphi 0, %s179
      %s197 = sphi 0, %s197
      %s199 = sphi 0, %s197
      %s200 = sphi 0, %s199
      %s214 = sphi 0, %s200
      %s218 = sphi 0, %s218
      %s220 = sphi 0, %s218
      %s221 = sphi 0, %s220
      %s235 = sphi 0, %s221
      %s239 = sphi 0, %s239
      %s241 = sphi 0, %s239
      %s242 = sphi 0, %s241
      %s256 = sphi 0, %s242
      %s260 = sphi 0, %s260
      %s262 = sphi 0, %s260
      %s263 = sphi 0, %s262
      %s277 = sphi 0, %s263
      %s281 = sphi 0, %s281
      %s283 = sphi 0, %s281
      %s284 = sphi 0, %s283
      %s298 = sphi 0, %s284
      %s302 = sphi 0, %s302
      %s304 = sphi 0, %s302
      %s305 = sphi 0, %s304
      %s319 = sphi 0, %s305
      %s323 = sphi 0, %s323
      %s325 = sphi 0, %s323
      %s326 = sphi 0, %s325
      %s340 = sphi 0, %s326
      %s344 = sphi 0, %s344
      %s346 = sphi 0, %s344
      %s347 = sphi 0, %s346
      %s361 = sphi 0, %s347
      %s365 = sphi 0, %s365
      %s367 = sphi 0, %s365
      %s368 = sphi 0, %s367
      %s382 = sphi 0, %s368
      %s386 = sphi 0, %s386
      %s388 = sphi 0, %s386
      %s389 = sphi 0, %s388
      %s403 = sphi 0, %s389
      %s407 = sphi 0, %s407
      %s409 = sphi 0, %s407
      %s410 = sphi 0, %s409
      %s424 = sphi 0, %s410
      %s428 = sphi 0, %s428
      %s430 = sphi 0, %s428
      %s431 = sphi 0, %s430
      %s445 = sphi 0, %s431
      %s449 = sphi 0, %s449
      %s451 = sphi 0, %s449
      %s452 = sphi 0, %s451
      %s466 = sphi 0, %s452
      %s472 = sphi 0, %s474
      %s475 = sphi 0, %s472
      %s476 = sphi 0, %s475
      %s492 = sphi 0, %s476
      %s498 = sphi 0, %s500
      %s501 = sphi 0, %s498
      %s502 = sphi 0, %s501
      %s518 = sphi 0, %s502
      %s524 = sphi 0, %s526
      %s527 = sphi 0, %s524
      %s528 = sphi 0, %s527
      %s544 = sphi 0, %s528
    $region4: #{tpu_custom_call.1} parent=1 // loop_header_branch
      %35 = sbr.rel (%p33) target = $region8
    $region5: #{tpu_custom_call.1} parent=1 // loop_body
      %s37 = ssub.s32 %s32, 1
      %s38 = ssub.s32 %s32, 2
      %s39 = sadd.s32 %s32, 1
      %s40 = ssub.s32 %s32, %s39
      %p41 = scmp.eq.s32.totalorder %s40, 0
      %s43 = sadd.s32 %s42, 1
      %s44 = scalar_select %p41, %s42, %s43
      %p47 = pneg %p41
      %p48 = scmp.eq.s32.totalorder %s32, 1
      %p49 = por %p47, %p48
      %p50 = scmp.ne.s32.totalorder %s42, %s45
      %p51 = scmp.eq.s32.totalorder %s32, 0
      %p52 = por %p50, %p51
      %p53 = scmp.ne.s32.totalorder %s42, %s45
      %p54 = scmp.eq.s32.totalorder %s37, 1
      %p55 = por %p53, %p54
      %p56 = scmp.ne.s32.totalorder %s45, %s46
      %p57 = scmp.eq.s32.totalorder %s37, 0
      %p58 = por %p56, %p57
      %p59 = scmp.ne.s32.totalorder %s45, %s46
      %p60 = scmp.eq.s32.totalorder %s38, 1
      %p61 = por %p59, %p60
      %p63 = scmp.ne.s32.totalorder %s46, %s62
      %p64 = scmp.eq.s32.totalorder %s38, 0
      %p65 = por %p63, %p64
      %s66 = ssub.s32 %s32, %s39
      %p67 = scmp.eq.s32.totalorder %s66, 0
      %s69 = sadd.s32 %s68, 1
      %s70 = scalar_select %p67, %s68, %s69
      %p73 = pneg %p67
      %p74 = scmp.eq.s32.totalorder %s32, 1
      %p75 = por %p73, %p74
      %p76 = scmp.ne.s32.totalorder %s68, %s71
      %p77 = scmp.eq.s32.totalorder %s32, 0
      %p78 = por %p76, %p77
      %p79 = scmp.ne.s32.totalorder %s68, %s71
      %p80 = scmp.eq.s32.totalorder %s37, 1
      %p81 = por %p79, %p80
      %p82 = scmp.ne.s32.totalorder %s71, %s72
      %p83 = scmp.eq.s32.totalorder %s37, 0
      %p84 = por %p82, %p83
      %p85 = scmp.ne.s32.totalorder %s71, %s72
      %p86 = scmp.eq.s32.totalorder %s38, 1
      %p87 = por %p85, %p86
      %p89 = scmp.ne.s32.totalorder %s72, %s88
      %p90 = scmp.eq.s32.totalorder %s38, 0
      %p91 = por %p89, %p90
      %s93 = sadd.s32 %s92, 1
      %p96 = scmp.eq.s32.totalorder %s32, 1
      %p97 = scmp.ne.s32.totalorder %s92, %s94
      %p98 = scmp.eq.s32.totalorder %s32, 0
      %p99 = por %p97, %p98
      %p100 = scmp.ne.s32.totalorder %s92, %s94
      %p101 = scmp.eq.s32.totalorder %s37, 1
      %p102 = por %p100, %p101
      %p103 = scmp.ne.s32.totalorder %s94, %s95
      %p104 = scmp.eq.s32.totalorder %s37, 0
      %p105 = por %p103, %p104
      %p106 = scmp.ne.s32.totalorder %s94, %s95
      %p107 = scmp.eq.s32.totalorder %s38, 1
      %p108 = por %p106, %p107
      %p110 = scmp.ne.s32.totalorder %s95, %s109
      %p111 = scmp.eq.s32.totalorder %s38, 0
      %p112 = por %p110, %p111
      %s114 = sadd.s32 %s113, 1
      %p117 = scmp.eq.s32.totalorder %s32, 1
      %p118 = scmp.ne.s32.totalorder %s113, %s115
      %p119 = scmp.eq.s32.totalorder %s32, 0
      %p120 = por %p118, %p119
      %p121 = scmp.ne.s32.totalorder %s113, %s115
      %p122 = scmp.eq.s32.totalorder %s37, 1
      %p123 = por %p121, %p122
      %p124 = scmp.ne.s32.totalorder %s115, %s116
      %p125 = scmp.eq.s32.totalorder %s37, 0
      %p126 = por %p124, %p125
      %p127 = scmp.ne.s32.totalorder %s115, %s116
      %p128 = scmp.eq.s32.totalorder %s38, 1
      %p129 = por %p127, %p128
      %p131 = scmp.ne.s32.totalorder %s116, %s130
      %p132 = scmp.eq.s32.totalorder %s38, 0
      %p133 = por %p131, %p132
      %s135 = sadd.s32 %s134, 1
      %p138 = scmp.eq.s32.totalorder %s32, 1
      %p139 = scmp.ne.s32.totalorder %s134, %s136
      %p140 = scmp.eq.s32.totalorder %s32, 0
      %p141 = por %p139, %p140
      %p142 = scmp.ne.s32.totalorder %s134, %s136
      %p143 = scmp.eq.s32.totalorder %s37, 1
      %p144 = por %p142, %p143
      %p145 = scmp.ne.s32.totalorder %s136, %s137
      %p146 = scmp.eq.s32.totalorder %s37, 0
      %p147 = por %p145, %p146
      %p148 = scmp.ne.s32.totalorder %s136, %s137
      %p149 = scmp.eq.s32.totalorder %s38, 1
      %p150 = por %p148, %p149
      %p152 = scmp.ne.s32.totalorder %s137, %s151
      %p153 = scmp.eq.s32.totalorder %s38, 0
      %p154 = por %p152, %p153
      %s156 = sadd.s32 %s155, 1
      %p159 = scmp.eq.s32.totalorder %s32, 1
      %p160 = scmp.ne.s32.totalorder %s155, %s157
      %p161 = scmp.eq.s32.totalorder %s32, 0
      %p162 = por %p160, %p161
      %p163 = scmp.ne.s32.totalorder %s155, %s157
      %p164 = scmp.eq.s32.totalorder %s37, 1
      %p165 = por %p163, %p164
      %p166 = scmp.ne.s32.totalorder %s157, %s158
      %p167 = scmp.eq.s32.totalorder %s37, 0
      %p168 = por %p166, %p167
      %p169 = scmp.ne.s32.totalorder %s157, %s158
      %p170 = scmp.eq.s32.totalorder %s38, 1
      %p171 = por %p169, %p170
      %p173 = scmp.ne.s32.totalorder %s158, %s172
      %p174 = scmp.eq.s32.totalorder %s38, 0
      %p175 = por %p173, %p174
      %s177 = sadd.s32 %s176, 1
      %p180 = scmp.eq.s32.totalorder %s32, 1
      %p181 = scmp.ne.s32.totalorder %s176, %s178
      %p182 = scmp.eq.s32.totalorder %s32, 0
      %p183 = por %p181, %p182
      %p184 = scmp.ne.s32.totalorder %s176, %s178
      %p185 = scmp.eq.s32.totalorder %s37, 1
      %p186 = por %p184, %p185
      %p187 = scmp.ne.s32.totalorder %s178, %s179
      %p188 = scmp.eq.s32.totalorder %s37, 0
      %p189 = por %p187, %p188
      %p190 = scmp.ne.s32.totalorder %s178, %s179
      %p191 = scmp.eq.s32.totalorder %s38, 1
      %p192 = por %p190, %p191
      %p194 = scmp.ne.s32.totalorder %s179, %s193
      %p195 = scmp.eq.s32.totalorder %s38, 0
      %p196 = por %p194, %p195
      %s198 = sadd.s32 %s197, 1
      %p201 = scmp.eq.s32.totalorder %s32, 1
      %p202 = scmp.ne.s32.totalorder %s197, %s199
      %p203 = scmp.eq.s32.totalorder %s32, 0
      %p204 = por %p202, %p203
      %p205 = scmp.ne.s32.totalorder %s197, %s199
      %p206 = scmp.eq.s32.totalorder %s37, 1
      %p207 = por %p205, %p206
      %p208 = scmp.ne.s32.totalorder %s199, %s200
      %p209 = scmp.eq.s32.totalorder %s37, 0
      %p210 = por %p208, %p209
      %p211 = scmp.ne.s32.totalorder %s199, %s200
      %p212 = scmp.eq.s32.totalorder %s38, 1
      %p213 = por %p211, %p212
      %p215 = scmp.ne.s32.totalorder %s200, %s214
      %p216 = scmp.eq.s32.totalorder %s38, 0
      %p217 = por %p215, %p216
      %s219 = sadd.s32 %s218, 1
      %p222 = scmp.eq.s32.totalorder %s32, 1
      %p223 = scmp.ne.s32.totalorder %s218, %s220
      %p224 = scmp.eq.s32.totalorder %s32, 0
      %p225 = por %p223, %p224
      %p226 = scmp.ne.s32.totalorder %s218, %s220
      %p227 = scmp.eq.s32.totalorder %s37, 1
      %p228 = por %p226, %p227
      %p229 = scmp.ne.s32.totalorder %s220, %s221
      %p230 = scmp.eq.s32.totalorder %s37, 0
      %p231 = por %p229, %p230
      %p232 = scmp.ne.s32.totalorder %s220, %s221
      %p233 = scmp.eq.s32.totalorder %s38, 1
      %p234 = por %p232, %p233
      %p236 = scmp.ne.s32.totalorder %s221, %s235
      %p237 = scmp.eq.s32.totalorder %s38, 0
      %p238 = por %p236, %p237
      %s240 = sadd.s32 %s239, 1
      %p243 = scmp.eq.s32.totalorder %s32, 1
      %p244 = scmp.ne.s32.totalorder %s239, %s241
      %p245 = scmp.eq.s32.totalorder %s32, 0
      %p246 = por %p244, %p245
      %p247 = scmp.ne.s32.totalorder %s239, %s241
      %p248 = scmp.eq.s32.totalorder %s37, 1
      %p249 = por %p247, %p248
      %p250 = scmp.ne.s32.totalorder %s241, %s242
      %p251 = scmp.eq.s32.totalorder %s37, 0
      %p252 = por %p250, %p251
      %p253 = scmp.ne.s32.totalorder %s241, %s242
      %p254 = scmp.eq.s32.totalorder %s38, 1
      %p255 = por %p253, %p254
      %p257 = scmp.ne.s32.totalorder %s242, %s256
      %p258 = scmp.eq.s32.totalorder %s38, 0
      %p259 = por %p257, %p258
      %s261 = sadd.s32 %s260, 1
      %p264 = scmp.eq.s32.totalorder %s32, 1
      %p265 = scmp.ne.s32.totalorder %s260, %s262
      %p266 = scmp.eq.s32.totalorder %s32, 0
      %p267 = por %p265, %p266
      %p268 = scmp.ne.s32.totalorder %s260, %s262
      %p269 = scmp.eq.s32.totalorder %s37, 1
      %p270 = por %p268, %p269
      %p271 = scmp.ne.s32.totalorder %s262, %s263
      %p272 = scmp.eq.s32.totalorder %s37, 0
      %p273 = por %p271, %p272
      %p274 = scmp.ne.s32.totalorder %s262, %s263
      %p275 = scmp.eq.s32.totalorder %s38, 1
      %p276 = por %p274, %p275
      %p278 = scmp.ne.s32.totalorder %s263, %s277
      %p279 = scmp.eq.s32.totalorder %s38, 0
      %p280 = por %p278, %p279
      %s282 = sadd.s32 %s281, 1
      %p285 = scmp.eq.s32.totalorder %s32, 1
      %p286 = scmp.ne.s32.totalorder %s281, %s283
      %p287 = scmp.eq.s32.totalorder %s32, 0
      %p288 = por %p286, %p287
      %p289 = scmp.ne.s32.totalorder %s281, %s283
      %p290 = scmp.eq.s32.totalorder %s37, 1
      %p291 = por %p289, %p290
      %p292 = scmp.ne.s32.totalorder %s283, %s284
      %p293 = scmp.eq.s32.totalorder %s37, 0
      %p294 = por %p292, %p293
      %p295 = scmp.ne.s32.totalorder %s283, %s284
      %p296 = scmp.eq.s32.totalorder %s38, 1
      %p297 = por %p295, %p296
      %p299 = scmp.ne.s32.totalorder %s284, %s298
      %p300 = scmp.eq.s32.totalorder %s38, 0
      %p301 = por %p299, %p300
      %s303 = sadd.s32 %s302, 1
      %p306 = scmp.eq.s32.totalorder %s32, 1
      %p307 = scmp.ne.s32.totalorder %s302, %s304
      %p308 = scmp.eq.s32.totalorder %s32, 0
      %p309 = por %p307, %p308
      %p310 = scmp.ne.s32.totalorder %s302, %s304
      %p311 = scmp.eq.s32.totalorder %s37, 1
      %p312 = por %p310, %p311
      %p313 = scmp.ne.s32.totalorder %s304, %s305
      %p314 = scmp.eq.s32.totalorder %s37, 0
      %p315 = por %p313, %p314
      %p316 = scmp.ne.s32.totalorder %s304, %s305
      %p317 = scmp.eq.s32.totalorder %s38, 1
      %p318 = por %p316, %p317
      %p320 = scmp.ne.s32.totalorder %s305, %s319
      %p321 = scmp.eq.s32.totalorder %s38, 0
      %p322 = por %p320, %p321
      %s324 = sadd.s32 %s323, 1
      %p327 = scmp.eq.s32.totalorder %s32, 1
      %p328 = scmp.ne.s32.totalorder %s323, %s325
      %p329 = scmp.eq.s32.totalorder %s32, 0
      %p330 = por %p328, %p329
      %p331 = scmp.ne.s32.totalorder %s323, %s325
      %p332 = scmp.eq.s32.totalorder %s37, 1
      %p333 = por %p331, %p332
      %p334 = scmp.ne.s32.totalorder %s325, %s326
      %p335 = scmp.eq.s32.totalorder %s37, 0
      %p336 = por %p334, %p335
      %p337 = scmp.ne.s32.totalorder %s325, %s326
      %p338 = scmp.eq.s32.totalorder %s38, 1
      %p339 = por %p337, %p338
      %p341 = scmp.ne.s32.totalorder %s326, %s340
      %p342 = scmp.eq.s32.totalorder %s38, 0
      %p343 = por %p341, %p342
      %s345 = sadd.s32 %s344, 1
      %p348 = scmp.eq.s32.totalorder %s32, 1
      %p349 = scmp.ne.s32.totalorder %s344, %s346
      %p350 = scmp.eq.s32.totalorder %s32, 0
      %p351 = por %p349, %p350
      %p352 = scmp.ne.s32.totalorder %s344, %s346
      %p353 = scmp.eq.s32.totalorder %s37, 1
      %p354 = por %p352, %p353
      %p355 = scmp.ne.s32.totalorder %s346, %s347
      %p356 = scmp.eq.s32.totalorder %s37, 0
      %p357 = por %p355, %p356
      %p358 = scmp.ne.s32.totalorder %s346, %s347
      %p359 = scmp.eq.s32.totalorder %s38, 1
      %p360 = por %p358, %p359
      %p362 = scmp.ne.s32.totalorder %s347, %s361
      %p363 = scmp.eq.s32.totalorder %s38, 0
      %p364 = por %p362, %p363
      %s366 = sadd.s32 %s365, 1
      %p369 = scmp.eq.s32.totalorder %s32, 1
      %p370 = scmp.ne.s32.totalorder %s365, %s367
      %p371 = scmp.eq.s32.totalorder %s32, 0
      %p372 = por %p370, %p371
      %p373 = scmp.ne.s32.totalorder %s365, %s367
      %p374 = scmp.eq.s32.totalorder %s37, 1
      %p375 = por %p373, %p374
      %p376 = scmp.ne.s32.totalorder %s367, %s368
      %p377 = scmp.eq.s32.totalorder %s37, 0
      %p378 = por %p376, %p377
      %p379 = scmp.ne.s32.totalorder %s367, %s368
      %p380 = scmp.eq.s32.totalorder %s38, 1
      %p381 = por %p379, %p380
      %p383 = scmp.ne.s32.totalorder %s368, %s382
      %p384 = scmp.eq.s32.totalorder %s38, 0
      %p385 = por %p383, %p384
      %s387 = sadd.s32 %s386, 1
      %p390 = scmp.eq.s32.totalorder %s32, 1
      %p391 = scmp.ne.s32.totalorder %s386, %s388
      %p392 = scmp.eq.s32.totalorder %s32, 0
      %p393 = por %p391, %p392
      %p394 = scmp.ne.s32.totalorder %s386, %s388
      %p395 = scmp.eq.s32.totalorder %s37, 1
      %p396 = por %p394, %p395
      %p397 = scmp.ne.s32.totalorder %s388, %s389
      %p398 = scmp.eq.s32.totalorder %s37, 0
      %p399 = por %p397, %p398
      %p400 = scmp.ne.s32.totalorder %s388, %s389
      %p401 = scmp.eq.s32.totalorder %s38, 1
      %p402 = por %p400, %p401
      %p404 = scmp.ne.s32.totalorder %s389, %s403
      %p405 = scmp.eq.s32.totalorder %s38, 0
      %p406 = por %p404, %p405
      %s408 = sadd.s32 %s407, 1
      %p411 = scmp.eq.s32.totalorder %s32, 1
      %p412 = scmp.ne.s32.totalorder %s407, %s409
      %p413 = scmp.eq.s32.totalorder %s32, 0
      %p414 = por %p412, %p413
      %p415 = scmp.ne.s32.totalorder %s407, %s409
      %p416 = scmp.eq.s32.totalorder %s37, 1
      %p417 = por %p415, %p416
      %p418 = scmp.ne.s32.totalorder %s409, %s410
      %p419 = scmp.eq.s32.totalorder %s37, 0
      %p420 = por %p418, %p419
      %p421 = scmp.ne.s32.totalorder %s409, %s410
      %p422 = scmp.eq.s32.totalorder %s38, 1
      %p423 = por %p421, %p422
      %p425 = scmp.ne.s32.totalorder %s410, %s424
      %p426 = scmp.eq.s32.totalorder %s38, 0
      %p427 = por %p425, %p426
      %s429 = sadd.s32 %s428, 1
      %p432 = scmp.eq.s32.totalorder %s32, 1
      %p433 = scmp.ne.s32.totalorder %s428, %s430
      %p434 = scmp.eq.s32.totalorder %s32, 0
      %p435 = por %p433, %p434
      %p436 = scmp.ne.s32.totalorder %s428, %s430
      %p437 = scmp.eq.s32.totalorder %s37, 1
      %p438 = por %p436, %p437
      %p439 = scmp.ne.s32.totalorder %s430, %s431
      %p440 = scmp.eq.s32.totalorder %s37, 0
      %p441 = por %p439, %p440
      %p442 = scmp.ne.s32.totalorder %s430, %s431
      %p443 = scmp.eq.s32.totalorder %s38, 1
      %p444 = por %p442, %p443
      %p446 = scmp.ne.s32.totalorder %s431, %s445
      %p447 = scmp.eq.s32.totalorder %s38, 0
      %p448 = por %p446, %p447
      %s450 = sadd.s32 %s449, 1
      %p453 = scmp.eq.s32.totalorder %s32, 1
      %p454 = scmp.ne.s32.totalorder %s449, %s451
      %p455 = scmp.eq.s32.totalorder %s32, 0
      %p456 = por %p454, %p455
      %p457 = scmp.ne.s32.totalorder %s449, %s451
      %p458 = scmp.eq.s32.totalorder %s37, 1
      %p459 = por %p457, %p458
      %p460 = scmp.ne.s32.totalorder %s451, %s452
      %p461 = scmp.eq.s32.totalorder %s37, 0
      %p462 = por %p460, %p461
      %p463 = scmp.ne.s32.totalorder %s451, %s452
      %p464 = scmp.eq.s32.totalorder %s38, 1
      %p465 = por %p463, %p464
      %p467 = scmp.ne.s32.totalorder %s452, %s466
      %p468 = scmp.eq.s32.totalorder %s38, 0
      %p469 = por %p467, %p468
      %s470 = ssub.s32 %s32, %s39
      %p471 = scmp.eq.s32.totalorder %s470, 0
      %s473 = sadd.s32 %s472, 1
      %s474 = scalar_select %p471, %s472, %s473
      %p477 = pneg %p471
      %p478 = scmp.eq.s32.totalorder %s32, 1
      %p479 = por %p477, %p478
      %p480 = scmp.ne.s32.totalorder %s472, %s475
      %p481 = scmp.eq.s32.totalorder %s32, 0
      %p482 = por %p480, %p481
      %p483 = scmp.ne.s32.totalorder %s472, %s475
      %p484 = scmp.eq.s32.totalorder %s37, 1
      %p485 = por %p483, %p484
      %p486 = scmp.ne.s32.totalorder %s475, %s476
      %p487 = scmp.eq.s32.totalorder %s37, 0
      %p488 = por %p486, %p487
      %p489 = scmp.ne.s32.totalorder %s475, %s476
      %p490 = scmp.eq.s32.totalorder %s38, 1
      %p491 = por %p489, %p490
      %p493 = scmp.ne.s32.totalorder %s476, %s492
      %p494 = scmp.eq.s32.totalorder %s38, 0
      %p495 = por %p493, %p494
      %s496 = ssub.s32 %s32, %s39
      %p497 = scmp.eq.s32.totalorder %s496, 0
      %s499 = sadd.s32 %s498, 1
      %s500 = scalar_select %p497, %s498, %s499
      %p503 = pneg %p497
      %p504 = scmp.eq.s32.totalorder %s32, 1
      %p505 = por %p503, %p504
      %p506 = scmp.ne.s32.totalorder %s498, %s501
      %p507 = scmp.eq.s32.totalorder %s32, 0
      %p508 = por %p506, %p507
      %p509 = scmp.ne.s32.totalorder %s498, %s501
      %p510 = scmp.eq.s32.totalorder %s37, 1
      %p511 = por %p509, %p510
      %p512 = scmp.ne.s32.totalorder %s501, %s502
      %p513 = scmp.eq.s32.totalorder %s37, 0
      %p514 = por %p512, %p513
      %p515 = scmp.ne.s32.totalorder %s501, %s502
      %p516 = scmp.eq.s32.totalorder %s38, 1
      %p517 = por %p515, %p516
      %p519 = scmp.ne.s32.totalorder %s502, %s518
      %p520 = scmp.eq.s32.totalorder %s38, 0
      %p521 = por %p519, %p520
      %s522 = ssub.s32 %s32, %s39
      %p523 = scmp.eq.s32.totalorder %s522, 0
      %s525 = sadd.s32 %s524, 1
      %s526 = scalar_select %p523, %s524, %s525
      %p529 = pneg %p523
      %p530 = scmp.eq.s32.totalorder %s32, 1
      %p531 = por %p529, %p530
      %p532 = scmp.ne.s32.totalorder %s524, %s527
      %p533 = scmp.eq.s32.totalorder %s32, 0
      %p534 = por %p532, %p533
      %p535 = scmp.ne.s32.totalorder %s524, %s527
      %p536 = scmp.eq.s32.totalorder %s37, 1
      %p537 = por %p535, %p536
      %p538 = scmp.ne.s32.totalorder %s527, %s528
      %p539 = scmp.eq.s32.totalorder %s37, 0
      %p540 = por %p538, %p539
      %p541 = scmp.ne.s32.totalorder %s527, %s528
      %p542 = scmp.eq.s32.totalorder %s38, 1
      %p543 = por %p541, %p542
      %p545 = scmp.ne.s32.totalorder %s528, %s544
      %p546 = scmp.eq.s32.totalorder %s38, 0
      %p547 = por %p545, %p546
      %p548 = scmp.le.s32.totalorder 1, %s32
      %p549 = scmp.lt.s32.totalorder %s32, 3
      %p550 = pnand %p548, %p549
      %p551 = pneg %p550
      // Predicated region
      $region9: #{tpu_custom_call.1} parent=5 // pred_check
        _
      $region10: #{tpu_custom_call.1} parent=5 // pred_check_branch
        %553 = sbr.rel (%p550) target = $region12
      $region11: #{tpu_custom_call.1} parent=5 // pred_region
        %s554 = ssub.s32 %s32, 1
        // Predicated region
        $region13: #{tpu_custom_call.1} parent=11 // pred_check
          %p555 = pneg %p105
        $region14: #{tpu_custom_call.1} parent=11 // pred_check_branch
          %557 = sbr.rel (%p555) target = $region16
        $region15: #{tpu_custom_call.1} parent=11 // pred_region
          _
        $region16: #{tpu_custom_call.1} parent=11 // pred_fallthru
          _
        // Predicated region
        $region17: #{tpu_custom_call.1} parent=11 // pred_check
          %p558 = pneg %p126
        $region18: #{tpu_custom_call.1} parent=11 // pred_check_branch
          %560 = sbr.rel (%p558) target = $region20
        $region19: #{tpu_custom_call.1} parent=11 // pred_region
          _
        $region20: #{tpu_custom_call.1} parent=11 // pred_fallthru
          _
        // Predicated region
        $region21: #{tpu_custom_call.1} parent=11 // pred_check
          %p561 = pneg %p147
        $region22: #{tpu_custom_call.1} parent=11 // pred_check_branch
          %563 = sbr.rel (%p561) target = $region24
        $region23: #{tpu_custom_call.1} parent=11 // pred_region
          _
        $region24: #{tpu_custom_call.1} parent=11 // pred_fallthru
          _
        // Predicated region
        $region25: #{tpu_custom_call.1} parent=11 // pred_check
          %p564 = pneg %p168
        $region26: #{tpu_custom_call.1} parent=11 // pred_check_branch
          %566 = sbr.rel (%p564) target = $region28
        $region27: #{tpu_custom_call.1} parent=11 // pred_region
          _
        $region28: #{tpu_custom_call.1} parent=11 // pred_fallthru
          _
        // Predicated region
        $region29: #{tpu_custom_call.1} parent=11 // pred_check
          %p567 = pneg %p189
        $region30: #{tpu_custom_call.1} parent=11 // pred_check_branch
          %569 = sbr.rel (%p567) target = $region32
        $region31: #{tpu_custom_call.1} parent=11 // pred_region
          _
        $region32: #{tpu_custom_call.1} parent=11 // pred_fallthru
          _
        // Predicated region
        $region33: #{tpu_custom_call.1} parent=11 // pred_check
          %p570 = pneg %p210
        $region34: #{tpu_custom_call.1} parent=11 // pred_check_branch
          %572 = sbr.rel (%p570) target = $region36
        $region35: #{tpu_custom_call.1} parent=11 // pred_region
          _
        $region36: #{tpu_custom_call.1} parent=11 // pred_fallthru
          _
        // Predicated region
        $region37: #{tpu_custom_call.1} parent=11 // pred_check
          %p573 = pneg %p231
        $region38: #{tpu_custom_call.1} parent=11 // pred_check_branch
          %575 = sbr.rel (%p573) target = $region40
        $region39: #{tpu_custom_call.1} parent=11 // pred_region
          _
        $region40: #{tpu_custom_call.1} parent=11 // pred_fallthru
          _
        // Predicated region
        $region41: #{tpu_custom_call.1} parent=11 // pred_check
          %p576 = pneg %p252
        $region42: #{tpu_custom_call.1} parent=11 // pred_check_branch
          %578 = sbr.rel (%p576) target = $region44
        $region43: #{tpu_custom_call.1} parent=11 // pred_region
          _
        $region44: #{tpu_custom_call.1} parent=11 // pred_fallthru
          _
        // Predicated region
        $region45: #{tpu_custom_call.1} parent=11 // pred_check
          %p579 = pneg %p273
        $region46: #{tpu_custom_call.1} parent=11 // pred_check_branch
          %581 = sbr.rel (%p579) target = $region48
        $region47: #{tpu_custom_call.1} parent=11 // pred_region
          _
        $region48: #{tpu_custom_call.1} parent=11 // pred_fallthru
          _
        // Predicated region
        $region49: #{tpu_custom_call.1} parent=11 // pred_check
          %p582 = pneg %p294
        $region50: #{tpu_custom_call.1} parent=11 // pred_check_branch
          %584 = sbr.rel (%p582) target = $region52
        $region51: #{tpu_custom_call.1} parent=11 // pred_region
          _
        $region52: #{tpu_custom_call.1} parent=11 // pred_fallthru
          _
        // Predicated region
        $region53: #{tpu_custom_call.1} parent=11 // pred_check
          %p585 = pneg %p315
        $region54: #{tpu_custom_call.1} parent=11 // pred_check_branch
          %587 = sbr.rel (%p585) target = $region56
        $region55: #{tpu_custom_call.1} parent=11 // pred_region
          _
        $region56: #{tpu_custom_call.1} parent=11 // pred_fallthru
          _
        // Predicated region
        $region57: #{tpu_custom_call.1} parent=11 // pred_check
          %p588 = pneg %p336
        $region58: #{tpu_custom_call.1} parent=11 // pred_check_branch
          %590 = sbr.rel (%p588) target = $region60
        $region59: #{tpu_custom_call.1} parent=11 // pred_region
          _
        $region60: #{tpu_custom_call.1} parent=11 // pred_fallthru
          _
        // Predicated region
        $region61: #{tpu_custom_call.1} parent=11 // pred_check
          %p591 = pneg %p357
        $region62: #{tpu_custom_call.1} parent=11 // pred_check_branch
          %593 = sbr.rel (%p591) target = $region64
        $region63: #{tpu_custom_call.1} parent=11 // pred_region
          _
        $region64: #{tpu_custom_call.1} parent=11 // pred_fallthru
          _
        // Predicated region
        $region65: #{tpu_custom_call.1} parent=11 // pred_check
          %p594 = pneg %p378
        $region66: #{tpu_custom_call.1} parent=11 // pred_check_branch
          %596 = sbr.rel (%p594) target = $region68
        $region67: #{tpu_custom_call.1} parent=11 // pred_region
          _
        $region68: #{tpu_custom_call.1} parent=11 // pred_fallthru
          _
        // Predicated region
        $region69: #{tpu_custom_call.1} parent=11 // pred_check
          %p597 = pneg %p399
        $region70: #{tpu_custom_call.1} parent=11 // pred_check_branch
          %599 = sbr.rel (%p597) target = $region72
        $region71: #{tpu_custom_call.1} parent=11 // pred_region
          _
        $region72: #{tpu_custom_call.1} parent=11 // pred_fallthru
          _
        // Predicated region
        $region73: #{tpu_custom_call.1} parent=11 // pred_check
          %p600 = pneg %p420
        $region74: #{tpu_custom_call.1} parent=11 // pred_check_branch
          %602 = sbr.rel (%p600) target = $region76
        $region75: #{tpu_custom_call.1} parent=11 // pred_region
          _
        $region76: #{tpu_custom_call.1} parent=11 // pred_fallthru
          _
        // Predicated region
        $region77: #{tpu_custom_call.1} parent=11 // pred_check
          %p603 = pneg %p441
        $region78: #{tpu_custom_call.1} parent=11 // pred_check_branch
          %605 = sbr.rel (%p603) target = $region80
        $region79: #{tpu_custom_call.1} parent=11 // pred_region
          _
        $region80: #{tpu_custom_call.1} parent=11 // pred_fallthru
          _
        // Predicated region
        $region81: #{tpu_custom_call.1} parent=11 // pred_check
          %p606 = pneg %p462
        $region82: #{tpu_custom_call.1} parent=11 // pred_check_branch
          %608 = sbr.rel (%p606) target = $region84
        $region83: #{tpu_custom_call.1} parent=11 // pred_region
          _
        $region84: #{tpu_custom_call.1} parent=11 // pred_fallthru
          _
      $region12: #{tpu_custom_call.1} parent=5 // pred_fallthru
        _
      %p609 = scmp.lt.s32.totalorder %s32, 2
      // Predicated region
      $region85: #{tpu_custom_call.1} parent=5 // pred_check
        %p610 = pneg %p609
      $region86: #{tpu_custom_call.1} parent=5 // pred_check_branch
        %612 = sbr.rel (%p610) target = $region88
      $region87: #{tpu_custom_call.1} parent=5 // pred_region
        // Predicated region
        $region89: #{tpu_custom_call.1} parent=87 // pred_check
          %p613 = pneg %p52
        $region90: #{tpu_custom_call.1} parent=87 // pred_check_branch
          %615 = sbr.rel (%p613) target = $region92
        $region91: #{tpu_custom_call.1} parent=87 // pred_region
          %p616 = scmp.lt.s32.totalorder %s32, 1
          %s617 = scalar_select %p616, %s32, 1
          %s618 = smul.addr %s617, 16
          %s619 = smul.addr %s618, 8
          %s620 = scalar_lea.vmem %s0, %s619
        $region92: #{tpu_custom_call.1} parent=87 // pred_fallthru
          _
        // Predicated region
        $region93: #{tpu_custom_call.1} parent=87 // pred_check
          %p621 = pneg %p78
        $region94: #{tpu_custom_call.1} parent=87 // pred_check_branch
          %623 = sbr.rel (%p621) target = $region96
        $region95: #{tpu_custom_call.1} parent=87 // pred_region
          %p624 = scmp.lt.s32.totalorder %s32, 1
          %s625 = scalar_select %p624, %s32, 1
          %s626 = smul.addr %s625, 4
          %s627 = scalar_lea.vmem %s1, %s626
        $region96: #{tpu_custom_call.1} parent=87 // pred_fallthru
          _
      $region88: #{tpu_custom_call.1} parent=5 // pred_fallthru
        _
      %p628 = scmp.le.s32.totalorder 1, %s32
      %p629 = scmp.lt.s32.totalorder %s32, 3
      %p630 = pnand %p628, %p629
      %p631 = pneg %p630
      // Predicated region
      $region97: #{tpu_custom_call.1} parent=5 // pred_check
        _
      $region98: #{tpu_custom_call.1} parent=5 // pred_check_branch
        %633 = sbr.rel (%p630) target = $region100
      $region99: #{tpu_custom_call.1} parent=5 // pred_region
        %s634 = ssub.s32 %s32, 1
        %p635 = scmp.lt.s32.totalorder %s37, 1
        %s636 = scalar_select %p635, %s37, 1
        %s637 = smul.addr %s636, 16
        %s638 = smul.addr %s637, 8
        %s639 = scalar_lea.vmem %s0, %s638
        %p640 = pneg %p58
        %p641 = pneg %p55
        %p642 = scmp.lt.s32.totalorder %s37, 1
        %s643 = scalar_select %p642, %s37, 1
        %s644 = smul.addr %s643, 4
        %s645 = scalar_lea.vmem %s1, %s644
        %p646 = pneg %p84
        %p647 = pneg %p81
        %p648 = pneg %p105
        %p649 = pneg %p102
        %p650 = pneg %p126
        %p651 = pneg %p123
        %p652 = pneg %p147
        %p653 = pneg %p144
        %p654 = pneg %p168
        %p655 = pneg %p165
        %p656 = pneg %p189
        %p657 = pneg %p186
        %p658 = pneg %p210
        %p659 = pneg %p207
        %p660 = pneg %p231
        %p661 = pneg %p228
        %p662 = pneg %p252
        %p663 = pneg %p249
        %p664 = pneg %p273
        %p665 = pneg %p270
        %p666 = pneg %p294
        %p667 = pneg %p291
        %p668 = pneg %p315
        %p669 = pneg %p312
        %p670 = pneg %p336
        %p671 = pneg %p333
        %p672 = pneg %p357
        %p673 = pneg %p354
        %p674 = pneg %p378
        %p675 = pneg %p375
        %p676 = pneg %p399
        %p677 = pneg %p396
        %p678 = pneg %p420
        %p679 = pneg %p417
        %p680 = pneg %p441
        %p681 = pneg %p438
        %p682 = pneg %p462
        %p683 = pneg %p459
        %p684 = pneg %p488
        %p685 = pneg %p485
        %s686 = sand.u32 %s475, 1
        %s687 = scalar_lea.sflag [#allocation3], %s686
        %s688 = sand.u32 %s475, 1
        %s689 = scalar_lea.vmem [#allocation2], %s688
        %p690 = pneg %p514
        %p691 = pneg %p511
        %p692 = scmp.lt.s32.totalorder %s37, 1
        %s693 = scalar_select %p692, %s37, 1
        %s694 = smul.addr %s693, 8
        %s695 = scalar_lea.vmem %s21, %s694
        %p696 = pneg %p540
        %p697 = pneg %p537
        %p698 = scmp.lt.s32.totalorder %s37, 1
        %s699 = scalar_select %p698, %s37, 1
        %s700 = smul.addr %s699, 4
        %s701 = smul.addr %s700, 8
        %s702 = scalar_lea.vmem %s22, %s701
        %p703 = scmp.lt.s32.totalorder %s37, 1
        %s704 = scalar_select %p703, %s37, 1
        %s705 = smul.addr %s704, 16
        %s706 = smul.addr %s705, 8
        %s707 = scalar_lea.vmem %s0, %s706
        %p708 = scmp.lt.s32.totalorder %s37, 1
        %s709 = scalar_select %p708, %s37, 1
        %s710 = smul.addr %s709, 4
        %s711 = scalar_lea.vmem %s1, %s710
        %p712 = scmp.lt.s32.totalorder %s37, 1
        %s713 = scalar_select %p712, %s37, 1
        %s714 = smul.addr %s713, 8
        %s715 = scalar_lea.vmem %s21, %s714
        %p716 = scmp.lt.s32.totalorder %s37, 1
        %s717 = scalar_select %p716, %s37, 1
        %s718 = smul.addr %s717, 4
        %s719 = smul.addr %s718, 8
        %s720 = scalar_lea.vmem %s22, %s719
        %v721 = vld [vmem:[%s711] sm:$0xf]
        %v722 = vld [vmem:[%s2] sm:$0xff]
        %v723 = vld [vmem:[%s2 + $0x8] sm:$0xff]
        %v724 = vld [vmem:[%s2 + $0x10] sm:$0xff]
        %v725 = vld [vmem:[%s2 + $0x18] sm:$0xff]
        %v726 = vld [vmem:[%s2 + $0x20] sm:$0xff]
        %v727 = vld [vmem:[%s2 + $0x28] sm:$0xff]
        %v728 = vld [vmem:[%s2 + $0x30] sm:$0xff]
        %v729 = vld [vmem:[%s2 + $0x38] sm:$0xff]
        %v730 = vld [vmem:[%s2 + $0x40] sm:$0xff]
        %v731 = vld [vmem:[%s2 + $0x48] sm:$0xff]
        %v732 = vld [vmem:[%s2 + $0x50] sm:$0xff]
        %v733 = vld [vmem:[%s2 + $0x58] sm:$0xff]
        %v734 = vld [vmem:[%s2 + $0x60] sm:$0xff]
        %v735 = vld [vmem:[%s2 + $0x68] sm:$0xff]
        %v736 = vld [vmem:[%s2 + $0x70] sm:$0xff]
        %v737 = vld [vmem:[%s2 + $0x78] sm:$0xff]
        %v738 = vld [vmem:[%s2 + $0x80] sm:$0xff]
        %v739 = vld [vmem:[%s2 + $0x88] sm:$0xff]
        %v740 = vld [vmem:[%s2 + $0x90] sm:$0xff]
        %v741 = vld [vmem:[%s2 + $0x98] sm:$0xff]
        %v742 = vld [vmem:[%s2 + $0xa0] sm:$0xff]
        %v743 = vld [vmem:[%s2 + $0xa8] sm:$0xff]
        %v744 = vld [vmem:[%s2 + $0xb0] sm:$0xff]
        %v745 = vld [vmem:[%s2 + $0xb8] sm:$0xff]
        %v746 = vld [vmem:[%s2 + $0xc0] sm:$0xff]
        %v747 = vld [vmem:[%s2 + $0xc8] sm:$0xff]
        %v748 = vld [vmem:[%s2 + $0xd0] sm:$0xff]
        %v749 = vld [vmem:[%s2 + $0xd8] sm:$0xff]
        %v750 = vld [vmem:[%s2 + $0xe0] sm:$0xff]
        %v751 = vld [vmem:[%s2 + $0xe8] sm:$0xff]
        %v752 = vld [vmem:[%s2 + $0xf0] sm:$0xff]
        %v753 = vld [vmem:[%s2 + $0xf8] sm:$0xff]
        %v754 = vld [vmem:[%s2 + $0x100] sm:$0xff]
        %v755 = vld [vmem:[%s2 + $0x108] sm:$0xff]
        %v756 = vld [vmem:[%s2 + $0x110] sm:$0xff]
        %v757 = vld [vmem:[%s2 + $0x118] sm:$0xff]
        %v758 = vld [vmem:[%s2 + $0x120] sm:$0xff]
        %v759 = vld [vmem:[%s2 + $0x128] sm:$0xff]
        %v760 = vld [vmem:[%s2 + $0x130] sm:$0xff]
        %v761 = vld [vmem:[%s2 + $0x138] sm:$0xff]
        %v762 = vld [vmem:[%s2 + $0x140] sm:$0xff]
        %v763 = vld [vmem:[%s2 + $0x148] sm:$0xff]
        %v764 = vld [vmem:[%s2 + $0x150] sm:$0xff]
        %v765 = vld [vmem:[%s2 + $0x158] sm:$0xff]
        %v766 = vld [vmem:[%s2 + $0x160] sm:$0xff]
        %v767 = vld [vmem:[%s2 + $0x168] sm:$0xff]
        %v768 = vld [vmem:[%s2 + $0x170] sm:$0xff]
        %v769 = vld [vmem:[%s2 + $0x178] sm:$0xff]
        %v770 = vld [vmem:[%s2 + $0x180] sm:$0xff]
        %v771 = vld [vmem:[%s2 + $0x188] sm:$0xff]
        %v772 = vld [vmem:[%s2 + $0x190] sm:$0xff]
        %v773 = vld [vmem:[%s2 + $0x198] sm:$0xff]
        %v774 = vld [vmem:[%s2 + $0x1a0] sm:$0xff]
        %v775 = vld [vmem:[%s2 + $0x1a8] sm:$0xff]
        %v776 = vld [vmem:[%s2 + $0x1b0] sm:$0xff]
        %v777 = vld [vmem:[%s2 + $0x1b8] sm:$0xff]
        %v778 = vld [vmem:[%s2 + $0x1c0] sm:$0xff]
        %v779 = vld [vmem:[%s2 + $0x1c8] sm:$0xff]
        %v780 = vld [vmem:[%s2 + $0x1d0] sm:$0xff]
        %v781 = vld [vmem:[%s2 + $0x1d8] sm:$0xff]
        %v782 = vld [vmem:[%s2 + $0x1e0] sm:$0xff]
        %v783 = vld [vmem:[%s2 + $0x1e8] sm:$0xff]
        %v784 = vld [vmem:[%s2 + $0x1f0] sm:$0xff]
        %v785 = vld [vmem:[%s2 + $0x1f8] sm:$0xff]
        %v786 = vld [vmem:[%s2 + $0x200] sm:$0xff]
        %v787 = vld [vmem:[%s2 + $0x208] sm:$0xff]
        %v788 = vld [vmem:[%s2 + $0x210] sm:$0xff]
        %v789 = vld [vmem:[%s2 + $0x218] sm:$0xff]
        %v790 = vld [vmem:[%s2 + $0x220] sm:$0xff]
        %v791 = vld [vmem:[%s2 + $0x228] sm:$0xff]
        %v792 = vld [vmem:[%s2 + $0x230] sm:$0xff]
        %v793 = vld [vmem:[%s2 + $0x238] sm:$0xff]
        %v794 = vld [vmem:[%s2 + $0x240] sm:$0xff]
        %v795 = vld [vmem:[%s2 + $0x248] sm:$0xff]
        %v796 = vld [vmem:[%s2 + $0x250] sm:$0xff]
        %v797 = vld [vmem:[%s2 + $0x258] sm:$0xff]
        %v798 = vld [vmem:[%s2 + $0x260] sm:$0xff]
        %v799 = vld [vmem:[%s2 + $0x268] sm:$0xff]
        %v800 = vld [vmem:[%s2 + $0x270] sm:$0xff]
        %v801 = vld [vmem:[%s2 + $0x278] sm:$0xff]
        %v802 = vld [vmem:[%s2 + $0x280] sm:$0xff]
        %v803 = vld [vmem:[%s2 + $0x288] sm:$0xff]
        %v804 = vld [vmem:[%s2 + $0x290] sm:$0xff]
        %v805 = vld [vmem:[%s2 + $0x298] sm:$0xff]
        %v806 = vld [vmem:[%s2 + $0x2a0] sm:$0xff]
        %v807 = vld [vmem:[%s2 + $0x2a8] sm:$0xff]
        %v808 = vld [vmem:[%s2 + $0x2b0] sm:$0xff]
        %v809 = vld [vmem:[%s2 + $0x2b8] sm:$0xff]
        %v810 = vld [vmem:[%s2 + $0x2c0] sm:$0xff]
        %v811 = vld [vmem:[%s2 + $0x2c8] sm:$0xff]
        %v812 = vld [vmem:[%s2 + $0x2d0] sm:$0xff]
        %v813 = vld [vmem:[%s2 + $0x2d8] sm:$0xff]
        %v814 = vld [vmem:[%s2 + $0x2e0] sm:$0xff]
        %v815 = vld [vmem:[%s2 + $0x2e8] sm:$0xff]
        %v816 = vld [vmem:[%s2 + $0x2f0] sm:$0xff]
        %v817 = vld [vmem:[%s2 + $0x2f8] sm:$0xff]
        %v818 = vld [vmem:[%s2 + $0x300] sm:$0xff]
        %v819 = vld [vmem:[%s2 + $0x308] sm:$0xff]
        %v820 = vld [vmem:[%s2 + $0x310] sm:$0xff]
        %v821 = vld [vmem:[%s2 + $0x318] sm:$0xff]
        %v822 = vld [vmem:[%s2 + $0x320] sm:$0xff]
        %v823 = vld [vmem:[%s2 + $0x328] sm:$0xff]
        %v824 = vld [vmem:[%s2 + $0x330] sm:$0xff]
        %v825 = vld [vmem:[%s2 + $0x338] sm:$0xff]
        %v826 = vld [vmem:[%s2 + $0x340] sm:$0xff]
        %v827 = vld [vmem:[%s2 + $0x348] sm:$0xff]
        %v828 = vld [vmem:[%s2 + $0x350] sm:$0xff]
        %v829 = vld [vmem:[%s2 + $0x358] sm:$0xff]
        %v830 = vld [vmem:[%s2 + $0x360] sm:$0xff]
        %v831 = vld [vmem:[%s2 + $0x368] sm:$0xff]
        %v832 = vld [vmem:[%s2 + $0x370] sm:$0xff]
        %v833 = vld [vmem:[%s2 + $0x378] sm:$0xff]
        %v834 = vld [vmem:[%s2 + $0x380] sm:$0xff]
        %v835 = vld [vmem:[%s2 + $0x388] sm:$0xff]
        %v836 = vld [vmem:[%s2 + $0x390] sm:$0xff]
        %v837 = vld [vmem:[%s2 + $0x398] sm:$0xff]
        %v838 = vld [vmem:[%s2 + $0x3a0] sm:$0xff]
        %v839 = vld [vmem:[%s2 + $0x3a8] sm:$0xff]
        %v840 = vld [vmem:[%s2 + $0x3b0] sm:$0xff]
        %v841 = vld [vmem:[%s2 + $0x3b8] sm:$0xff]
        %v842 = vld [vmem:[%s2 + $0x3c0] sm:$0xff]
        %v843 = vld [vmem:[%s2 + $0x3c8] sm:$0xff]
        %v844 = vld [vmem:[%s2 + $0x3d0] sm:$0xff]
        %v845 = vld [vmem:[%s2 + $0x3d8] sm:$0xff]
        %v846 = vld [vmem:[%s2 + $0x3e0] sm:$0xff]
        %v847 = vld [vmem:[%s2 + $0x3e8] sm:$0xff]
        %v848 = vld [vmem:[%s2 + $0x3f0] sm:$0xff]
        %v849 = vld [vmem:[%s2 + $0x3f8] sm:$0xff]
        %v850 = vld [vmem:[%s2 + $0x400] sm:$0xff]
        %v851 = vld [vmem:[%s2 + $0x408] sm:$0xff]
        %v852 = vld [vmem:[%s2 + $0x410] sm:$0xff]
        %v853 = vld [vmem:[%s2 + $0x418] sm:$0xff]
        %v854 = vld [vmem:[%s2 + $0x420] sm:$0xff]
        %v855 = vld [vmem:[%s2 + $0x428] sm:$0xff]
        %v856 = vld [vmem:[%s2 + $0x430] sm:$0xff]
        %v857 = vld [vmem:[%s2 + $0x438] sm:$0xff]
        %v858 = vld [vmem:[%s2 + $0x440] sm:$0xff]
        %v859 = vld [vmem:[%s2 + $0x448] sm:$0xff]
        %v860 = vld [vmem:[%s2 + $0x450] sm:$0xff]
        %v861 = vld [vmem:[%s2 + $0x458] sm:$0xff]
        %v862 = vld [vmem:[%s2 + $0x460] sm:$0xff]
        %v863 = vld [vmem:[%s2 + $0x468] sm:$0xff]
        %v864 = vld [vmem:[%s2 + $0x470] sm:$0xff]
        %v865 = vld [vmem:[%s2 + $0x478] sm:$0xff]
        %v866 = vld [vmem:[%s2 + $0x480] sm:$0xff]
        %v867 = vld [vmem:[%s2 + $0x488] sm:$0xff]
        %v868 = vld [vmem:[%s2 + $0x490] sm:$0xff]
        %v869 = vld [vmem:[%s2 + $0x498] sm:$0xff]
        %v870 = vld [vmem:[%s2 + $0x4a0] sm:$0xff]
        %v871 = vld [vmem:[%s2 + $0x4a8] sm:$0xff]
        %v872 = vld [vmem:[%s2 + $0x4b0] sm:$0xff]
        %v873 = vld [vmem:[%s2 + $0x4b8] sm:$0xff]
        %v874 = vld [vmem:[%s2 + $0x4c0] sm:$0xff]
        %v875 = vld [vmem:[%s2 + $0x4c8] sm:$0xff]
        %v876 = vld [vmem:[%s2 + $0x4d0] sm:$0xff]
        %v877 = vld [vmem:[%s2 + $0x4d8] sm:$0xff]
        %v878 = vld [vmem:[%s2 + $0x4e0] sm:$0xff]
        %v879 = vld [vmem:[%s2 + $0x4e8] sm:$0xff]
        %v880 = vld [vmem:[%s2 + $0x4f0] sm:$0xff]
        %v881 = vld [vmem:[%s2 + $0x4f8] sm:$0xff]
        %v882 = vld [vmem:[%s2 + $0x500] sm:$0xff]
        %v883 = vld [vmem:[%s2 + $0x508] sm:$0xff]
        %v884 = vld [vmem:[%s2 + $0x510] sm:$0xff]
        %v885 = vld [vmem:[%s2 + $0x518] sm:$0xff]
        %v886 = vld [vmem:[%s2 + $0x520] sm:$0xff]
        %v887 = vld [vmem:[%s2 + $0x528] sm:$0xff]
        %v888 = vld [vmem:[%s2 + $0x530] sm:$0xff]
        %v889 = vld [vmem:[%s2 + $0x538] sm:$0xff]
        %v890 = vld [vmem:[%s2 + $0x540] sm:$0xff]
        %v891 = vld [vmem:[%s2 + $0x548] sm:$0xff]
        %v892 = vld [vmem:[%s2 + $0x550] sm:$0xff]
        %v893 = vld [vmem:[%s2 + $0x558] sm:$0xff]
        %v894 = vld [vmem:[%s2 + $0x560] sm:$0xff]
        %v895 = vld [vmem:[%s2 + $0x568] sm:$0xff]
        %v896 = vld [vmem:[%s2 + $0x570] sm:$0xff]
        %v897 = vld [vmem:[%s2 + $0x578] sm:$0xff]
        %v898 = vld [vmem:[%s2 + $0x580] sm:$0xff]
        %v899 = vld [vmem:[%s2 + $0x588] sm:$0xff]
        %v900 = vld [vmem:[%s2 + $0x590] sm:$0xff]
        %v901 = vld [vmem:[%s2 + $0x598] sm:$0xff]
        %v902 = vld [vmem:[%s2 + $0x5a0] sm:$0xff]
        %v903 = vld [vmem:[%s2 + $0x5a8] sm:$0xff]
        %v904 = vld [vmem:[%s2 + $0x5b0] sm:$0xff]
        %v905 = vld [vmem:[%s2 + $0x5b8] sm:$0xff]
        %v906 = vld [vmem:[%s2 + $0x5c0] sm:$0xff]
        %v907 = vld [vmem:[%s2 + $0x5c8] sm:$0xff]
        %v908 = vld [vmem:[%s2 + $0x5d0] sm:$0xff]
        %v909 = vld [vmem:[%s2 + $0x5d8] sm:$0xff]
        %v910 = vld [vmem:[%s2 + $0x5e0] sm:$0xff]
        %v911 = vld [vmem:[%s2 + $0x5e8] sm:$0xff]
        %v912 = vld [vmem:[%s2 + $0x5f0] sm:$0xff]
        %v913 = vld [vmem:[%s2 + $0x5f8] sm:$0xff]
        %v914 = vld [vmem:[%s2 + $0x600] sm:$0xff]
        %v915 = vld [vmem:[%s2 + $0x608] sm:$0xff]
        %v916 = vld [vmem:[%s2 + $0x610] sm:$0xff]
        %v917 = vld [vmem:[%s2 + $0x618] sm:$0xff]
        %v918 = vld [vmem:[%s2 + $0x620] sm:$0xff]
        %v919 = vld [vmem:[%s2 + $0x628] sm:$0xff]
        %v920 = vld [vmem:[%s2 + $0x630] sm:$0xff]
        %v921 = vld [vmem:[%s2 + $0x638] sm:$0xff]
        %v922 = vld [vmem:[%s2 + $0x640] sm:$0xff]
        %v923 = vld [vmem:[%s2 + $0x648] sm:$0xff]
        %v924 = vld [vmem:[%s2 + $0x650] sm:$0xff]
        %v925 = vld [vmem:[%s2 + $0x658] sm:$0xff]
        %v926 = vld [vmem:[%s2 + $0x660] sm:$0xff]
        %v927 = vld [vmem:[%s2 + $0x668] sm:$0xff]
        %v928 = vld [vmem:[%s2 + $0x670] sm:$0xff]
        %v929 = vld [vmem:[%s2 + $0x678] sm:$0xff]
        %v930 = vld [vmem:[%s2 + $0x680] sm:$0xff]
        %v931 = vld [vmem:[%s2 + $0x688] sm:$0xff]
        %v932 = vld [vmem:[%s2 + $0x690] sm:$0xff]
        %v933 = vld [vmem:[%s2 + $0x698] sm:$0xff]
        %v934 = vld [vmem:[%s2 + $0x6a0] sm:$0xff]
        %v935 = vld [vmem:[%s2 + $0x6a8] sm:$0xff]
        %v936 = vld [vmem:[%s2 + $0x6b0] sm:$0xff]
        %v937 = vld [vmem:[%s2 + $0x6b8] sm:$0xff]
        %v938 = vld [vmem:[%s2 + $0x6c0] sm:$0xff]
        %v939 = vld [vmem:[%s2 + $0x6c8] sm:$0xff]
        %v940 = vld [vmem:[%s2 + $0x6d0] sm:$0xff]
        %v941 = vld [vmem:[%s2 + $0x6d8] sm:$0xff]
        %v942 = vld [vmem:[%s2 + $0x6e0] sm:$0xff]
        %v943 = vld [vmem:[%s2 + $0x6e8] sm:$0xff]
        %v944 = vld [vmem:[%s2 + $0x6f0] sm:$0xff]
        %v945 = vld [vmem:[%s2 + $0x6f8] sm:$0xff]
        %v946 = vld [vmem:[%s2 + $0x700] sm:$0xff]
        %v947 = vld [vmem:[%s2 + $0x708] sm:$0xff]
        %v948 = vld [vmem:[%s2 + $0x710] sm:$0xff]
        %v949 = vld [vmem:[%s2 + $0x718] sm:$0xff]
        %v950 = vld [vmem:[%s2 + $0x720] sm:$0xff]
        %v951 = vld [vmem:[%s2 + $0x728] sm:$0xff]
        %v952 = vld [vmem:[%s2 + $0x730] sm:$0xff]
        %v953 = vld [vmem:[%s2 + $0x738] sm:$0xff]
        %v954 = vld [vmem:[%s2 + $0x740] sm:$0xff]
        %v955 = vld [vmem:[%s2 + $0x748] sm:$0xff]
        %v956 = vld [vmem:[%s2 + $0x750] sm:$0xff]
        %v957 = vld [vmem:[%s2 + $0x758] sm:$0xff]
        %v958 = vld [vmem:[%s2 + $0x760] sm:$0xff]
        %v959 = vld [vmem:[%s2 + $0x768] sm:$0xff]
        %v960 = vld [vmem:[%s2 + $0x770] sm:$0xff]
        %v961 = vld [vmem:[%s2 + $0x778] sm:$0xff]
        %v962 = vld [vmem:[%s2 + $0x780] sm:$0xff]
        %v963 = vld [vmem:[%s2 + $0x788] sm:$0xff]
        %v964 = vld [vmem:[%s2 + $0x790] sm:$0xff]
        %v965 = vld [vmem:[%s2 + $0x798] sm:$0xff]
        %v966 = vld [vmem:[%s2 + $0x7a0] sm:$0xff]
        %v967 = vld [vmem:[%s2 + $0x7a8] sm:$0xff]
        %v968 = vld [vmem:[%s2 + $0x7b0] sm:$0xff]
        %v969 = vld [vmem:[%s2 + $0x7b8] sm:$0xff]
        %v970 = vld [vmem:[%s2 + $0x7c0] sm:$0xff]
        %v971 = vld [vmem:[%s2 + $0x7c8] sm:$0xff]
        %v972 = vld [vmem:[%s2 + $0x7d0] sm:$0xff]
        %v973 = vld [vmem:[%s2 + $0x7d8] sm:$0xff]
        %v974 = vld [vmem:[%s2 + $0x7e0] sm:$0xff]
        %v975 = vld [vmem:[%s2 + $0x7e8] sm:$0xff]
        %v976 = vld [vmem:[%s2 + $0x7f0] sm:$0xff]
        %v977 = vld [vmem:[%s2 + $0x7f8] sm:$0xff]
        %v978 = vld [vmem:[%s3] sm:$0xf]
        %v980 = vlaneseq
        %v981 = vshrl.u32 %v980, 7
        %v982 = vsub.s32 0, %v981
        %v983 = vrot.slane %v721, %v982
        %v984 = vlaneseq
        %v985 = vshrl.u32 %v984, 7
        %v986 = vsub.s32 1, %v985
        %v987 = vrot.slane %v721, %v986
        %v988 = vlaneseq
        %v989 = vshrl.u32 %v988, 7
        %v990 = vsub.s32 2, %v989
        %v991 = vrot.slane %v721, %v990
        %v992 = vlaneseq
        %v993 = vshrl.u32 %v992, 7
        %v994 = vsub.s32 3, %v993
        %v995 = vrot.slane %v721, %v994
        %v1001 = vlaneseq
        %v1002 = vshrl.u32 %v1001, 7
        %v1003 = vsub.s32 0, %v1002
        %v1004 = vrot.slane %v978, %v1003
        %v1005 = vlaneseq
        %v1006 = vshrl.u32 %v1005, 7
        %v1007 = vsub.s32 1, %v1006
        %v1008 = vrot.slane %v978, %v1007
        %v1009 = vlaneseq
        %v1010 = vshrl.u32 %v1009, 7
        %v1011 = vsub.s32 2, %v1010
        %v1012 = vrot.slane %v978, %v1011
        %v1013 = vlaneseq
        %v1014 = vshrl.u32 %v1013, 7
        %v1015 = vsub.s32 3, %v1014
        %v1016 = vrot.slane %v978, %v1015
        %1021 = vmatprep.subr.mxu0 %v783
        %1022 = vmatpush1.msra.mxu0 %v782
        %1023 = vmatprep.subr.mxu0 %v779
        %1024 = vmatpush1.msra.mxu0 %v778
        %1025 = vmatprep.subr.mxu0 %v775
        %1026 = vmatpush1.msra.mxu0 %v774
        %1027 = vmatprep.subr.mxu0 %v771
        %1028 = vmatpush1.msra.mxu0 %v770
        %1029 = vmatprep.subr.mxu0 %v767
        %1030 = vmatpush1.msra.mxu0 %v766
        %1031 = vmatprep.subr.mxu0 %v763
        %1032 = vmatpush1.msra.mxu0 %v762
        %1033 = vmatprep.subr.mxu0 %v759
        %1034 = vmatpush1.msra.mxu0 %v758
        %1035 = vmatprep.subr.mxu0 %v755
        %1036 = vmatpush1.msra.mxu0 %v754
        %1037 = vmatprep.subr.mxu0 %v751
        %1038 = vmatpush1.msra.mxu0 %v750
        %1039 = vmatprep.subr.mxu0 %v747
        %1040 = vmatpush1.msra.mxu0 %v746
        %1041 = vmatprep.subr.mxu0 %v743
        %1042 = vmatpush1.msra.mxu0 %v742
        %1043 = vmatprep.subr.mxu0 %v739
        %1044 = vmatpush1.msra.mxu0 %v738
        %1045 = vmatprep.subr.mxu0 %v735
        %1046 = vmatpush1.msra.mxu0 %v734
        %1047 = vmatprep.subr.mxu0 %v731
        %1048 = vmatpush1.msra.mxu0 %v730
        %1049 = vmatprep.subr.mxu0 %v727
        %1050 = vmatpush1.msra.mxu0 %v726
        %1051 = vmatprep.subr.mxu0 %v723
        %1052 = vmatpush1.msra.mxu0 %v722
        %1053 = vmatprep.subr.mxu0 %v847
        %1054 = vmatpush2.msra.mxu0 %v846
        %1055 = vmatprep.subr.mxu0 %v843
        %1056 = vmatpush2.msra.mxu0 %v842
        %1057 = vmatprep.subr.mxu0 %v839
        %1058 = vmatpush2.msra.mxu0 %v838
        %1059 = vmatprep.subr.mxu0 %v835
        %1060 = vmatpush2.msra.mxu0 %v834
        %1061 = vmatprep.subr.mxu0 %v831
        %1062 = vmatpush2.msra.mxu0 %v830
        %1063 = vmatprep.subr.mxu0 %v827
        %1064 = vmatpush2.msra.mxu0 %v826
        %1065 = vmatprep.subr.mxu0 %v823
        %1066 = vmatpush2.msra.mxu0 %v822
        %1067 = vmatprep.subr.mxu0 %v819
        %1068 = vmatpush2.msra.mxu0 %v818
        %1069 = vmatprep.subr.mxu0 %v815
        %1070 = vmatpush2.msra.mxu0 %v814
        %1071 = vmatprep.subr.mxu0 %v811
        %1072 = vmatpush2.msra.mxu0 %v810
        %1073 = vmatprep.subr.mxu0 %v807
        %1074 = vmatpush2.msra.mxu0 %v806
        %1075 = vmatprep.subr.mxu0 %v803
        %1076 = vmatpush2.msra.mxu0 %v802
        %1077 = vmatprep.subr.mxu0 %v799
        %1078 = vmatpush2.msra.mxu0 %v798
        %1079 = vmatprep.subr.mxu0 %v795
        %1080 = vmatpush2.msra.mxu0 %v794
        %1081 = vmatprep.subr.mxu0 %v791
        %1082 = vmatpush2.msra.mxu0 %v790
        %1083 = vmatprep.subr.mxu0 %v787
        %1084 = vmatpush2.msra.mxu0 %v786
        %1085 = vmatprep.mubr.f32.mxu0 %v987
        %1086 = vmatmul.mubr.f32.gmra.mxu0 %v983
        %v1087 = vpop.f32.mrf.mxu0
        %v1088 = vadd.f32 %v1004, %v1087
        %v1089 = vpop.f32.mrf.mxu0
        %v1090 = vadd.f32 %v1008, %v1089
        %1091 = vdwg.mxu0
        %1092 = vmatprep.subr.mxu0 %v911
        %1093 = vmatpush1.msra.mxu0 %v910
        %1094 = vmatprep.subr.mxu0 %v907
        %1095 = vmatpush1.msra.mxu0 %v906
        %1096 = vmatprep.subr.mxu0 %v903
        %1097 = vmatpush1.msra.mxu0 %v902
        %1098 = vmatprep.subr.mxu0 %v899
        %1099 = vmatpush1.msra.mxu0 %v898
        %1100 = vmatprep.subr.mxu0 %v895
        %1101 = vmatpush1.msra.mxu0 %v894
        %1102 = vmatprep.subr.mxu0 %v891
        %1103 = vmatpush1.msra.mxu0 %v890
        %1104 = vmatprep.subr.mxu0 %v887
        %1105 = vmatpush1.msra.mxu0 %v886
        %1106 = vmatprep.subr.mxu0 %v883
        %1107 = vmatpush1.msra.mxu0 %v882
        %1108 = vmatprep.subr.mxu0 %v879
        %1109 = vmatpush1.msra.mxu0 %v878
        %1110 = vmatprep.subr.mxu0 %v875
        %1111 = vmatpush1.msra.mxu0 %v874
        %1112 = vmatprep.subr.mxu0 %v871
        %1113 = vmatpush1.msra.mxu0 %v870
        %1114 = vmatprep.subr.mxu0 %v867
        %1115 = vmatpush1.msra.mxu0 %v866
        %1116 = vmatprep.subr.mxu0 %v863
        %1117 = vmatpush1.msra.mxu0 %v862
        %1118 = vmatprep.subr.mxu0 %v859
        %1119 = vmatpush1.msra.mxu0 %v858
        %1120 = vmatprep.subr.mxu0 %v855
        %1121 = vmatpush1.msra.mxu0 %v854
        %1122 = vmatprep.subr.mxu0 %v851
        %1123 = vmatpush1.msra.mxu0 %v850
        %1124 = vmatprep.subr.mxu0 %v975
        %1125 = vmatpush2.msra.mxu0 %v974
        %1126 = vmatprep.subr.mxu0 %v971
        %1127 = vmatpush2.msra.mxu0 %v970
        %1128 = vmatprep.subr.mxu0 %v967
        %1129 = vmatpush2.msra.mxu0 %v966
        %1130 = vmatprep.subr.mxu0 %v963
        %1131 = vmatpush2.msra.mxu0 %v962
        %1132 = vmatprep.subr.mxu0 %v959
        %1133 = vmatpush2.msra.mxu0 %v958
        %1134 = vmatprep.subr.mxu0 %v955
        %1135 = vmatpush2.msra.mxu0 %v954
        %1136 = vmatprep.subr.mxu0 %v951
        %1137 = vmatpush2.msra.mxu0 %v950
        %1138 = vmatprep.subr.mxu0 %v947
        %1139 = vmatpush2.msra.mxu0 %v946
        %1140 = vmatprep.subr.mxu0 %v943
        %1141 = vmatpush2.msra.mxu0 %v942
        %1142 = vmatprep.subr.mxu0 %v939
        %1143 = vmatpush2.msra.mxu0 %v938
        %1144 = vmatprep.subr.mxu0 %v935
        %1145 = vmatpush2.msra.mxu0 %v934
        %1146 = vmatprep.subr.mxu0 %v931
        %1147 = vmatpush2.msra.mxu0 %v930
        %1148 = vmatprep.subr.mxu0 %v927
        %1149 = vmatpush2.msra.mxu0 %v926
        %1150 = vmatprep.subr.mxu0 %v923
        %1151 = vmatpush2.msra.mxu0 %v922
        %1152 = vmatprep.subr.mxu0 %v919
        %1153 = vmatpush2.msra.mxu0 %v918
        %1154 = vmatprep.subr.mxu0 %v915
        %1155 = vmatpush2.msra.mxu0 %v914
        %1156 = vmatprep.mubr.f32.mxu0 %v995
        %1157 = vmatmul.mubr.f32.gmra.mxu0 %v991
        %v1158 = vpop.f32.mrf.mxu0
        %v1159 = vadd.f32 %v1088, %v1158
        %v1160 = vpop.f32.mrf.mxu0
        %v1161 = vadd.f32 %v1090, %v1160
        %1162 = vdwg.mxu0
        %1163 = vmatprep.subr.mxu0 %v785
        %1164 = vmatpush1.msra.mxu0 %v784
        %1165 = vmatprep.subr.mxu0 %v781
        %1166 = vmatpush1.msra.mxu0 %v780
        %1167 = vmatprep.subr.mxu0 %v777
        %1168 = vmatpush1.msra.mxu0 %v776
        %1169 = vmatprep.subr.mxu0 %v773
        %1170 = vmatpush1.msra.mxu0 %v772
        %1171 = vmatprep.subr.mxu0 %v769
        %1172 = vmatpush1.msra.mxu0 %v768
        %1173 = vmatprep.subr.mxu0 %v765
        %1174 = vmatpush1.msra.mxu0 %v764
        %1175 = vmatprep.subr.mxu0 %v761
        %1176 = vmatpush1.msra.mxu0 %v760
        %1177 = vmatprep.subr.mxu0 %v757
        %1178 = vmatpush1.msra.mxu0 %v756
        %1179 = vmatprep.subr.mxu0 %v753
        %1180 = vmatpush1.msra.mxu0 %v752
        %1181 = vmatprep.subr.mxu0 %v749
        %1182 = vmatpush1.msra.mxu0 %v748
        %1183 = vmatprep.subr.mxu0 %v745
        %1184 = vmatpush1.msra.mxu0 %v744
        %1185 = vmatprep.subr.mxu0 %v741
        %1186 = vmatpush1.msra.mxu0 %v740
        %1187 = vmatprep.subr.mxu0 %v737
        %1188 = vmatpush1.msra.mxu0 %v736
        %1189 = vmatprep.subr.mxu0 %v733
        %1190 = vmatpush1.msra.mxu0 %v732
        %1191 = vmatprep.subr.mxu0 %v729
        %1192 = vmatpush1.msra.mxu0 %v728
        %1193 = vmatprep.subr.mxu0 %v725
        %1194 = vmatpush1.msra.mxu0 %v724
        %1195 = vmatprep.subr.mxu0 %v849
        %1196 = vmatpush2.msra.mxu0 %v848
        %1197 = vmatprep.subr.mxu0 %v845
        %1198 = vmatpush2.msra.mxu0 %v844
        %1199 = vmatprep.subr.mxu0 %v841
        %1200 = vmatpush2.msra.mxu0 %v840
        %1201 = vmatprep.subr.mxu0 %v837
        %1202 = vmatpush2.msra.mxu0 %v836
        %1203 = vmatprep.subr.mxu0 %v833
        %1204 = vmatpush2.msra.mxu0 %v832
        %1205 = vmatprep.subr.mxu0 %v829
        %1206 = vmatpush2.msra.mxu0 %v828
        %1207 = vmatprep.subr.mxu0 %v825
        %1208 = vmatpush2.msra.mxu0 %v824
        %1209 = vmatprep.subr.mxu0 %v821
        %1210 = vmatpush2.msra.mxu0 %v820
        %1211 = vmatprep.subr.mxu0 %v817
        %1212 = vmatpush2.msra.mxu0 %v816
        %1213 = vmatprep.subr.mxu0 %v813
        %1214 = vmatpush2.msra.mxu0 %v812
        %1215 = vmatprep.subr.mxu0 %v809
        %1216 = vmatpush2.msra.mxu0 %v808
        %1217 = vmatprep.subr.mxu0 %v805
        %1218 = vmatpush2.msra.mxu0 %v804
        %1219 = vmatprep.subr.mxu0 %v801
        %1220 = vmatpush2.msra.mxu0 %v800
        %1221 = vmatprep.subr.mxu0 %v797
        %1222 = vmatpush2.msra.mxu0 %v796
        %1223 = vmatprep.subr.mxu0 %v793
        %1224 = vmatpush2.msra.mxu0 %v792
        %1225 = vmatprep.subr.mxu0 %v789
        %1226 = vmatpush2.msra.mxu0 %v788
        %1227 = vmatprep.mubr.f32.mxu0 %v987
        %1228 = vmatmul.mubr.f32.gmra.mxu0 %v983
        %v1229 = vpop.f32.mrf.mxu0
        %v1230 = vadd.f32 %v1012, %v1229
        %v1231 = vpop.f32.mrf.mxu0
        %v1232 = vadd.f32 %v1016, %v1231
        %1233 = vdwg.mxu0
        %1234 = vmatprep.subr.mxu0 %v913
        %1235 = vmatpush1.msra.mxu0 %v912
        %1236 = vmatprep.subr.mxu0 %v909
        %1237 = vmatpush1.msra.mxu0 %v908
        %1238 = vmatprep.subr.mxu0 %v905
        %1239 = vmatpush1.msra.mxu0 %v904
        %1240 = vmatprep.subr.mxu0 %v901
        %1241 = vmatpush1.msra.mxu0 %v900
        %1242 = vmatprep.subr.mxu0 %v897
        %1243 = vmatpush1.msra.mxu0 %v896
        %1244 = vmatprep.subr.mxu0 %v893
        %1245 = vmatpush1.msra.mxu0 %v892
        %1246 = vmatprep.subr.mxu0 %v889
        %1247 = vmatpush1.msra.mxu0 %v888
        %1248 = vmatprep.subr.mxu0 %v885
        %1249 = vmatpush1.msra.mxu0 %v884
        %1250 = vmatprep.subr.mxu0 %v881
        %1251 = vmatpush1.msra.mxu0 %v880
        %1252 = vmatprep.subr.mxu0 %v877
        %1253 = vmatpush1.msra.mxu0 %v876
        %1254 = vmatprep.subr.mxu0 %v873
        %1255 = vmatpush1.msra.mxu0 %v872
        %1256 = vmatprep.subr.mxu0 %v869
        %1257 = vmatpush1.msra.mxu0 %v868
        %1258 = vmatprep.subr.mxu0 %v865
        %1259 = vmatpush1.msra.mxu0 %v864
        %1260 = vmatprep.subr.mxu0 %v861
        %1261 = vmatpush1.msra.mxu0 %v860
        %1262 = vmatprep.subr.mxu0 %v857
        %1263 = vmatpush1.msra.mxu0 %v856
        %1264 = vmatprep.subr.mxu0 %v853
        %1265 = vmatpush1.msra.mxu0 %v852
        %1266 = vmatprep.subr.mxu0 %v977
        %1267 = vmatpush2.msra.mxu0 %v976
        %1268 = vmatprep.subr.mxu0 %v973
        %1269 = vmatpush2.msra.mxu0 %v972
        %1270 = vmatprep.subr.mxu0 %v969
        %1271 = vmatpush2.msra.mxu0 %v968
        %1272 = vmatprep.subr.mxu0 %v965
        %1273 = vmatpush2.msra.mxu0 %v964
        %1274 = vmatprep.subr.mxu0 %v961
        %1275 = vmatpush2.msra.mxu0 %v960
        %1276 = vmatprep.subr.mxu0 %v957
        %1277 = vmatpush2.msra.mxu0 %v956
        %1278 = vmatprep.subr.mxu0 %v953
        %1279 = vmatpush2.msra.mxu0 %v952
        %1280 = vmatprep.subr.mxu0 %v949
        %1281 = vmatpush2.msra.mxu0 %v948
        %1282 = vmatprep.subr.mxu0 %v945
        %1283 = vmatpush2.msra.mxu0 %v944
        %1284 = vmatprep.subr.mxu0 %v941
        %1285 = vmatpush2.msra.mxu0 %v940
        %1286 = vmatprep.subr.mxu0 %v937
        %1287 = vmatpush2.msra.mxu0 %v936
        %1288 = vmatprep.subr.mxu0 %v933
        %1289 = vmatpush2.msra.mxu0 %v932
        %1290 = vmatprep.subr.mxu0 %v929
        %1291 = vmatpush2.msra.mxu0 %v928
        %1292 = vmatprep.subr.mxu0 %v925
        %1293 = vmatpush2.msra.mxu0 %v924
        %1294 = vmatprep.subr.mxu0 %v921
        %1295 = vmatpush2.msra.mxu0 %v920
        %1296 = vmatprep.subr.mxu0 %v917
        %1297 = vmatpush2.msra.mxu0 %v916
        %1298 = vmatprep.mubr.f32.mxu0 %v995
        %1299 = vmatmul.mubr.f32.gmra.mxu0 %v991
        %v1300 = vpop.f32.mrf.mxu0
        %v1301 = vadd.f32 %v1230, %v1300
        %v1302 = vpop.f32.mrf.mxu0
        %v1303 = vadd.f32 %v1232, %v1302
        %1304 = vdwg.mxu0
        %v1305 = vld [vmem:[%s4] sm:$0xf]
        %v1307 = vlaneseq
        %v1308 = vshrl.u32 %v1307, 7
        %v1309 = vsub.s32 0, %v1308
        %v1310 = vrot.slane %v1305, %v1309
        %v1311 = vlaneseq
        %v1312 = vshrl.u32 %v1311, 7
        %v1313 = vsub.s32 1, %v1312
        %v1314 = vrot.slane %v1305, %v1313
        %v1315 = vlaneseq
        %v1316 = vshrl.u32 %v1315, 7
        %v1317 = vsub.s32 2, %v1316
        %v1318 = vrot.slane %v1305, %v1317
        %v1319 = vlaneseq
        %v1320 = vshrl.u32 %v1319, 7
        %v1321 = vsub.s32 3, %v1320
        %v1322 = vrot.slane %v1305, %v1321
        %v1327 = vmul.f32 %v1159, %v1310
        %v1328 = vmul.f32 %v1161, %v1314
        %v1329 = vmul.f32 %v1301, %v1318
        %v1330 = vmul.f32 %v1303, %v1322
        %v1331 = vld [vmem:[%s5] sm:$0xf]
        %v1333 = vlaneseq
        %v1334 = vshrl.u32 %v1333, 7
        %v1335 = vsub.s32 0, %v1334
        %v1336 = vrot.slane %v1331, %v1335
        %v1337 = vlaneseq
        %v1338 = vshrl.u32 %v1337, 7
        %v1339 = vsub.s32 1, %v1338
        %v1340 = vrot.slane %v1331, %v1339
        %v1341 = vlaneseq
        %v1342 = vshrl.u32 %v1341, 7
        %v1343 = vsub.s32 2, %v1342
        %v1344 = vrot.slane %v1331, %v1343
        %v1345 = vlaneseq
        %v1346 = vshrl.u32 %v1345, 7
        %v1347 = vsub.s32 3, %v1346
        %v1348 = vrot.slane %v1331, %v1347
        %v1353 = vadd.f32 %v1327, %v1336
        %v1354 = vadd.f32 %v1328, %v1340
        %v1355 = vadd.f32 %v1329, %v1344
        %v1356 = vadd.f32 %v1330, %v1348
        %v1357 = vmax.f32 %v1353, 0.0
        %v1358 = vmax.f32 %v1354, 0.0
        %v1359 = vmax.f32 %v1355, 0.0
        %v1360 = vmax.f32 %v1356, 0.0
        %v1361 = vld [vmem:[%s6] sm:$0xff]
        %v1362 = vld [vmem:[%s6 + $0x8] sm:$0xff]
        %v1363 = vld [vmem:[%s6 + $0x10] sm:$0xff]
        %v1364 = vld [vmem:[%s6 + $0x18] sm:$0xff]
        %v1365 = vld [vmem:[%s6 + $0x20] sm:$0xff]
        %v1366 = vld [vmem:[%s6 + $0x28] sm:$0xff]
        %v1367 = vld [vmem:[%s6 + $0x30] sm:$0xff]
        %v1368 = vld [vmem:[%s6 + $0x38] sm:$0xff]
        %v1369 = vld [vmem:[%s6 + $0x40] sm:$0xff]
        %v1370 = vld [vmem:[%s6 + $0x48] sm:$0xff]
        %v1371 = vld [vmem:[%s6 + $0x50] sm:$0xff]
        %v1372 = vld [vmem:[%s6 + $0x58] sm:$0xff]
        %v1373 = vld [vmem:[%s6 + $0x60] sm:$0xff]
        %v1374 = vld [vmem:[%s6 + $0x68] sm:$0xff]
        %v1375 = vld [vmem:[%s6 + $0x70] sm:$0xff]
        %v1376 = vld [vmem:[%s6 + $0x78] sm:$0xff]
        %v1377 = vld [vmem:[%s6 + $0x80] sm:$0xff]
        %v1378 = vld [vmem:[%s6 + $0x88] sm:$0xff]
        %v1379 = vld [vmem:[%s6 + $0x90] sm:$0xff]
        %v1380 = vld [vmem:[%s6 + $0x98] sm:$0xff]
        %v1381 = vld [vmem:[%s6 + $0xa0] sm:$0xff]
        %v1382 = vld [vmem:[%s6 + $0xa8] sm:$0xff]
        %v1383 = vld [vmem:[%s6 + $0xb0] sm:$0xff]
        %v1384 = vld [vmem:[%s6 + $0xb8] sm:$0xff]
        %v1385 = vld [vmem:[%s6 + $0xc0] sm:$0xff]
        %v1386 = vld [vmem:[%s6 + $0xc8] sm:$0xff]
        %v1387 = vld [vmem:[%s6 + $0xd0] sm:$0xff]
        %v1388 = vld [vmem:[%s6 + $0xd8] sm:$0xff]
        %v1389 = vld [vmem:[%s6 + $0xe0] sm:$0xff]
        %v1390 = vld [vmem:[%s6 + $0xe8] sm:$0xff]
        %v1391 = vld [vmem:[%s6 + $0xf0] sm:$0xff]
        %v1392 = vld [vmem:[%s6 + $0xf8] sm:$0xff]
        %v1393 = vld [vmem:[%s6 + $0x100] sm:$0xff]
        %v1394 = vld [vmem:[%s6 + $0x108] sm:$0xff]
        %v1395 = vld [vmem:[%s6 + $0x110] sm:$0xff]
        %v1396 = vld [vmem:[%s6 + $0x118] sm:$0xff]
        %v1397 = vld [vmem:[%s6 + $0x120] sm:$0xff]
        %v1398 = vld [vmem:[%s6 + $0x128] sm:$0xff]
        %v1399 = vld [vmem:[%s6 + $0x130] sm:$0xff]
        %v1400 = vld [vmem:[%s6 + $0x138] sm:$0xff]
        %v1401 = vld [vmem:[%s6 + $0x140] sm:$0xff]
        %v1402 = vld [vmem:[%s6 + $0x148] sm:$0xff]
        %v1403 = vld [vmem:[%s6 + $0x150] sm:$0xff]
        %v1404 = vld [vmem:[%s6 + $0x158] sm:$0xff]
        %v1405 = vld [vmem:[%s6 + $0x160] sm:$0xff]
        %v1406 = vld [vmem:[%s6 + $0x168] sm:$0xff]
        %v1407 = vld [vmem:[%s6 + $0x170] sm:$0xff]
        %v1408 = vld [vmem:[%s6 + $0x178] sm:$0xff]
        %v1409 = vld [vmem:[%s6 + $0x180] sm:$0xff]
        %v1410 = vld [vmem:[%s6 + $0x188] sm:$0xff]
        %v1411 = vld [vmem:[%s6 + $0x190] sm:$0xff]
        %v1412 = vld [vmem:[%s6 + $0x198] sm:$0xff]
        %v1413 = vld [vmem:[%s6 + $0x1a0] sm:$0xff]
        %v1414 = vld [vmem:[%s6 + $0x1a8] sm:$0xff]
        %v1415 = vld [vmem:[%s6 + $0x1b0] sm:$0xff]
        %v1416 = vld [vmem:[%s6 + $0x1b8] sm:$0xff]
        %v1417 = vld [vmem:[%s6 + $0x1c0] sm:$0xff]
        %v1418 = vld [vmem:[%s6 + $0x1c8] sm:$0xff]
        %v1419 = vld [vmem:[%s6 + $0x1d0] sm:$0xff]
        %v1420 = vld [vmem:[%s6 + $0x1d8] sm:$0xff]
        %v1421 = vld [vmem:[%s6 + $0x1e0] sm:$0xff]
        %v1422 = vld [vmem:[%s6 + $0x1e8] sm:$0xff]
        %v1423 = vld [vmem:[%s6 + $0x1f0] sm:$0xff]
        %v1424 = vld [vmem:[%s6 + $0x1f8] sm:$0xff]
        %v1425 = vld [vmem:[%s7] sm:$0x1]
        %1426 = vmatprep.subr.mxu0 0.0
        %1427 = vmatpush1.msra.mxu0 %v1376
        %1428 = vmatprep.subr.mxu0 0.0
        %1429 = vmatpush1.msra.mxu0 %v1375
        %1430 = vmatprep.subr.mxu0 0.0
        %1431 = vmatpush1.msra.mxu0 %v1374
        %1432 = vmatprep.subr.mxu0 0.0
        %1433 = vmatpush1.msra.mxu0 %v1373
        %1434 = vmatprep.subr.mxu0 0.0
        %1435 = vmatpush1.msra.mxu0 %v1372
        %1436 = vmatprep.subr.mxu0 0.0
        %1437 = vmatpush1.msra.mxu0 %v1371
        %1438 = vmatprep.subr.mxu0 0.0
        %1439 = vmatpush1.msra.mxu0 %v1370
        %1440 = vmatprep.subr.mxu0 0.0
        %1441 = vmatpush1.msra.mxu0 %v1369
        %1442 = vmatprep.subr.mxu0 0.0
        %1443 = vmatpush1.msra.mxu0 %v1368
        %1444 = vmatprep.subr.mxu0 0.0
        %1445 = vmatpush1.msra.mxu0 %v1367
        %1446 = vmatprep.subr.mxu0 0.0
        %1447 = vmatpush1.msra.mxu0 %v1366
        %1448 = vmatprep.subr.mxu0 0.0
        %1449 = vmatpush1.msra.mxu0 %v1365
        %1450 = vmatprep.subr.mxu0 0.0
        %1451 = vmatpush1.msra.mxu0 %v1364
        %1452 = vmatprep.subr.mxu0 0.0
        %1453 = vmatpush1.msra.mxu0 %v1363
        %1454 = vmatprep.subr.mxu0 0.0
        %1455 = vmatpush1.msra.mxu0 %v1362
        %1456 = vmatprep.subr.mxu0 0.0
        %1457 = vmatpush1.msra.mxu0 %v1361
        %1458 = vmatprep.subr.mxu0 0.0
        %1459 = vmatpush2.msra.mxu0 %v1392
        %1460 = vmatprep.subr.mxu0 0.0
        %1461 = vmatpush2.msra.mxu0 %v1391
        %1462 = vmatprep.subr.mxu0 0.0
        %1463 = vmatpush2.msra.mxu0 %v1390
        %1464 = vmatprep.subr.mxu0 0.0
        %1465 = vmatpush2.msra.mxu0 %v1389
        %1466 = vmatprep.subr.mxu0 0.0
        %1467 = vmatpush2.msra.mxu0 %v1388
        %1468 = vmatprep.subr.mxu0 0.0
        %1469 = vmatpush2.msra.mxu0 %v1387
        %1470 = vmatprep.subr.mxu0 0.0
        %1471 = vmatpush2.msra.mxu0 %v1386
        %1472 = vmatprep.subr.mxu0 0.0
        %1473 = vmatpush2.msra.mxu0 %v1385
        %1474 = vmatprep.subr.mxu0 0.0
        %1475 = vmatpush2.msra.mxu0 %v1384
        %1476 = vmatprep.subr.mxu0 0.0
        %1477 = vmatpush2.msra.mxu0 %v1383
        %1478 = vmatprep.subr.mxu0 0.0
        %1479 = vmatpush2.msra.mxu0 %v1382
        %1480 = vmatprep.subr.mxu0 0.0
        %1481 = vmatpush2.msra.mxu0 %v1381
        %1482 = vmatprep.subr.mxu0 0.0
        %1483 = vmatpush2.msra.mxu0 %v1380
        %1484 = vmatprep.subr.mxu0 0.0
        %1485 = vmatpush2.msra.mxu0 %v1379
        %1486 = vmatprep.subr.mxu0 0.0
        %1487 = vmatpush2.msra.mxu0 %v1378
        %1488 = vmatprep.subr.mxu0 0.0
        %1489 = vmatpush2.msra.mxu0 %v1377
        %1490 = vmatprep.mubr.f32.mxu0 %v1358
        %1491 = vmatmul.mubr.f32.gmra.mxu0 %v1357
        %v1492 = vpop.f32.mrf.mxu0
        %v1493 = vadd.f32 %v1425, %v1492
        %v1494 = vpop.f32.mrf.mxu0
        %1495 = vdwg.mxu0
        %1496 = vmatprep.subr.mxu0 0.0
        %1497 = vmatpush1.msra.mxu0 %v1408
        %1498 = vmatprep.subr.mxu0 0.0
        %1499 = vmatpush1.msra.mxu0 %v1407
        %1500 = vmatprep.subr.mxu0 0.0
        %1501 = vmatpush1.msra.mxu0 %v1406
        %1502 = vmatprep.subr.mxu0 0.0
        %1503 = vmatpush1.msra.mxu0 %v1405
        %1504 = vmatprep.subr.mxu0 0.0
        %1505 = vmatpush1.msra.mxu0 %v1404
        %1506 = vmatprep.subr.mxu0 0.0
        %1507 = vmatpush1.msra.mxu0 %v1403
        %1508 = vmatprep.subr.mxu0 0.0
        %1509 = vmatpush1.msra.mxu0 %v1402
        %1510 = vmatprep.subr.mxu0 0.0
        %1511 = vmatpush1.msra.mxu0 %v1401
        %1512 = vmatprep.subr.mxu0 0.0
        %1513 = vmatpush1.msra.mxu0 %v1400
        %1514 = vmatprep.subr.mxu0 0.0
        %1515 = vmatpush1.msra.mxu0 %v1399
        %1516 = vmatprep.subr.mxu0 0.0
        %1517 = vmatpush1.msra.mxu0 %v1398
        %1518 = vmatprep.subr.mxu0 0.0
        %1519 = vmatpush1.msra.mxu0 %v1397
        %1520 = vmatprep.subr.mxu0 0.0
        %1521 = vmatpush1.msra.mxu0 %v1396
        %1522 = vmatprep.subr.mxu0 0.0
        %1523 = vmatpush1.msra.mxu0 %v1395
        %1524 = vmatprep.subr.mxu0 0.0
        %1525 = vmatpush1.msra.mxu0 %v1394
        %1526 = vmatprep.subr.mxu0 0.0
        %1527 = vmatpush1.msra.mxu0 %v1393
        %1528 = vmatprep.subr.mxu0 0.0
        %1529 = vmatpush2.msra.mxu0 %v1424
        %1530 = vmatprep.subr.mxu0 0.0
        %1531 = vmatpush2.msra.mxu0 %v1423
        %1532 = vmatprep.subr.mxu0 0.0
        %1533 = vmatpush2.msra.mxu0 %v1422
        %1534 = vmatprep.subr.mxu0 0.0
        %1535 = vmatpush2.msra.mxu0 %v1421
        %1536 = vmatprep.subr.mxu0 0.0
        %1537 = vmatpush2.msra.mxu0 %v1420
        %1538 = vmatprep.subr.mxu0 0.0
        %1539 = vmatpush2.msra.mxu0 %v1419
        %1540 = vmatprep.subr.mxu0 0.0
        %1541 = vmatpush2.msra.mxu0 %v1418
        %1542 = vmatprep.subr.mxu0 0.0
        %1543 = vmatpush2.msra.mxu0 %v1417
        %1544 = vmatprep.subr.mxu0 0.0
        %1545 = vmatpush2.msra.mxu0 %v1416
        %1546 = vmatprep.subr.mxu0 0.0
        %1547 = vmatpush2.msra.mxu0 %v1415
        %1548 = vmatprep.subr.mxu0 0.0
        %1549 = vmatpush2.msra.mxu0 %v1414
        %1550 = vmatprep.subr.mxu0 0.0
        %1551 = vmatpush2.msra.mxu0 %v1413
        %1552 = vmatprep.subr.mxu0 0.0
        %1553 = vmatpush2.msra.mxu0 %v1412
        %1554 = vmatprep.subr.mxu0 0.0
        %1555 = vmatpush2.msra.mxu0 %v1411
        %1556 = vmatprep.subr.mxu0 0.0
        %1557 = vmatpush2.msra.mxu0 %v1410
        %1558 = vmatprep.subr.mxu0 0.0
        %1559 = vmatpush2.msra.mxu0 %v1409
        %1560 = vmatprep.mubr.f32.mxu0 %v1360
        %1561 = vmatmul.mubr.f32.gmra.mxu0 %v1359
        %v1562 = vpop.f32.mrf.mxu0
        %v1563 = vadd.f32 %v1493, %v1562
        %v1564 = vpop.f32.mrf.mxu0
        %1565 = vdwg.mxu0
        %vm1566 = vcmask 57344
        %1567 = vst.msk [vmem:[%s689] sm:$0x1] %vm1566, %v1563
        %v1568 = vsel %vm1566, %v1563, -inf
        %1569 = vmax.xlane.f32.xlu0 %v1568
        %v1570 = vpop.xlane.xlu0 %1569
        %v1571 = vsub.f32 %v1563, %v1570
        %v1572 = vmul.f32 %v1571, 1.442695
        %v1573 = vpow.pop %v1572
        %v1574 = vsel %vm1566, %v1573, 0.0
        %1575 = vadd.xlane.f32.xlu0 %v1574
        %v1576 = vpop.xlane.xlu0 %1575
        %v1577 = vrcp.pop %v1576
        %v1578 = vmul.f32 %v1573, %v1577
        %v1579 = vld [vmem:[%s19] sm:$0xff]
        %v1580 = vld [vmem:[%s19 + $0x8] sm:$0xff]
        %v1581 = vld [vmem:[%s19 + $0x10] sm:$0xff]
        %v1582 = vld [vmem:[%s19 + $0x18] sm:$0xff]
        %vm1583 = vcmask 64512
        %v1585 = vsel %vm1583, %v1578, 0
        %1587 = vmatprep.subr.mxu0 0.0
        %1588 = vmatpush1.msra.mxu0 0.0
        %1589 = vmatprep.subr.mxu0 0.0
        %1590 = vmatpush1.msra.mxu0 0.0
        %1591 = vmatprep.subr.mxu0 0.0
        %1592 = vmatpush1.msra.mxu0 0.0
        %1593 = vmatprep.subr.mxu0 0.0
        %1594 = vmatpush1.msra.mxu0 0.0
        %1595 = vmatprep.subr.mxu0 0.0
        %1596 = vmatpush1.msra.mxu0 0.0
        %1597 = vmatprep.subr.mxu0 0.0
        %1598 = vmatpush1.msra.mxu0 0.0
        %1599 = vmatprep.subr.mxu0 0.0
        %1600 = vmatpush1.msra.mxu0 0.0
        %1601 = vmatprep.subr.mxu0 0.0
        %1602 = vmatpush1.msra.mxu0 0.0
        %1603 = vmatprep.subr.mxu0 0.0
        %1604 = vmatpush1.msra.mxu0 0.0
        %1605 = vmatprep.subr.mxu0 0.0
        %1606 = vmatpush1.msra.mxu0 0.0
        %1607 = vmatprep.subr.mxu0 0.0
        %1608 = vmatpush1.msra.mxu0 0.0
        %1609 = vmatprep.subr.mxu0 0.0
        %1610 = vmatpush1.msra.mxu0 0.0
        %1611 = vmatprep.subr.mxu0 0.0
        %1612 = vmatpush1.msra.mxu0 0.0
        %1613 = vmatprep.subr.mxu0 0.0
        %1614 = vmatpush1.msra.mxu0 0.0
        %1615 = vmatprep.subr.mxu0 0.0
        %1616 = vmatpush1.msra.mxu0 0.0
        %1617 = vmatprep.subr.mxu0 %v1580
        %1618 = vmatpush1.msra.mxu0 %v1579
        %1619 = vmatprep.subr.mxu0 0.0
        %1620 = vmatpush2.msra.mxu0 0.0
        %1621 = vmatprep.subr.mxu0 0.0
        %1622 = vmatpush2.msra.mxu0 0.0
        %1623 = vmatprep.subr.mxu0 0.0
        %1624 = vmatpush2.msra.mxu0 0.0
        %1625 = vmatprep.subr.mxu0 0.0
        %1626 = vmatpush2.msra.mxu0 0.0
        %1627 = vmatprep.subr.mxu0 0.0
        %1628 = vmatpush2.msra.mxu0 0.0
        %1629 = vmatprep.subr.mxu0 0.0
        %1630 = vmatpush2.msra.mxu0 0.0
        %1631 = vmatprep.subr.mxu0 0.0
        %1632 = vmatpush2.msra.mxu0 0.0
        %1633 = vmatprep.subr.mxu0 0.0
        %1634 = vmatpush2.msra.mxu0 0.0
        %1635 = vmatprep.subr.mxu0 0.0
        %1636 = vmatpush2.msra.mxu0 0.0
        %1637 = vmatprep.subr.mxu0 0.0
        %1638 = vmatpush2.msra.mxu0 0.0
        %1639 = vmatprep.subr.mxu0 0.0
        %1640 = vmatpush2.msra.mxu0 0.0
        %1641 = vmatprep.subr.mxu0 0.0
        %1642 = vmatpush2.msra.mxu0 0.0
        %1643 = vmatprep.subr.mxu0 0.0
        %1644 = vmatpush2.msra.mxu0 0.0
        %1645 = vmatprep.subr.mxu0 0.0
        %1646 = vmatpush2.msra.mxu0 0.0
        %1647 = vmatprep.subr.mxu0 0.0
        %1648 = vmatpush2.msra.mxu0 0.0
        %1649 = vmatprep.subr.mxu0 0.0
        %1650 = vmatpush2.msra.mxu0 0.0
        %1651 = vmatprep.mubr.f32.mxu0 0.0
        %1652 = vmatmul.mubr.f32.gmra.mxu0 %v1585
        %v1653 = vpop.f32.mrf.mxu0
        %v1654 = vadd.f32 0.0, %v1653
        %v1655 = vpop.f32.mrf.mxu0
        %v1656 = vadd.f32 0.0, %v1655
        %1657 = vdwg.mxu0
        %1658 = vmatprep.subr.mxu0 0.0
        %1659 = vmatpush1.msra.mxu0 0.0
        %1660 = vmatprep.subr.mxu0 0.0
        %1661 = vmatpush1.msra.mxu0 0.0
        %1662 = vmatprep.subr.mxu0 0.0
        %1663 = vmatpush1.msra.mxu0 0.0
        %1664 = vmatprep.subr.mxu0 0.0
        %1665 = vmatpush1.msra.mxu0 0.0
        %1666 = vmatprep.subr.mxu0 0.0
        %1667 = vmatpush1.msra.mxu0 0.0
        %1668 = vmatprep.subr.mxu0 0.0
        %1669 = vmatpush1.msra.mxu0 0.0
        %1670 = vmatprep.subr.mxu0 0.0
        %1671 = vmatpush1.msra.mxu0 0.0
        %1672 = vmatprep.subr.mxu0 0.0
        %1673 = vmatpush1.msra.mxu0 0.0
        %1674 = vmatprep.subr.mxu0 0.0
        %1675 = vmatpush1.msra.mxu0 0.0
        %1676 = vmatprep.subr.mxu0 0.0
        %1677 = vmatpush1.msra.mxu0 0.0
        %1678 = vmatprep.subr.mxu0 0.0
        %1679 = vmatpush1.msra.mxu0 0.0
        %1680 = vmatprep.subr.mxu0 0.0
        %1681 = vmatpush1.msra.mxu0 0.0
        %1682 = vmatprep.subr.mxu0 0.0
        %1683 = vmatpush1.msra.mxu0 0.0
        %1684 = vmatprep.subr.mxu0 0.0
        %1685 = vmatpush1.msra.mxu0 0.0
        %1686 = vmatprep.subr.mxu0 0.0
        %1687 = vmatpush1.msra.mxu0 0.0
        %1688 = vmatprep.subr.mxu0 %v1582
        %1689 = vmatpush1.msra.mxu0 %v1581
        %1690 = vmatprep.subr.mxu0 0.0
        %1691 = vmatpush2.msra.mxu0 0.0
        %1692 = vmatprep.subr.mxu0 0.0
        %1693 = vmatpush2.msra.mxu0 0.0
        %1694 = vmatprep.subr.mxu0 0.0
        %1695 = vmatpush2.msra.mxu0 0.0
        %1696 = vmatprep.subr.mxu0 0.0
        %1697 = vmatpush2.msra.mxu0 0.0
        %1698 = vmatprep.subr.mxu0 0.0
        %1699 = vmatpush2.msra.mxu0 0.0
        %1700 = vmatprep.subr.mxu0 0.0
        %1701 = vmatpush2.msra.mxu0 0.0
        %1702 = vmatprep.subr.mxu0 0.0
        %1703 = vmatpush2.msra.mxu0 0.0
        %1704 = vmatprep.subr.mxu0 0.0
        %1705 = vmatpush2.msra.mxu0 0.0
        %1706 = vmatprep.subr.mxu0 0.0
        %1707 = vmatpush2.msra.mxu0 0.0
        %1708 = vmatprep.subr.mxu0 0.0
        %1709 = vmatpush2.msra.mxu0 0.0
        %1710 = vmatprep.subr.mxu0 0.0
        %1711 = vmatpush2.msra.mxu0 0.0
        %1712 = vmatprep.subr.mxu0 0.0
        %1713 = vmatpush2.msra.mxu0 0.0
        %1714 = vmatprep.subr.mxu0 0.0
        %1715 = vmatpush2.msra.mxu0 0.0
        %1716 = vmatprep.subr.mxu0 0.0
        %1717 = vmatpush2.msra.mxu0 0.0
        %1718 = vmatprep.subr.mxu0 0.0
        %1719 = vmatpush2.msra.mxu0 0.0
        %1720 = vmatprep.subr.mxu0 0.0
        %1721 = vmatpush2.msra.mxu0 0.0
        %1722 = vmatprep.mubr.f32.mxu0 0.0
        %1723 = vmatmul.mubr.f32.gmra.mxu0 %v1585
        %v1724 = vpop.f32.mrf.mxu0
        %v1725 = vadd.f32 0.0, %v1724
        %v1726 = vpop.f32.mrf.mxu0
        %v1727 = vadd.f32 0.0, %v1726
        %1728 = vdwg.mxu0
        %v1729 = vld [vmem:[%s707] sm:$0x1f]
        %v1730 = vld [vmem:[%s707 + $0x8] sm:$0x1f]
        %v1731 = vld [vmem:[%s707 + $0x10] sm:$0x1f]
        %v1732 = vld [vmem:[%s707 + $0x18] sm:$0x1f]
        %v1733 = vld [vmem:[%s707 + $0x20] sm:$0x1f]
        %v1734 = vld [vmem:[%s707 + $0x28] sm:$0x1f]
        %v1735 = vld [vmem:[%s707 + $0x30] sm:$0x1f]
        %v1736 = vld [vmem:[%s707 + $0x38] sm:$0x1f]
        %v1737 = vld [vmem:[%s707 + $0x40] sm:$0x1f]
        %v1738 = vld [vmem:[%s707 + $0x48] sm:$0x1f]
        %v1739 = vld [vmem:[%s707 + $0x50] sm:$0x1f]
        %v1740 = vld [vmem:[%s707 + $0x58] sm:$0x1f]
        %v1741 = vld [vmem:[%s707 + $0x60] sm:$0x1f]
        %v1742 = vld [vmem:[%s707 + $0x68] sm:$0x1f]
        %v1743 = vld [vmem:[%s707 + $0x70] sm:$0x1f]
        %v1744 = vld [vmem:[%s707 + $0x78] sm:$0x1f]
        %v1745 = vld [vmem:[%s8] sm:$0xff]
        %v1746 = vld [vmem:[%s8 + $0x8] sm:$0xff]
        %v1747 = vld [vmem:[%s8 + $0x10] sm:$0xff]
        %v1748 = vld [vmem:[%s8 + $0x18] sm:$0xff]
        %v1749 = vld [vmem:[%s8 + $0x20] sm:$0xff]
        %v1750 = vld [vmem:[%s8 + $0x28] sm:$0xff]
        %v1751 = vld [vmem:[%s8 + $0x30] sm:$0xff]
        %v1752 = vld [vmem:[%s8 + $0x38] sm:$0xff]
        %v1753 = vld [vmem:[%s8 + $0x40] sm:$0xff]
        %v1754 = vld [vmem:[%s8 + $0x48] sm:$0xff]
        %v1755 = vld [vmem:[%s8 + $0x50] sm:$0xff]
        %v1756 = vld [vmem:[%s8 + $0x58] sm:$0xff]
        %v1757 = vld [vmem:[%s8 + $0x60] sm:$0xff]
        %v1758 = vld [vmem:[%s8 + $0x68] sm:$0xff]
        %v1759 = vld [vmem:[%s8 + $0x70] sm:$0xff]
        %v1760 = vld [vmem:[%s8 + $0x78] sm:$0xff]
        %v1761 = vld [vmem:[%s8 + $0x80] sm:$0xff]
        %v1762 = vld [vmem:[%s8 + $0x88] sm:$0xff]
        %v1763 = vld [vmem:[%s8 + $0x90] sm:$0xff]
        %v1764 = vld [vmem:[%s8 + $0x98] sm:$0xff]
        %v1765 = vld [vmem:[%s8 + $0xa0] sm:$0xff]
        %v1766 = vld [vmem:[%s8 + $0xa8] sm:$0xff]
        %v1767 = vld [vmem:[%s8 + $0xb0] sm:$0xff]
        %v1768 = vld [vmem:[%s8 + $0xb8] sm:$0xff]
        %v1769 = vld [vmem:[%s8 + $0xc0] sm:$0xff]
        %v1770 = vld [vmem:[%s8 + $0xc8] sm:$0xff]
        %v1771 = vld [vmem:[%s8 + $0xd0] sm:$0xff]
        %v1772 = vld [vmem:[%s8 + $0xd8] sm:$0xff]
        %v1773 = vld [vmem:[%s8 + $0xe0] sm:$0xff]
        %v1774 = vld [vmem:[%s8 + $0xe8] sm:$0xff]
        %v1775 = vld [vmem:[%s8 + $0xf0] sm:$0xff]
        %v1776 = vld [vmem:[%s8 + $0xf8] sm:$0xff]
        %v1777 = vld [vmem:[%s8 + $0x100] sm:$0xff]
        %v1778 = vld [vmem:[%s8 + $0x108] sm:$0xff]
        %v1779 = vld [vmem:[%s8 + $0x110] sm:$0xff]
        %v1780 = vld [vmem:[%s8 + $0x118] sm:$0xff]
        %v1781 = vld [vmem:[%s8 + $0x120] sm:$0xff]
        %v1782 = vld [vmem:[%s8 + $0x128] sm:$0xff]
        %v1783 = vld [vmem:[%s8 + $0x130] sm:$0xff]
        %v1784 = vld [vmem:[%s8 + $0x138] sm:$0xff]
        %v1785 = vld [vmem:[%s8 + $0x140] sm:$0xff]
        %v1786 = vld [vmem:[%s8 + $0x148] sm:$0xff]
        %v1787 = vld [vmem:[%s8 + $0x150] sm:$0xff]
        %v1788 = vld [vmem:[%s8 + $0x158] sm:$0xff]
        %v1789 = vld [vmem:[%s8 + $0x160] sm:$0xff]
        %v1790 = vld [vmem:[%s8 + $0x168] sm:$0xff]
        %v1791 = vld [vmem:[%s8 + $0x170] sm:$0xff]
        %v1792 = vld [vmem:[%s8 + $0x178] sm:$0xff]
        %v1793 = vld [vmem:[%s8 + $0x180] sm:$0xff]
        %v1794 = vld [vmem:[%s8 + $0x188] sm:$0xff]
        %v1795 = vld [vmem:[%s8 + $0x190] sm:$0xff]
        %v1796 = vld [vmem:[%s8 + $0x198] sm:$0xff]
        %v1797 = vld [vmem:[%s8 + $0x1a0] sm:$0xff]
        %v1798 = vld [vmem:[%s8 + $0x1a8] sm:$0xff]
        %v1799 = vld [vmem:[%s8 + $0x1b0] sm:$0xff]
        %v1800 = vld [vmem:[%s8 + $0x1b8] sm:$0xff]
        %v1801 = vld [vmem:[%s8 + $0x1c0] sm:$0xff]
        %v1802 = vld [vmem:[%s8 + $0x1c8] sm:$0xff]
        %v1803 = vld [vmem:[%s8 + $0x1d0] sm:$0xff]
        %v1804 = vld [vmem:[%s8 + $0x1d8] sm:$0xff]
        %v1805 = vld [vmem:[%s8 + $0x1e0] sm:$0xff]
        %v1806 = vld [vmem:[%s8 + $0x1e8] sm:$0xff]
        %v1807 = vld [vmem:[%s8 + $0x1f0] sm:$0xff]
        %v1808 = vld [vmem:[%s8 + $0x1f8] sm:$0xff]
        %v1809 = vld [vmem:[%s8 + $0x200] sm:$0xff]
        %v1810 = vld [vmem:[%s8 + $0x208] sm:$0xff]
        %v1811 = vld [vmem:[%s8 + $0x210] sm:$0xff]
        %v1812 = vld [vmem:[%s8 + $0x218] sm:$0xff]
        %v1813 = vld [vmem:[%s8 + $0x220] sm:$0xff]
        %v1814 = vld [vmem:[%s8 + $0x228] sm:$0xff]
        %v1815 = vld [vmem:[%s8 + $0x230] sm:$0xff]
        %v1816 = vld [vmem:[%s8 + $0x238] sm:$0xff]
        %v1817 = vld [vmem:[%s8 + $0x240] sm:$0xff]
        %v1818 = vld [vmem:[%s8 + $0x248] sm:$0xff]
        %v1819 = vld [vmem:[%s8 + $0x250] sm:$0xff]
        %v1820 = vld [vmem:[%s8 + $0x258] sm:$0xff]
        %v1821 = vld [vmem:[%s8 + $0x260] sm:$0xff]
        %v1822 = vld [vmem:[%s8 + $0x268] sm:$0xff]
        %v1823 = vld [vmem:[%s8 + $0x270] sm:$0xff]
        %v1824 = vld [vmem:[%s8 + $0x278] sm:$0xff]
        %v1825 = vld [vmem:[%s8 + $0x280] sm:$0xff]
        %v1826 = vld [vmem:[%s8 + $0x288] sm:$0xff]
        %v1827 = vld [vmem:[%s8 + $0x290] sm:$0xff]
        %v1828 = vld [vmem:[%s8 + $0x298] sm:$0xff]
        %v1829 = vld [vmem:[%s8 + $0x2a0] sm:$0xff]
        %v1830 = vld [vmem:[%s8 + $0x2a8] sm:$0xff]
        %v1831 = vld [vmem:[%s8 + $0x2b0] sm:$0xff]
        %v1832 = vld [vmem:[%s8 + $0x2b8] sm:$0xff]
        %v1833 = vld [vmem:[%s8 + $0x2c0] sm:$0xff]
        %v1834 = vld [vmem:[%s8 + $0x2c8] sm:$0xff]
        %v1835 = vld [vmem:[%s8 + $0x2d0] sm:$0xff]
        %v1836 = vld [vmem:[%s8 + $0x2d8] sm:$0xff]
        %v1837 = vld [vmem:[%s8 + $0x2e0] sm:$0xff]
        %v1838 = vld [vmem:[%s8 + $0x2e8] sm:$0xff]
        %v1839 = vld [vmem:[%s8 + $0x2f0] sm:$0xff]
        %v1840 = vld [vmem:[%s8 + $0x2f8] sm:$0xff]
        %v1841 = vld [vmem:[%s8 + $0x300] sm:$0xff]
        %v1842 = vld [vmem:[%s8 + $0x308] sm:$0xff]
        %v1843 = vld [vmem:[%s8 + $0x310] sm:$0xff]
        %v1844 = vld [vmem:[%s8 + $0x318] sm:$0xff]
        %v1845 = vld [vmem:[%s8 + $0x320] sm:$0xff]
        %v1846 = vld [vmem:[%s8 + $0x328] sm:$0xff]
        %v1847 = vld [vmem:[%s8 + $0x330] sm:$0xff]
        %v1848 = vld [vmem:[%s8 + $0x338] sm:$0xff]
        %v1849 = vld [vmem:[%s8 + $0x340] sm:$0xff]
        %v1850 = vld [vmem:[%s8 + $0x348] sm:$0xff]
        %v1851 = vld [vmem:[%s8 + $0x350] sm:$0xff]
        %v1852 = vld [vmem:[%s8 + $0x358] sm:$0xff]
        %v1853 = vld [vmem:[%s8 + $0x360] sm:$0xff]
        %v1854 = vld [vmem:[%s8 + $0x368] sm:$0xff]
        %v1855 = vld [vmem:[%s8 + $0x370] sm:$0xff]
        %v1856 = vld [vmem:[%s8 + $0x378] sm:$0xff]
        %v1857 = vld [vmem:[%s8 + $0x380] sm:$0xff]
        %v1858 = vld [vmem:[%s8 + $0x388] sm:$0xff]
        %v1859 = vld [vmem:[%s8 + $0x390] sm:$0xff]
        %v1860 = vld [vmem:[%s8 + $0x398] sm:$0xff]
        %v1861 = vld [vmem:[%s8 + $0x3a0] sm:$0xff]
        %v1862 = vld [vmem:[%s8 + $0x3a8] sm:$0xff]
        %v1863 = vld [vmem:[%s8 + $0x3b0] sm:$0xff]
        %v1864 = vld [vmem:[%s8 + $0x3b8] sm:$0xff]
        %v1865 = vld [vmem:[%s8 + $0x3c0] sm:$0xff]
        %v1866 = vld [vmem:[%s8 + $0x3c8] sm:$0xff]
        %v1867 = vld [vmem:[%s8 + $0x3d0] sm:$0xff]
        %v1868 = vld [vmem:[%s8 + $0x3d8] sm:$0xff]
        %v1869 = vld [vmem:[%s8 + $0x3e0] sm:$0xff]
        %v1870 = vld [vmem:[%s8 + $0x3e8] sm:$0xff]
        %v1871 = vld [vmem:[%s8 + $0x3f0] sm:$0xff]
        %v1872 = vld [vmem:[%s8 + $0x3f8] sm:$0xff]
        %v1873 = vld [vmem:[%s8 + $0x400] sm:$0xff]
        %v1874 = vld [vmem:[%s8 + $0x408] sm:$0xff]
        %v1875 = vld [vmem:[%s8 + $0x410] sm:$0xff]
        %v1876 = vld [vmem:[%s8 + $0x418] sm:$0xff]
        %v1877 = vld [vmem:[%s8 + $0x420] sm:$0xff]
        %v1878 = vld [vmem:[%s8 + $0x428] sm:$0xff]
        %v1879 = vld [vmem:[%s8 + $0x430] sm:$0xff]
        %v1880 = vld [vmem:[%s8 + $0x438] sm:$0xff]
        %v1881 = vld [vmem:[%s8 + $0x440] sm:$0xff]
        %v1882 = vld [vmem:[%s8 + $0x448] sm:$0xff]
        %v1883 = vld [vmem:[%s8 + $0x450] sm:$0xff]
        %v1884 = vld [vmem:[%s8 + $0x458] sm:$0xff]
        %v1885 = vld [vmem:[%s8 + $0x460] sm:$0xff]
        %v1886 = vld [vmem:[%s8 + $0x468] sm:$0xff]
        %v1887 = vld [vmem:[%s8 + $0x470] sm:$0xff]
        %v1888 = vld [vmem:[%s8 + $0x478] sm:$0xff]
        %v1889 = vld [vmem:[%s8 + $0x480] sm:$0xff]
        %v1890 = vld [vmem:[%s8 + $0x488] sm:$0xff]
        %v1891 = vld [vmem:[%s8 + $0x490] sm:$0xff]
        %v1892 = vld [vmem:[%s8 + $0x498] sm:$0xff]
        %v1893 = vld [vmem:[%s8 + $0x4a0] sm:$0xff]
        %v1894 = vld [vmem:[%s8 + $0x4a8] sm:$0xff]
        %v1895 = vld [vmem:[%s8 + $0x4b0] sm:$0xff]
        %v1896 = vld [vmem:[%s8 + $0x4b8] sm:$0xff]
        %v1897 = vld [vmem:[%s8 + $0x4c0] sm:$0xff]
        %v1898 = vld [vmem:[%s8 + $0x4c8] sm:$0xff]
        %v1899 = vld [vmem:[%s8 + $0x4d0] sm:$0xff]
        %v1900 = vld [vmem:[%s8 + $0x4d8] sm:$0xff]
        %v1901 = vld [vmem:[%s8 + $0x4e0] sm:$0xff]
        %v1902 = vld [vmem:[%s8 + $0x4e8] sm:$0xff]
        %v1903 = vld [vmem:[%s8 + $0x4f0] sm:$0xff]
        %v1904 = vld [vmem:[%s8 + $0x4f8] sm:$0xff]
        %v1905 = vld [vmem:[%s8 + $0x500] sm:$0xff]
        %v1906 = vld [vmem:[%s8 + $0x508] sm:$0xff]
        %v1907 = vld [vmem:[%s8 + $0x510] sm:$0xff]
        %v1908 = vld [vmem:[%s8 + $0x518] sm:$0xff]
        %v1909 = vld [vmem:[%s8 + $0x520] sm:$0xff]
        %v1910 = vld [vmem:[%s8 + $0x528] sm:$0xff]
        %v1911 = vld [vmem:[%s8 + $0x530] sm:$0xff]
        %v1912 = vld [vmem:[%s8 + $0x538] sm:$0xff]
        %v1913 = vld [vmem:[%s8 + $0x540] sm:$0xff]
        %v1914 = vld [vmem:[%s8 + $0x548] sm:$0xff]
        %v1915 = vld [vmem:[%s8 + $0x550] sm:$0xff]
        %v1916 = vld [vmem:[%s8 + $0x558] sm:$0xff]
        %v1917 = vld [vmem:[%s8 + $0x560] sm:$0xff]
        %v1918 = vld [vmem:[%s8 + $0x568] sm:$0xff]
        %v1919 = vld [vmem:[%s8 + $0x570] sm:$0xff]
        %v1920 = vld [vmem:[%s8 + $0x578] sm:$0xff]
        %v1921 = vld [vmem:[%s8 + $0x580] sm:$0xff]
        %v1922 = vld [vmem:[%s8 + $0x588] sm:$0xff]
        %v1923 = vld [vmem:[%s8 + $0x590] sm:$0xff]
        %v1924 = vld [vmem:[%s8 + $0x598] sm:$0xff]
        %v1925 = vld [vmem:[%s8 + $0x5a0] sm:$0xff]
        %v1926 = vld [vmem:[%s8 + $0x5a8] sm:$0xff]
        %v1927 = vld [vmem:[%s8 + $0x5b0] sm:$0xff]
        %v1928 = vld [vmem:[%s8 + $0x5b8] sm:$0xff]
        %v1929 = vld [vmem:[%s8 + $0x5c0] sm:$0xff]
        %v1930 = vld [vmem:[%s8 + $0x5c8] sm:$0xff]
        %v1931 = vld [vmem:[%s8 + $0x5d0] sm:$0xff]
        %v1932 = vld [vmem:[%s8 + $0x5d8] sm:$0xff]
        %v1933 = vld [vmem:[%s8 + $0x5e0] sm:$0xff]
        %v1934 = vld [vmem:[%s8 + $0x5e8] sm:$0xff]
        %v1935 = vld [vmem:[%s8 + $0x5f0] sm:$0xff]
        %v1936 = vld [vmem:[%s8 + $0x5f8] sm:$0xff]
        %v1937 = vld [vmem:[%s8 + $0x600] sm:$0xff]
        %v1938 = vld [vmem:[%s8 + $0x608] sm:$0xff]
        %v1939 = vld [vmem:[%s8 + $0x610] sm:$0xff]
        %v1940 = vld [vmem:[%s8 + $0x618] sm:$0xff]
        %v1941 = vld [vmem:[%s8 + $0x620] sm:$0xff]
        %v1942 = vld [vmem:[%s8 + $0x628] sm:$0xff]
        %v1943 = vld [vmem:[%s8 + $0x630] sm:$0xff]
        %v1944 = vld [vmem:[%s8 + $0x638] sm:$0xff]
        %v1945 = vld [vmem:[%s8 + $0x640] sm:$0xff]
        %v1946 = vld [vmem:[%s8 + $0x648] sm:$0xff]
        %v1947 = vld [vmem:[%s8 + $0x650] sm:$0xff]
        %v1948 = vld [vmem:[%s8 + $0x658] sm:$0xff]
        %v1949 = vld [vmem:[%s8 + $0x660] sm:$0xff]
        %v1950 = vld [vmem:[%s8 + $0x668] sm:$0xff]
        %v1951 = vld [vmem:[%s8 + $0x670] sm:$0xff]
        %v1952 = vld [vmem:[%s8 + $0x678] sm:$0xff]
        %v1953 = vld [vmem:[%s8 + $0x680] sm:$0xff]
        %v1954 = vld [vmem:[%s8 + $0x688] sm:$0xff]
        %v1955 = vld [vmem:[%s8 + $0x690] sm:$0xff]
        %v1956 = vld [vmem:[%s8 + $0x698] sm:$0xff]
        %v1957 = vld [vmem:[%s8 + $0x6a0] sm:$0xff]
        %v1958 = vld [vmem:[%s8 + $0x6a8] sm:$0xff]
        %v1959 = vld [vmem:[%s8 + $0x6b0] sm:$0xff]
        %v1960 = vld [vmem:[%s8 + $0x6b8] sm:$0xff]
        %v1961 = vld [vmem:[%s8 + $0x6c0] sm:$0xff]
        %v1962 = vld [vmem:[%s8 + $0x6c8] sm:$0xff]
        %v1963 = vld [vmem:[%s8 + $0x6d0] sm:$0xff]
        %v1964 = vld [vmem:[%s8 + $0x6d8] sm:$0xff]
        %v1965 = vld [vmem:[%s8 + $0x6e0] sm:$0xff]
        %v1966 = vld [vmem:[%s8 + $0x6e8] sm:$0xff]
        %v1967 = vld [vmem:[%s8 + $0x6f0] sm:$0xff]
        %v1968 = vld [vmem:[%s8 + $0x6f8] sm:$0xff]
        %v1969 = vld [vmem:[%s8 + $0x700] sm:$0xff]
        %v1970 = vld [vmem:[%s8 + $0x708] sm:$0xff]
        %v1971 = vld [vmem:[%s8 + $0x710] sm:$0xff]
        %v1972 = vld [vmem:[%s8 + $0x718] sm:$0xff]
        %v1973 = vld [vmem:[%s8 + $0x720] sm:$0xff]
        %v1974 = vld [vmem:[%s8 + $0x728] sm:$0xff]
        %v1975 = vld [vmem:[%s8 + $0x730] sm:$0xff]
        %v1976 = vld [vmem:[%s8 + $0x738] sm:$0xff]
        %v1977 = vld [vmem:[%s8 + $0x740] sm:$0xff]
        %v1978 = vld [vmem:[%s8 + $0x748] sm:$0xff]
        %v1979 = vld [vmem:[%s8 + $0x750] sm:$0xff]
        %v1980 = vld [vmem:[%s8 + $0x758] sm:$0xff]
        %v1981 = vld [vmem:[%s8 + $0x760] sm:$0xff]
        %v1982 = vld [vmem:[%s8 + $0x768] sm:$0xff]
        %v1983 = vld [vmem:[%s8 + $0x770] sm:$0xff]
        %v1984 = vld [vmem:[%s8 + $0x778] sm:$0xff]
        %v1985 = vld [vmem:[%s8 + $0x780] sm:$0xff]
        %v1986 = vld [vmem:[%s8 + $0x788] sm:$0xff]
        %v1987 = vld [vmem:[%s8 + $0x790] sm:$0xff]
        %v1988 = vld [vmem:[%s8 + $0x798] sm:$0xff]
        %v1989 = vld [vmem:[%s8 + $0x7a0] sm:$0xff]
        %v1990 = vld [vmem:[%s8 + $0x7a8] sm:$0xff]
        %v1991 = vld [vmem:[%s8 + $0x7b0] sm:$0xff]
        %v1992 = vld [vmem:[%s8 + $0x7b8] sm:$0xff]
        %v1993 = vld [vmem:[%s8 + $0x7c0] sm:$0xff]
        %v1994 = vld [vmem:[%s8 + $0x7c8] sm:$0xff]
        %v1995 = vld [vmem:[%s8 + $0x7d0] sm:$0xff]
        %v1996 = vld [vmem:[%s8 + $0x7d8] sm:$0xff]
        %v1997 = vld [vmem:[%s8 + $0x7e0] sm:$0xff]
        %v1998 = vld [vmem:[%s8 + $0x7e8] sm:$0xff]
        %v1999 = vld [vmem:[%s8 + $0x7f0] sm:$0xff]
        %v2000 = vld [vmem:[%s8 + $0x7f8] sm:$0xff]
        %v2001 = vld [vmem:[%s9] sm:$0x1]
        %v2003 = vlaneseq
        %v2004 = vshrl.u32 %v2003, 7
        %v2005 = vsub.s32 0, %v2004
        %v2006 = vrot.slane %v2001, %v2005
        %2008 = vmatprep.subr.mxu0 0.0
        %2009 = vmatpush1.msra.mxu0 %v1760
        %2010 = vmatprep.subr.mxu0 0.0
        %2011 = vmatpush1.msra.mxu0 %v1759
        %2012 = vmatprep.subr.mxu0 0.0
        %2013 = vmatpush1.msra.mxu0 %v1758
        %2014 = vmatprep.subr.mxu0 0.0
        %2015 = vmatpush1.msra.mxu0 %v1757
        %2016 = vmatprep.subr.mxu0 0.0
        %2017 = vmatpush1.msra.mxu0 %v1756
        %2018 = vmatprep.subr.mxu0 0.0
        %2019 = vmatpush1.msra.mxu0 %v1755
        %2020 = vmatprep.subr.mxu0 0.0
        %2021 = vmatpush1.msra.mxu0 %v1754
        %2022 = vmatprep.subr.mxu0 0.0
        %2023 = vmatpush1.msra.mxu0 %v1753
        %2024 = vmatprep.subr.mxu0 0.0
        %2025 = vmatpush1.msra.mxu0 %v1752
        %2026 = vmatprep.subr.mxu0 0.0
        %2027 = vmatpush1.msra.mxu0 %v1751
        %2028 = vmatprep.subr.mxu0 0.0
        %2029 = vmatpush1.msra.mxu0 %v1750
        %2030 = vmatprep.subr.mxu0 0.0
        %2031 = vmatpush1.msra.mxu0 %v1749
        %2032 = vmatprep.subr.mxu0 0.0
        %2033 = vmatpush1.msra.mxu0 %v1748
        %2034 = vmatprep.subr.mxu0 0.0
        %2035 = vmatpush1.msra.mxu0 %v1747
        %2036 = vmatprep.subr.mxu0 0.0
        %2037 = vmatpush1.msra.mxu0 %v1746
        %2038 = vmatprep.subr.mxu0 0.0
        %2039 = vmatpush1.msra.mxu0 %v1745
        %2040 = vmatprep.subr.mxu0 0.0
        %2041 = vmatpush2.msra.mxu0 %v1776
        %2042 = vmatprep.subr.mxu0 0.0
        %2043 = vmatpush2.msra.mxu0 %v1775
        %2044 = vmatprep.subr.mxu0 0.0
        %2045 = vmatpush2.msra.mxu0 %v1774
        %2046 = vmatprep.subr.mxu0 0.0
        %2047 = vmatpush2.msra.mxu0 %v1773
        %2048 = vmatprep.subr.mxu0 0.0
        %2049 = vmatpush2.msra.mxu0 %v1772
        %2050 = vmatprep.subr.mxu0 0.0
        %2051 = vmatpush2.msra.mxu0 %v1771
        %2052 = vmatprep.subr.mxu0 0.0
        %2053 = vmatpush2.msra.mxu0 %v1770
        %2054 = vmatprep.subr.mxu0 0.0
        %2055 = vmatpush2.msra.mxu0 %v1769
        %2056 = vmatprep.subr.mxu0 0.0
        %2057 = vmatpush2.msra.mxu0 %v1768
        %2058 = vmatprep.subr.mxu0 0.0
        %2059 = vmatpush2.msra.mxu0 %v1767
        %2060 = vmatprep.subr.mxu0 0.0
        %2061 = vmatpush2.msra.mxu0 %v1766
        %2062 = vmatprep.subr.mxu0 0.0
        %2063 = vmatpush2.msra.mxu0 %v1765
        %2064 = vmatprep.subr.mxu0 0.0
        %2065 = vmatpush2.msra.mxu0 %v1764
        %2066 = vmatprep.subr.mxu0 0.0
        %2067 = vmatpush2.msra.mxu0 %v1763
        %2068 = vmatprep.subr.mxu0 0.0
        %2069 = vmatpush2.msra.mxu0 %v1762
        %2070 = vmatprep.subr.mxu0 0.0
        %2071 = vmatpush2.msra.mxu0 %v1761
        %2072 = vmatprep.mubr.f32.mxu0 %v1730
        %2073 = vmatmul.mubr.f32.gmra.mxu0 %v1729
        %v2074 = vpop.f32.mrf.mxu0
        %v2075 = vadd.f32 %v2006, %v2074
        %v2076 = vpop.f32.mrf.mxu0
        %2077 = vdwg.mxu0
        %2078 = vmatprep.subr.mxu0 0.0
        %2079 = vmatpush1.msra.mxu0 %v1792
        %2080 = vmatprep.subr.mxu0 0.0
        %2081 = vmatpush1.msra.mxu0 %v1791
        %2082 = vmatprep.subr.mxu0 0.0
        %2083 = vmatpush1.msra.mxu0 %v1790
        %2084 = vmatprep.subr.mxu0 0.0
        %2085 = vmatpush1.msra.mxu0 %v1789
        %2086 = vmatprep.subr.mxu0 0.0
        %2087 = vmatpush1.msra.mxu0 %v1788
        %2088 = vmatprep.subr.mxu0 0.0
        %2089 = vmatpush1.msra.mxu0 %v1787
        %2090 = vmatprep.subr.mxu0 0.0
        %2091 = vmatpush1.msra.mxu0 %v1786
        %2092 = vmatprep.subr.mxu0 0.0
        %2093 = vmatpush1.msra.mxu0 %v1785
        %2094 = vmatprep.subr.mxu0 0.0
        %2095 = vmatpush1.msra.mxu0 %v1784
        %2096 = vmatprep.subr.mxu0 0.0
        %2097 = vmatpush1.msra.mxu0 %v1783
        %2098 = vmatprep.subr.mxu0 0.0
        %2099 = vmatpush1.msra.mxu0 %v1782
        %2100 = vmatprep.subr.mxu0 0.0
        %2101 = vmatpush1.msra.mxu0 %v1781
        %2102 = vmatprep.subr.mxu0 0.0
        %2103 = vmatpush1.msra.mxu0 %v1780
        %2104 = vmatprep.subr.mxu0 0.0
        %2105 = vmatpush1.msra.mxu0 %v1779
        %2106 = vmatprep.subr.mxu0 0.0
        %2107 = vmatpush1.msra.mxu0 %v1778
        %2108 = vmatprep.subr.mxu0 0.0
        %2109 = vmatpush1.msra.mxu0 %v1777
        %2110 = vmatprep.subr.mxu0 0.0
        %2111 = vmatpush2.msra.mxu0 %v1808
        %2112 = vmatprep.subr.mxu0 0.0
        %2113 = vmatpush2.msra.mxu0 %v1807
        %2114 = vmatprep.subr.mxu0 0.0
        %2115 = vmatpush2.msra.mxu0 %v1806
        %2116 = vmatprep.subr.mxu0 0.0
        %2117 = vmatpush2.msra.mxu0 %v1805
        %2118 = vmatprep.subr.mxu0 0.0
        %2119 = vmatpush2.msra.mxu0 %v1804
        %2120 = vmatprep.subr.mxu0 0.0
        %2121 = vmatpush2.msra.mxu0 %v1803
        %2122 = vmatprep.subr.mxu0 0.0
        %2123 = vmatpush2.msra.mxu0 %v1802
        %2124 = vmatprep.subr.mxu0 0.0
        %2125 = vmatpush2.msra.mxu0 %v1801
        %2126 = vmatprep.subr.mxu0 0.0
        %2127 = vmatpush2.msra.mxu0 %v1800
        %2128 = vmatprep.subr.mxu0 0.0
        %2129 = vmatpush2.msra.mxu0 %v1799
        %2130 = vmatprep.subr.mxu0 0.0
        %2131 = vmatpush2.msra.mxu0 %v1798
        %2132 = vmatprep.subr.mxu0 0.0
        %2133 = vmatpush2.msra.mxu0 %v1797
        %2134 = vmatprep.subr.mxu0 0.0
        %2135 = vmatpush2.msra.mxu0 %v1796
        %2136 = vmatprep.subr.mxu0 0.0
        %2137 = vmatpush2.msra.mxu0 %v1795
        %2138 = vmatprep.subr.mxu0 0.0
        %2139 = vmatpush2.msra.mxu0 %v1794
        %2140 = vmatprep.subr.mxu0 0.0
        %2141 = vmatpush2.msra.mxu0 %v1793
        %2142 = vmatprep.mubr.f32.mxu0 %v1732
        %2143 = vmatmul.mubr.f32.gmra.mxu0 %v1731
        %v2144 = vpop.f32.mrf.mxu0
        %v2145 = vadd.f32 %v2075, %v2144
        %v2146 = vpop.f32.mrf.mxu0
        %2147 = vdwg.mxu0
        %2148 = vmatprep.subr.mxu0 0.0
        %2149 = vmatpush1.msra.mxu0 %v1824
        %2150 = vmatprep.subr.mxu0 0.0
        %2151 = vmatpush1.msra.mxu0 %v1823
        %2152 = vmatprep.subr.mxu0 0.0
        %2153 = vmatpush1.msra.mxu0 %v1822
        %2154 = vmatprep.subr.mxu0 0.0
        %2155 = vmatpush1.msra.mxu0 %v1821
        %2156 = vmatprep.subr.mxu0 0.0
        %2157 = vmatpush1.msra.mxu0 %v1820
        %2158 = vmatprep.subr.mxu0 0.0
        %2159 = vmatpush1.msra.mxu0 %v1819
        %2160 = vmatprep.subr.mxu0 0.0
        %2161 = vmatpush1.msra.mxu0 %v1818
        %2162 = vmatprep.subr.mxu0 0.0
        %2163 = vmatpush1.msra.mxu0 %v1817
        %2164 = vmatprep.subr.mxu0 0.0
        %2165 = vmatpush1.msra.mxu0 %v1816
        %2166 = vmatprep.subr.mxu0 0.0
        %2167 = vmatpush1.msra.mxu0 %v1815
        %2168 = vmatprep.subr.mxu0 0.0
        %2169 = vmatpush1.msra.mxu0 %v1814
        %2170 = vmatprep.subr.mxu0 0.0
        %2171 = vmatpush1.msra.mxu0 %v1813
        %2172 = vmatprep.subr.mxu0 0.0
        %2173 = vmatpush1.msra.mxu0 %v1812
        %2174 = vmatprep.subr.mxu0 0.0
        %2175 = vmatpush1.msra.mxu0 %v1811
        %2176 = vmatprep.subr.mxu0 0.0
        %2177 = vmatpush1.msra.mxu0 %v1810
        %2178 = vmatprep.subr.mxu0 0.0
        %2179 = vmatpush1.msra.mxu0 %v1809
        %2180 = vmatprep.subr.mxu0 0.0
        %2181 = vmatpush2.msra.mxu0 %v1840
        %2182 = vmatprep.subr.mxu0 0.0
        %2183 = vmatpush2.msra.mxu0 %v1839
        %2184 = vmatprep.subr.mxu0 0.0
        %2185 = vmatpush2.msra.mxu0 %v1838
        %2186 = vmatprep.subr.mxu0 0.0
        %2187 = vmatpush2.msra.mxu0 %v1837
        %2188 = vmatprep.subr.mxu0 0.0
        %2189 = vmatpush2.msra.mxu0 %v1836
        %2190 = vmatprep.subr.mxu0 0.0
        %2191 = vmatpush2.msra.mxu0 %v1835
        %2192 = vmatprep.subr.mxu0 0.0
        %2193 = vmatpush2.msra.mxu0 %v1834
        %2194 = vmatprep.subr.mxu0 0.0
        %2195 = vmatpush2.msra.mxu0 %v1833
        %2196 = vmatprep.subr.mxu0 0.0
        %2197 = vmatpush2.msra.mxu0 %v1832
        %2198 = vmatprep.subr.mxu0 0.0
        %2199 = vmatpush2.msra.mxu0 %v1831
        %2200 = vmatprep.subr.mxu0 0.0
        %2201 = vmatpush2.msra.mxu0 %v1830
        %2202 = vmatprep.subr.mxu0 0.0
        %2203 = vmatpush2.msra.mxu0 %v1829
        %2204 = vmatprep.subr.mxu0 0.0
        %2205 = vmatpush2.msra.mxu0 %v1828
        %2206 = vmatprep.subr.mxu0 0.0
        %2207 = vmatpush2.msra.mxu0 %v1827
        %2208 = vmatprep.subr.mxu0 0.0
        %2209 = vmatpush2.msra.mxu0 %v1826
        %2210 = vmatprep.subr.mxu0 0.0
        %2211 = vmatpush2.msra.mxu0 %v1825
        %2212 = vmatprep.mubr.f32.mxu0 %v1734
        %2213 = vmatmul.mubr.f32.gmra.mxu0 %v1733
        %v2214 = vpop.f32.mrf.mxu0
        %v2215 = vadd.f32 %v2145, %v2214
        %v2216 = vpop.f32.mrf.mxu0
        %2217 = vdwg.mxu0
        %2218 = vmatprep.subr.mxu0 0.0
        %2219 = vmatpush1.msra.mxu0 %v1856
        %2220 = vmatprep.subr.mxu0 0.0
        %2221 = vmatpush1.msra.mxu0 %v1855
        %2222 = vmatprep.subr.mxu0 0.0
        %2223 = vmatpush1.msra.mxu0 %v1854
        %2224 = vmatprep.subr.mxu0 0.0
        %2225 = vmatpush1.msra.mxu0 %v1853
        %2226 = vmatprep.subr.mxu0 0.0
        %2227 = vmatpush1.msra.mxu0 %v1852
        %2228 = vmatprep.subr.mxu0 0.0
        %2229 = vmatpush1.msra.mxu0 %v1851
        %2230 = vmatprep.subr.mxu0 0.0
        %2231 = vmatpush1.msra.mxu0 %v1850
        %2232 = vmatprep.subr.mxu0 0.0
        %2233 = vmatpush1.msra.mxu0 %v1849
        %2234 = vmatprep.subr.mxu0 0.0
        %2235 = vmatpush1.msra.mxu0 %v1848
        %2236 = vmatprep.subr.mxu0 0.0
        %2237 = vmatpush1.msra.mxu0 %v1847
        %2238 = vmatprep.subr.mxu0 0.0
        %2239 = vmatpush1.msra.mxu0 %v1846
        %2240 = vmatprep.subr.mxu0 0.0
        %2241 = vmatpush1.msra.mxu0 %v1845
        %2242 = vmatprep.subr.mxu0 0.0
        %2243 = vmatpush1.msra.mxu0 %v1844
        %2244 = vmatprep.subr.mxu0 0.0
        %2245 = vmatpush1.msra.mxu0 %v1843
        %2246 = vmatprep.subr.mxu0 0.0
        %2247 = vmatpush1.msra.mxu0 %v1842
        %2248 = vmatprep.subr.mxu0 0.0
        %2249 = vmatpush1.msra.mxu0 %v1841
        %2250 = vmatprep.subr.mxu0 0.0
        %2251 = vmatpush2.msra.mxu0 %v1872
        %2252 = vmatprep.subr.mxu0 0.0
        %2253 = vmatpush2.msra.mxu0 %v1871
        %2254 = vmatprep.subr.mxu0 0.0
        %2255 = vmatpush2.msra.mxu0 %v1870
        %2256 = vmatprep.subr.mxu0 0.0
        %2257 = vmatpush2.msra.mxu0 %v1869
        %2258 = vmatprep.subr.mxu0 0.0
        %2259 = vmatpush2.msra.mxu0 %v1868
        %2260 = vmatprep.subr.mxu0 0.0
        %2261 = vmatpush2.msra.mxu0 %v1867
        %2262 = vmatprep.subr.mxu0 0.0
        %2263 = vmatpush2.msra.mxu0 %v1866
        %2264 = vmatprep.subr.mxu0 0.0
        %2265 = vmatpush2.msra.mxu0 %v1865
        %2266 = vmatprep.subr.mxu0 0.0
        %2267 = vmatpush2.msra.mxu0 %v1864
        %2268 = vmatprep.subr.mxu0 0.0
        %2269 = vmatpush2.msra.mxu0 %v1863
        %2270 = vmatprep.subr.mxu0 0.0
        %2271 = vmatpush2.msra.mxu0 %v1862
        %2272 = vmatprep.subr.mxu0 0.0
        %2273 = vmatpush2.msra.mxu0 %v1861
        %2274 = vmatprep.subr.mxu0 0.0
        %2275 = vmatpush2.msra.mxu0 %v1860
        %2276 = vmatprep.subr.mxu0 0.0
        %2277 = vmatpush2.msra.mxu0 %v1859
        %2278 = vmatprep.subr.mxu0 0.0
        %2279 = vmatpush2.msra.mxu0 %v1858
        %2280 = vmatprep.subr.mxu0 0.0
        %2281 = vmatpush2.msra.mxu0 %v1857
        %2282 = vmatprep.mubr.f32.mxu0 %v1736
        %2283 = vmatmul.mubr.f32.gmra.mxu0 %v1735
        %v2284 = vpop.f32.mrf.mxu0
        %v2285 = vadd.f32 %v2215, %v2284
        %v2286 = vpop.f32.mrf.mxu0
        %2287 = vdwg.mxu0
        %2288 = vmatprep.subr.mxu0 0.0
        %2289 = vmatpush1.msra.mxu0 %v1888
        %2290 = vmatprep.subr.mxu0 0.0
        %2291 = vmatpush1.msra.mxu0 %v1887
        %2292 = vmatprep.subr.mxu0 0.0
        %2293 = vmatpush1.msra.mxu0 %v1886
        %2294 = vmatprep.subr.mxu0 0.0
        %2295 = vmatpush1.msra.mxu0 %v1885
        %2296 = vmatprep.subr.mxu0 0.0
        %2297 = vmatpush1.msra.mxu0 %v1884
        %2298 = vmatprep.subr.mxu0 0.0
        %2299 = vmatpush1.msra.mxu0 %v1883
        %2300 = vmatprep.subr.mxu0 0.0
        %2301 = vmatpush1.msra.mxu0 %v1882
        %2302 = vmatprep.subr.mxu0 0.0
        %2303 = vmatpush1.msra.mxu0 %v1881
        %2304 = vmatprep.subr.mxu0 0.0
        %2305 = vmatpush1.msra.mxu0 %v1880
        %2306 = vmatprep.subr.mxu0 0.0
        %2307 = vmatpush1.msra.mxu0 %v1879
        %2308 = vmatprep.subr.mxu0 0.0
        %2309 = vmatpush1.msra.mxu0 %v1878
        %2310 = vmatprep.subr.mxu0 0.0
        %2311 = vmatpush1.msra.mxu0 %v1877
        %2312 = vmatprep.subr.mxu0 0.0
        %2313 = vmatpush1.msra.mxu0 %v1876
        %2314 = vmatprep.subr.mxu0 0.0
        %2315 = vmatpush1.msra.mxu0 %v1875
        %2316 = vmatprep.subr.mxu0 0.0
        %2317 = vmatpush1.msra.mxu0 %v1874
        %2318 = vmatprep.subr.mxu0 0.0
        %2319 = vmatpush1.msra.mxu0 %v1873
        %2320 = vmatprep.subr.mxu0 0.0
        %2321 = vmatpush2.msra.mxu0 %v1904
        %2322 = vmatprep.subr.mxu0 0.0
        %2323 = vmatpush2.msra.mxu0 %v1903
        %2324 = vmatprep.subr.mxu0 0.0
        %2325 = vmatpush2.msra.mxu0 %v1902
        %2326 = vmatprep.subr.mxu0 0.0
        %2327 = vmatpush2.msra.mxu0 %v1901
        %2328 = vmatprep.subr.mxu0 0.0
        %2329 = vmatpush2.msra.mxu0 %v1900
        %2330 = vmatprep.subr.mxu0 0.0
        %2331 = vmatpush2.msra.mxu0 %v1899
        %2332 = vmatprep.subr.mxu0 0.0
        %2333 = vmatpush2.msra.mxu0 %v1898
        %2334 = vmatprep.subr.mxu0 0.0
        %2335 = vmatpush2.msra.mxu0 %v1897
        %2336 = vmatprep.subr.mxu0 0.0
        %2337 = vmatpush2.msra.mxu0 %v1896
        %2338 = vmatprep.subr.mxu0 0.0
        %2339 = vmatpush2.msra.mxu0 %v1895
        %2340 = vmatprep.subr.mxu0 0.0
        %2341 = vmatpush2.msra.mxu0 %v1894
        %2342 = vmatprep.subr.mxu0 0.0
        %2343 = vmatpush2.msra.mxu0 %v1893
        %2344 = vmatprep.subr.mxu0 0.0
        %2345 = vmatpush2.msra.mxu0 %v1892
        %2346 = vmatprep.subr.mxu0 0.0
        %2347 = vmatpush2.msra.mxu0 %v1891
        %2348 = vmatprep.subr.mxu0 0.0
        %2349 = vmatpush2.msra.mxu0 %v1890
        %2350 = vmatprep.subr.mxu0 0.0
        %2351 = vmatpush2.msra.mxu0 %v1889
        %2352 = vmatprep.mubr.f32.mxu0 %v1738
        %2353 = vmatmul.mubr.f32.gmra.mxu0 %v1737
        %v2354 = vpop.f32.mrf.mxu0
        %v2355 = vadd.f32 %v2285, %v2354
        %v2356 = vpop.f32.mrf.mxu0
        %2357 = vdwg.mxu0
        %2358 = vmatprep.subr.mxu0 0.0
        %2359 = vmatpush1.msra.mxu0 %v1920
        %2360 = vmatprep.subr.mxu0 0.0
        %2361 = vmatpush1.msra.mxu0 %v1919
        %2362 = vmatprep.subr.mxu0 0.0
        %2363 = vmatpush1.msra.mxu0 %v1918
        %2364 = vmatprep.subr.mxu0 0.0
        %2365 = vmatpush1.msra.mxu0 %v1917
        %2366 = vmatprep.subr.mxu0 0.0
        %2367 = vmatpush1.msra.mxu0 %v1916
        %2368 = vmatprep.subr.mxu0 0.0
        %2369 = vmatpush1.msra.mxu0 %v1915
        %2370 = vmatprep.subr.mxu0 0.0
        %2371 = vmatpush1.msra.mxu0 %v1914
        %2372 = vmatprep.subr.mxu0 0.0
        %2373 = vmatpush1.msra.mxu0 %v1913
        %2374 = vmatprep.subr.mxu0 0.0
        %2375 = vmatpush1.msra.mxu0 %v1912
        %2376 = vmatprep.subr.mxu0 0.0
        %2377 = vmatpush1.msra.mxu0 %v1911
        %2378 = vmatprep.subr.mxu0 0.0
        %2379 = vmatpush1.msra.mxu0 %v1910
        %2380 = vmatprep.subr.mxu0 0.0
        %2381 = vmatpush1.msra.mxu0 %v1909
        %2382 = vmatprep.subr.mxu0 0.0
        %2383 = vmatpush1.msra.mxu0 %v1908
        %2384 = vmatprep.subr.mxu0 0.0
        %2385 = vmatpush1.msra.mxu0 %v1907
        %2386 = vmatprep.subr.mxu0 0.0
        %2387 = vmatpush1.msra.mxu0 %v1906
        %2388 = vmatprep.subr.mxu0 0.0
        %2389 = vmatpush1.msra.mxu0 %v1905
        %2390 = vmatprep.subr.mxu0 0.0
        %2391 = vmatpush2.msra.mxu0 %v1936
        %2392 = vmatprep.subr.mxu0 0.0
        %2393 = vmatpush2.msra.mxu0 %v1935
        %2394 = vmatprep.subr.mxu0 0.0
        %2395 = vmatpush2.msra.mxu0 %v1934
        %2396 = vmatprep.subr.mxu0 0.0
        %2397 = vmatpush2.msra.mxu0 %v1933
        %2398 = vmatprep.subr.mxu0 0.0
        %2399 = vmatpush2.msra.mxu0 %v1932
        %2400 = vmatprep.subr.mxu0 0.0
        %2401 = vmatpush2.msra.mxu0 %v1931
        %2402 = vmatprep.subr.mxu0 0.0
        %2403 = vmatpush2.msra.mxu0 %v1930
        %2404 = vmatprep.subr.mxu0 0.0
        %2405 = vmatpush2.msra.mxu0 %v1929
        %2406 = vmatprep.subr.mxu0 0.0
        %2407 = vmatpush2.msra.mxu0 %v1928
        %2408 = vmatprep.subr.mxu0 0.0
        %2409 = vmatpush2.msra.mxu0 %v1927
        %2410 = vmatprep.subr.mxu0 0.0
        %2411 = vmatpush2.msra.mxu0 %v1926
        %2412 = vmatprep.subr.mxu0 0.0
        %2413 = vmatpush2.msra.mxu0 %v1925
        %2414 = vmatprep.subr.mxu0 0.0
        %2415 = vmatpush2.msra.mxu0 %v1924
        %2416 = vmatprep.subr.mxu0 0.0
        %2417 = vmatpush2.msra.mxu0 %v1923
        %2418 = vmatprep.subr.mxu0 0.0
        %2419 = vmatpush2.msra.mxu0 %v1922
        %2420 = vmatprep.subr.mxu0 0.0
        %2421 = vmatpush2.msra.mxu0 %v1921
        %2422 = vmatprep.mubr.f32.mxu0 %v1740
        %2423 = vmatmul.mubr.f32.gmra.mxu0 %v1739
        %v2424 = vpop.f32.mrf.mxu0
        %v2425 = vadd.f32 %v2355, %v2424
        %v2426 = vpop.f32.mrf.mxu0
        %2427 = vdwg.mxu0
        %2428 = vmatprep.subr.mxu0 0.0
        %2429 = vmatpush1.msra.mxu0 %v1952
        %2430 = vmatprep.subr.mxu0 0.0
        %2431 = vmatpush1.msra.mxu0 %v1951
        %2432 = vmatprep.subr.mxu0 0.0
        %2433 = vmatpush1.msra.mxu0 %v1950
        %2434 = vmatprep.subr.mxu0 0.0
        %2435 = vmatpush1.msra.mxu0 %v1949
        %2436 = vmatprep.subr.mxu0 0.0
        %2437 = vmatpush1.msra.mxu0 %v1948
        %2438 = vmatprep.subr.mxu0 0.0
        %2439 = vmatpush1.msra.mxu0 %v1947
        %2440 = vmatprep.subr.mxu0 0.0
        %2441 = vmatpush1.msra.mxu0 %v1946
        %2442 = vmatprep.subr.mxu0 0.0
        %2443 = vmatpush1.msra.mxu0 %v1945
        %2444 = vmatprep.subr.mxu0 0.0
        %2445 = vmatpush1.msra.mxu0 %v1944
        %2446 = vmatprep.subr.mxu0 0.0
        %2447 = vmatpush1.msra.mxu0 %v1943
        %2448 = vmatprep.subr.mxu0 0.0
        %2449 = vmatpush1.msra.mxu0 %v1942
        %2450 = vmatprep.subr.mxu0 0.0
        %2451 = vmatpush1.msra.mxu0 %v1941
        %2452 = vmatprep.subr.mxu0 0.0
        %2453 = vmatpush1.msra.mxu0 %v1940
        %2454 = vmatprep.subr.mxu0 0.0
        %2455 = vmatpush1.msra.mxu0 %v1939
        %2456 = vmatprep.subr.mxu0 0.0
        %2457 = vmatpush1.msra.mxu0 %v1938
        %2458 = vmatprep.subr.mxu0 0.0
        %2459 = vmatpush1.msra.mxu0 %v1937
        %2460 = vmatprep.subr.mxu0 0.0
        %2461 = vmatpush2.msra.mxu0 %v1968
        %2462 = vmatprep.subr.mxu0 0.0
        %2463 = vmatpush2.msra.mxu0 %v1967
        %2464 = vmatprep.subr.mxu0 0.0
        %2465 = vmatpush2.msra.mxu0 %v1966
        %2466 = vmatprep.subr.mxu0 0.0
        %2467 = vmatpush2.msra.mxu0 %v1965
        %2468 = vmatprep.subr.mxu0 0.0
        %2469 = vmatpush2.msra.mxu0 %v1964
        %2470 = vmatprep.subr.mxu0 0.0
        %2471 = vmatpush2.msra.mxu0 %v1963
        %2472 = vmatprep.subr.mxu0 0.0
        %2473 = vmatpush2.msra.mxu0 %v1962
        %2474 = vmatprep.subr.mxu0 0.0
        %2475 = vmatpush2.msra.mxu0 %v1961
        %2476 = vmatprep.subr.mxu0 0.0
        %2477 = vmatpush2.msra.mxu0 %v1960
        %2478 = vmatprep.subr.mxu0 0.0
        %2479 = vmatpush2.msra.mxu0 %v1959
        %2480 = vmatprep.subr.mxu0 0.0
        %2481 = vmatpush2.msra.mxu0 %v1958
        %2482 = vmatprep.subr.mxu0 0.0
        %2483 = vmatpush2.msra.mxu0 %v1957
        %2484 = vmatprep.subr.mxu0 0.0
        %2485 = vmatpush2.msra.mxu0 %v1956
        %2486 = vmatprep.subr.mxu0 0.0
        %2487 = vmatpush2.msra.mxu0 %v1955
        %2488 = vmatprep.subr.mxu0 0.0
        %2489 = vmatpush2.msra.mxu0 %v1954
        %2490 = vmatprep.subr.mxu0 0.0
        %2491 = vmatpush2.msra.mxu0 %v1953
        %2492 = vmatprep.mubr.f32.mxu0 %v1742
        %2493 = vmatmul.mubr.f32.gmra.mxu0 %v1741
        %v2494 = vpop.f32.mrf.mxu0
        %v2495 = vadd.f32 %v2425, %v2494
        %v2496 = vpop.f32.mrf.mxu0
        %2497 = vdwg.mxu0
        %2498 = vmatprep.subr.mxu0 0.0
        %2499 = vmatpush1.msra.mxu0 %v1984
        %2500 = vmatprep.subr.mxu0 0.0
        %2501 = vmatpush1.msra.mxu0 %v1983
        %2502 = vmatprep.subr.mxu0 0.0
        %2503 = vmatpush1.msra.mxu0 %v1982
        %2504 = vmatprep.subr.mxu0 0.0
        %2505 = vmatpush1.msra.mxu0 %v1981
        %2506 = vmatprep.subr.mxu0 0.0
        %2507 = vmatpush1.msra.mxu0 %v1980
        %2508 = vmatprep.subr.mxu0 0.0
        %2509 = vmatpush1.msra.mxu0 %v1979
        %2510 = vmatprep.subr.mxu0 0.0
        %2511 = vmatpush1.msra.mxu0 %v1978
        %2512 = vmatprep.subr.mxu0 0.0
        %2513 = vmatpush1.msra.mxu0 %v1977
        %2514 = vmatprep.subr.mxu0 0.0
        %2515 = vmatpush1.msra.mxu0 %v1976
        %2516 = vmatprep.subr.mxu0 0.0
        %2517 = vmatpush1.msra.mxu0 %v1975
        %2518 = vmatprep.subr.mxu0 0.0
        %2519 = vmatpush1.msra.mxu0 %v1974
        %2520 = vmatprep.subr.mxu0 0.0
        %2521 = vmatpush1.msra.mxu0 %v1973
        %2522 = vmatprep.subr.mxu0 0.0
        %2523 = vmatpush1.msra.mxu0 %v1972
        %2524 = vmatprep.subr.mxu0 0.0
        %2525 = vmatpush1.msra.mxu0 %v1971
        %2526 = vmatprep.subr.mxu0 0.0
        %2527 = vmatpush1.msra.mxu0 %v1970
        %2528 = vmatprep.subr.mxu0 0.0
        %2529 = vmatpush1.msra.mxu0 %v1969
        %2530 = vmatprep.subr.mxu0 0.0
        %2531 = vmatpush2.msra.mxu0 %v2000
        %2532 = vmatprep.subr.mxu0 0.0
        %2533 = vmatpush2.msra.mxu0 %v1999
        %2534 = vmatprep.subr.mxu0 0.0
        %2535 = vmatpush2.msra.mxu0 %v1998
        %2536 = vmatprep.subr.mxu0 0.0
        %2537 = vmatpush2.msra.mxu0 %v1997
        %2538 = vmatprep.subr.mxu0 0.0
        %2539 = vmatpush2.msra.mxu0 %v1996
        %2540 = vmatprep.subr.mxu0 0.0
        %2541 = vmatpush2.msra.mxu0 %v1995
        %2542 = vmatprep.subr.mxu0 0.0
        %2543 = vmatpush2.msra.mxu0 %v1994
        %2544 = vmatprep.subr.mxu0 0.0
        %2545 = vmatpush2.msra.mxu0 %v1993
        %2546 = vmatprep.subr.mxu0 0.0
        %2547 = vmatpush2.msra.mxu0 %v1992
        %2548 = vmatprep.subr.mxu0 0.0
        %2549 = vmatpush2.msra.mxu0 %v1991
        %2550 = vmatprep.subr.mxu0 0.0
        %2551 = vmatpush2.msra.mxu0 %v1990
        %2552 = vmatprep.subr.mxu0 0.0
        %2553 = vmatpush2.msra.mxu0 %v1989
        %2554 = vmatprep.subr.mxu0 0.0
        %2555 = vmatpush2.msra.mxu0 %v1988
        %2556 = vmatprep.subr.mxu0 0.0
        %2557 = vmatpush2.msra.mxu0 %v1987
        %2558 = vmatprep.subr.mxu0 0.0
        %2559 = vmatpush2.msra.mxu0 %v1986
        %2560 = vmatprep.subr.mxu0 0.0
        %2561 = vmatpush2.msra.mxu0 %v1985
        %2562 = vmatprep.mubr.f32.mxu0 %v1744
        %2563 = vmatmul.mubr.f32.gmra.mxu0 %v1743
        %v2564 = vpop.f32.mrf.mxu0
        %v2565 = vadd.f32 %v2495, %v2564
        %v2566 = vpop.f32.mrf.mxu0
        %2567 = vdwg.mxu0
        %vm2568 = vcmask 520192
        %v2569 = vsel %vm2568, %v2565, 0.0
        %2570 = vadd.xlane.f32.xlu0 %v2569
        %v2571 = vpop.xlane.xlu0 %2570
        %v2572 = vrcp.pop 64.0
        %v2573 = vmul.f32 %v2571, %v2572
        %v2574 = vsub.f32 %v2565, %v2573
        %v2575 = vmul.f32 %v2574, %v2574
        %v2576 = vsel %vm2568, %v2575, 0.0
        %2577 = vadd.xlane.f32.xlu0 %v2576
        %v2578 = vpop.xlane.xlu0 %2577
        %v2579 = vmul.f32 %v2578, %v2572
        %v2580 = vadd.f32 %v2579, 1e-05
        %v2581 = vrsqrt.pop %v2580
        %v2582 = vmul.f32 %v2574, %v2581
        %v2583 = vld [vmem:[%s10] sm:$0x1]
        %v2585 = vlaneseq
        %v2586 = vshrl.u32 %v2585, 7
        %v2587 = vsub.s32 0, %v2586
        %v2588 = vrot.slane %v2583, %v2587
        %v2590 = vmul.f32 %v2582, %v2588
        %v2591 = vld [vmem:[%s11] sm:$0x1]
        %v2593 = vlaneseq
        %v2594 = vshrl.u32 %v2593, 7
        %v2595 = vsub.s32 0, %v2594
        %v2596 = vrot.slane %v2591, %v2595
        %v2598 = vadd.f32 %v2590, %v2596
        %v2599 = vmax.f32 %v2598, 0.0
        %v2600 = vld [vmem:[%s12] sm:$0xff]
        %v2601 = vld [vmem:[%s12 + $0x8] sm:$0xff]
        %v2602 = vld [vmem:[%s12 + $0x10] sm:$0xff]
        %v2603 = vld [vmem:[%s12 + $0x18] sm:$0xff]
        %v2604 = vld [vmem:[%s12 + $0x20] sm:$0xff]
        %v2605 = vld [vmem:[%s12 + $0x28] sm:$0xff]
        %v2606 = vld [vmem:[%s12 + $0x30] sm:$0xff]
        %v2607 = vld [vmem:[%s12 + $0x38] sm:$0xff]
        %v2608 = vld [vmem:[%s12 + $0x40] sm:$0xff]
        %v2609 = vld [vmem:[%s12 + $0x48] sm:$0xff]
        %v2610 = vld [vmem:[%s12 + $0x50] sm:$0xff]
        %v2611 = vld [vmem:[%s12 + $0x58] sm:$0xff]
        %v2612 = vld [vmem:[%s12 + $0x60] sm:$0xff]
        %v2613 = vld [vmem:[%s12 + $0x68] sm:$0xff]
        %v2614 = vld [vmem:[%s12 + $0x70] sm:$0xff]
        %v2615 = vld [vmem:[%s12 + $0x78] sm:$0xff]
        %v2616 = vld [vmem:[%s12 + $0x80] sm:$0xff]
        %v2617 = vld [vmem:[%s12 + $0x88] sm:$0xff]
        %v2618 = vld [vmem:[%s12 + $0x90] sm:$0xff]
        %v2619 = vld [vmem:[%s12 + $0x98] sm:$0xff]
        %v2620 = vld [vmem:[%s12 + $0xa0] sm:$0xff]
        %v2621 = vld [vmem:[%s12 + $0xa8] sm:$0xff]
        %v2622 = vld [vmem:[%s12 + $0xb0] sm:$0xff]
        %v2623 = vld [vmem:[%s12 + $0xb8] sm:$0xff]
        %v2624 = vld [vmem:[%s12 + $0xc0] sm:$0xff]
        %v2625 = vld [vmem:[%s12 + $0xc8] sm:$0xff]
        %v2626 = vld [vmem:[%s12 + $0xd0] sm:$0xff]
        %v2627 = vld [vmem:[%s12 + $0xd8] sm:$0xff]
        %v2628 = vld [vmem:[%s12 + $0xe0] sm:$0xff]
        %v2629 = vld [vmem:[%s12 + $0xe8] sm:$0xff]
        %v2630 = vld [vmem:[%s12 + $0xf0] sm:$0xff]
        %v2631 = vld [vmem:[%s12 + $0xf8] sm:$0xff]
        %v2632 = vld [vmem:[%s12 + $0x100] sm:$0xff]
        %v2633 = vld [vmem:[%s12 + $0x108] sm:$0xff]
        %v2634 = vld [vmem:[%s12 + $0x110] sm:$0xff]
        %v2635 = vld [vmem:[%s12 + $0x118] sm:$0xff]
        %v2636 = vld [vmem:[%s12 + $0x120] sm:$0xff]
        %v2637 = vld [vmem:[%s12 + $0x128] sm:$0xff]
        %v2638 = vld [vmem:[%s12 + $0x130] sm:$0xff]
        %v2639 = vld [vmem:[%s12 + $0x138] sm:$0xff]
        %v2640 = vld [vmem:[%s12 + $0x140] sm:$0xff]
        %v2641 = vld [vmem:[%s12 + $0x148] sm:$0xff]
        %v2642 = vld [vmem:[%s12 + $0x150] sm:$0xff]
        %v2643 = vld [vmem:[%s12 + $0x158] sm:$0xff]
        %v2644 = vld [vmem:[%s12 + $0x160] sm:$0xff]
        %v2645 = vld [vmem:[%s12 + $0x168] sm:$0xff]
        %v2646 = vld [vmem:[%s12 + $0x170] sm:$0xff]
        %v2647 = vld [vmem:[%s12 + $0x178] sm:$0xff]
        %v2648 = vld [vmem:[%s12 + $0x180] sm:$0xff]
        %v2649 = vld [vmem:[%s12 + $0x188] sm:$0xff]
        %v2650 = vld [vmem:[%s12 + $0x190] sm:$0xff]
        %v2651 = vld [vmem:[%s12 + $0x198] sm:$0xff]
        %v2652 = vld [vmem:[%s12 + $0x1a0] sm:$0xff]
        %v2653 = vld [vmem:[%s12 + $0x1a8] sm:$0xff]
        %v2654 = vld [vmem:[%s12 + $0x1b0] sm:$0xff]
        %v2655 = vld [vmem:[%s12 + $0x1b8] sm:$0xff]
        %v2656 = vld [vmem:[%s12 + $0x1c0] sm:$0xff]
        %v2657 = vld [vmem:[%s12 + $0x1c8] sm:$0xff]
        %v2658 = vld [vmem:[%s12 + $0x1d0] sm:$0xff]
        %v2659 = vld [vmem:[%s12 + $0x1d8] sm:$0xff]
        %v2660 = vld [vmem:[%s12 + $0x1e0] sm:$0xff]
        %v2661 = vld [vmem:[%s12 + $0x1e8] sm:$0xff]
        %v2662 = vld [vmem:[%s12 + $0x1f0] sm:$0xff]
        %v2663 = vld [vmem:[%s12 + $0x1f8] sm:$0xff]
        %v2664 = vld [vmem:[%s12 + $0x200] sm:$0xff]
        %v2665 = vld [vmem:[%s12 + $0x208] sm:$0xff]
        %v2666 = vld [vmem:[%s12 + $0x210] sm:$0xff]
        %v2667 = vld [vmem:[%s12 + $0x218] sm:$0xff]
        %v2668 = vld [vmem:[%s12 + $0x220] sm:$0xff]
        %v2669 = vld [vmem:[%s12 + $0x228] sm:$0xff]
        %v2670 = vld [vmem:[%s12 + $0x230] sm:$0xff]
        %v2671 = vld [vmem:[%s12 + $0x238] sm:$0xff]
        %v2672 = vld [vmem:[%s12 + $0x240] sm:$0xff]
        %v2673 = vld [vmem:[%s12 + $0x248] sm:$0xff]
        %v2674 = vld [vmem:[%s12 + $0x250] sm:$0xff]
        %v2675 = vld [vmem:[%s12 + $0x258] sm:$0xff]
        %v2676 = vld [vmem:[%s12 + $0x260] sm:$0xff]
        %v2677 = vld [vmem:[%s12 + $0x268] sm:$0xff]
        %v2678 = vld [vmem:[%s12 + $0x270] sm:$0xff]
        %v2679 = vld [vmem:[%s12 + $0x278] sm:$0xff]
        %v2680 = vld [vmem:[%s12 + $0x280] sm:$0xff]
        %v2681 = vld [vmem:[%s12 + $0x288] sm:$0xff]
        %v2682 = vld [vmem:[%s12 + $0x290] sm:$0xff]
        %v2683 = vld [vmem:[%s12 + $0x298] sm:$0xff]
        %v2684 = vld [vmem:[%s12 + $0x2a0] sm:$0xff]
        %v2685 = vld [vmem:[%s12 + $0x2a8] sm:$0xff]
        %v2686 = vld [vmem:[%s12 + $0x2b0] sm:$0xff]
        %v2687 = vld [vmem:[%s12 + $0x2b8] sm:$0xff]
        %v2688 = vld [vmem:[%s12 + $0x2c0] sm:$0xff]
        %v2689 = vld [vmem:[%s12 + $0x2c8] sm:$0xff]
        %v2690 = vld [vmem:[%s12 + $0x2d0] sm:$0xff]
        %v2691 = vld [vmem:[%s12 + $0x2d8] sm:$0xff]
        %v2692 = vld [vmem:[%s12 + $0x2e0] sm:$0xff]
        %v2693 = vld [vmem:[%s12 + $0x2e8] sm:$0xff]
        %v2694 = vld [vmem:[%s12 + $0x2f0] sm:$0xff]
        %v2695 = vld [vmem:[%s12 + $0x2f8] sm:$0xff]
        %v2696 = vld [vmem:[%s12 + $0x300] sm:$0xff]
        %v2697 = vld [vmem:[%s12 + $0x308] sm:$0xff]
        %v2698 = vld [vmem:[%s12 + $0x310] sm:$0xff]
        %v2699 = vld [vmem:[%s12 + $0x318] sm:$0xff]
        %v2700 = vld [vmem:[%s12 + $0x320] sm:$0xff]
        %v2701 = vld [vmem:[%s12 + $0x328] sm:$0xff]
        %v2702 = vld [vmem:[%s12 + $0x330] sm:$0xff]
        %v2703 = vld [vmem:[%s12 + $0x338] sm:$0xff]
        %v2704 = vld [vmem:[%s12 + $0x340] sm:$0xff]
        %v2705 = vld [vmem:[%s12 + $0x348] sm:$0xff]
        %v2706 = vld [vmem:[%s12 + $0x350] sm:$0xff]
        %v2707 = vld [vmem:[%s12 + $0x358] sm:$0xff]
        %v2708 = vld [vmem:[%s12 + $0x360] sm:$0xff]
        %v2709 = vld [vmem:[%s12 + $0x368] sm:$0xff]
        %v2710 = vld [vmem:[%s12 + $0x370] sm:$0xff]
        %v2711 = vld [vmem:[%s12 + $0x378] sm:$0xff]
        %v2712 = vld [vmem:[%s12 + $0x380] sm:$0xff]
        %v2713 = vld [vmem:[%s12 + $0x388] sm:$0xff]
        %v2714 = vld [vmem:[%s12 + $0x390] sm:$0xff]
        %v2715 = vld [vmem:[%s12 + $0x398] sm:$0xff]
        %v2716 = vld [vmem:[%s12 + $0x3a0] sm:$0xff]
        %v2717 = vld [vmem:[%s12 + $0x3a8] sm:$0xff]
        %v2718 = vld [vmem:[%s12 + $0x3b0] sm:$0xff]
        %v2719 = vld [vmem:[%s12 + $0x3b8] sm:$0xff]
        %v2720 = vld [vmem:[%s12 + $0x3c0] sm:$0xff]
        %v2721 = vld [vmem:[%s12 + $0x3c8] sm:$0xff]
        %v2722 = vld [vmem:[%s12 + $0x3d0] sm:$0xff]
        %v2723 = vld [vmem:[%s12 + $0x3d8] sm:$0xff]
        %v2724 = vld [vmem:[%s12 + $0x3e0] sm:$0xff]
        %v2725 = vld [vmem:[%s12 + $0x3e8] sm:$0xff]
        %v2726 = vld [vmem:[%s12 + $0x3f0] sm:$0xff]
        %v2727 = vld [vmem:[%s12 + $0x3f8] sm:$0xff]
        %v2728 = vld [vmem:[%s12 + $0x400] sm:$0xff]
        %v2729 = vld [vmem:[%s12 + $0x408] sm:$0xff]
        %v2730 = vld [vmem:[%s12 + $0x410] sm:$0xff]
        %v2731 = vld [vmem:[%s12 + $0x418] sm:$0xff]
        %v2732 = vld [vmem:[%s12 + $0x420] sm:$0xff]
        %v2733 = vld [vmem:[%s12 + $0x428] sm:$0xff]
        %v2734 = vld [vmem:[%s12 + $0x430] sm:$0xff]
        %v2735 = vld [vmem:[%s12 + $0x438] sm:$0xff]
        %v2736 = vld [vmem:[%s12 + $0x440] sm:$0xff]
        %v2737 = vld [vmem:[%s12 + $0x448] sm:$0xff]
        %v2738 = vld [vmem:[%s12 + $0x450] sm:$0xff]
        %v2739 = vld [vmem:[%s12 + $0x458] sm:$0xff]
        %v2740 = vld [vmem:[%s12 + $0x460] sm:$0xff]
        %v2741 = vld [vmem:[%s12 + $0x468] sm:$0xff]
        %v2742 = vld [vmem:[%s12 + $0x470] sm:$0xff]
        %v2743 = vld [vmem:[%s12 + $0x478] sm:$0xff]
        %v2744 = vld [vmem:[%s12 + $0x480] sm:$0xff]
        %v2745 = vld [vmem:[%s12 + $0x488] sm:$0xff]
        %v2746 = vld [vmem:[%s12 + $0x490] sm:$0xff]
        %v2747 = vld [vmem:[%s12 + $0x498] sm:$0xff]
        %v2748 = vld [vmem:[%s12 + $0x4a0] sm:$0xff]
        %v2749 = vld [vmem:[%s12 + $0x4a8] sm:$0xff]
        %v2750 = vld [vmem:[%s12 + $0x4b0] sm:$0xff]
        %v2751 = vld [vmem:[%s12 + $0x4b8] sm:$0xff]
        %v2752 = vld [vmem:[%s12 + $0x4c0] sm:$0xff]
        %v2753 = vld [vmem:[%s12 + $0x4c8] sm:$0xff]
        %v2754 = vld [vmem:[%s12 + $0x4d0] sm:$0xff]
        %v2755 = vld [vmem:[%s12 + $0x4d8] sm:$0xff]
        %v2756 = vld [vmem:[%s12 + $0x4e0] sm:$0xff]
        %v2757 = vld [vmem:[%s12 + $0x4e8] sm:$0xff]
        %v2758 = vld [vmem:[%s12 + $0x4f0] sm:$0xff]
        %v2759 = vld [vmem:[%s12 + $0x4f8] sm:$0xff]
        %v2760 = vld [vmem:[%s12 + $0x500] sm:$0xff]
        %v2761 = vld [vmem:[%s12 + $0x508] sm:$0xff]
        %v2762 = vld [vmem:[%s12 + $0x510] sm:$0xff]
        %v2763 = vld [vmem:[%s12 + $0x518] sm:$0xff]
        %v2764 = vld [vmem:[%s12 + $0x520] sm:$0xff]
        %v2765 = vld [vmem:[%s12 + $0x528] sm:$0xff]
        %v2766 = vld [vmem:[%s12 + $0x530] sm:$0xff]
        %v2767 = vld [vmem:[%s12 + $0x538] sm:$0xff]
        %v2768 = vld [vmem:[%s12 + $0x540] sm:$0xff]
        %v2769 = vld [vmem:[%s12 + $0x548] sm:$0xff]
        %v2770 = vld [vmem:[%s12 + $0x550] sm:$0xff]
        %v2771 = vld [vmem:[%s12 + $0x558] sm:$0xff]
        %v2772 = vld [vmem:[%s12 + $0x560] sm:$0xff]
        %v2773 = vld [vmem:[%s12 + $0x568] sm:$0xff]
        %v2774 = vld [vmem:[%s12 + $0x570] sm:$0xff]
        %v2775 = vld [vmem:[%s12 + $0x578] sm:$0xff]
        %v2776 = vld [vmem:[%s12 + $0x580] sm:$0xff]
        %v2777 = vld [vmem:[%s12 + $0x588] sm:$0xff]
        %v2778 = vld [vmem:[%s12 + $0x590] sm:$0xff]
        %v2779 = vld [vmem:[%s12 + $0x598] sm:$0xff]
        %v2780 = vld [vmem:[%s12 + $0x5a0] sm:$0xff]
        %v2781 = vld [vmem:[%s12 + $0x5a8] sm:$0xff]
        %v2782 = vld [vmem:[%s12 + $0x5b0] sm:$0xff]
        %v2783 = vld [vmem:[%s12 + $0x5b8] sm:$0xff]
        %v2784 = vld [vmem:[%s12 + $0x5c0] sm:$0xff]
        %v2785 = vld [vmem:[%s12 + $0x5c8] sm:$0xff]
        %v2786 = vld [vmem:[%s12 + $0x5d0] sm:$0xff]
        %v2787 = vld [vmem:[%s12 + $0x5d8] sm:$0xff]
        %v2788 = vld [vmem:[%s12 + $0x5e0] sm:$0xff]
        %v2789 = vld [vmem:[%s12 + $0x5e8] sm:$0xff]
        %v2790 = vld [vmem:[%s12 + $0x5f0] sm:$0xff]
        %v2791 = vld [vmem:[%s12 + $0x5f8] sm:$0xff]
        %v2792 = vld [vmem:[%s12 + $0x600] sm:$0xff]
        %v2793 = vld [vmem:[%s12 + $0x608] sm:$0xff]
        %v2794 = vld [vmem:[%s12 + $0x610] sm:$0xff]
        %v2795 = vld [vmem:[%s12 + $0x618] sm:$0xff]
        %v2796 = vld [vmem:[%s12 + $0x620] sm:$0xff]
        %v2797 = vld [vmem:[%s12 + $0x628] sm:$0xff]
        %v2798 = vld [vmem:[%s12 + $0x630] sm:$0xff]
        %v2799 = vld [vmem:[%s12 + $0x638] sm:$0xff]
        %v2800 = vld [vmem:[%s12 + $0x640] sm:$0xff]
        %v2801 = vld [vmem:[%s12 + $0x648] sm:$0xff]
        %v2802 = vld [vmem:[%s12 + $0x650] sm:$0xff]
        %v2803 = vld [vmem:[%s12 + $0x658] sm:$0xff]
        %v2804 = vld [vmem:[%s12 + $0x660] sm:$0xff]
        %v2805 = vld [vmem:[%s12 + $0x668] sm:$0xff]
        %v2806 = vld [vmem:[%s12 + $0x670] sm:$0xff]
        %v2807 = vld [vmem:[%s12 + $0x678] sm:$0xff]
        %v2808 = vld [vmem:[%s12 + $0x680] sm:$0xff]
        %v2809 = vld [vmem:[%s12 + $0x688] sm:$0xff]
        %v2810 = vld [vmem:[%s12 + $0x690] sm:$0xff]
        %v2811 = vld [vmem:[%s12 + $0x698] sm:$0xff]
        %v2812 = vld [vmem:[%s12 + $0x6a0] sm:$0xff]
        %v2813 = vld [vmem:[%s12 + $0x6a8] sm:$0xff]
        %v2814 = vld [vmem:[%s12 + $0x6b0] sm:$0xff]
        %v2815 = vld [vmem:[%s12 + $0x6b8] sm:$0xff]
        %v2816 = vld [vmem:[%s12 + $0x6c0] sm:$0xff]
        %v2817 = vld [vmem:[%s12 + $0x6c8] sm:$0xff]
        %v2818 = vld [vmem:[%s12 + $0x6d0] sm:$0xff]
        %v2819 = vld [vmem:[%s12 + $0x6d8] sm:$0xff]
        %v2820 = vld [vmem:[%s12 + $0x6e0] sm:$0xff]
        %v2821 = vld [vmem:[%s12 + $0x6e8] sm:$0xff]
        %v2822 = vld [vmem:[%s12 + $0x6f0] sm:$0xff]
        %v2823 = vld [vmem:[%s12 + $0x6f8] sm:$0xff]
        %v2824 = vld [vmem:[%s12 + $0x700] sm:$0xff]
        %v2825 = vld [vmem:[%s12 + $0x708] sm:$0xff]
        %v2826 = vld [vmem:[%s12 + $0x710] sm:$0xff]
        %v2827 = vld [vmem:[%s12 + $0x718] sm:$0xff]
        %v2828 = vld [vmem:[%s12 + $0x720] sm:$0xff]
        %v2829 = vld [vmem:[%s12 + $0x728] sm:$0xff]
        %v2830 = vld [vmem:[%s12 + $0x730] sm:$0xff]
        %v2831 = vld [vmem:[%s12 + $0x738] sm:$0xff]
        %v2832 = vld [vmem:[%s12 + $0x740] sm:$0xff]
        %v2833 = vld [vmem:[%s12 + $0x748] sm:$0xff]
        %v2834 = vld [vmem:[%s12 + $0x750] sm:$0xff]
        %v2835 = vld [vmem:[%s12 + $0x758] sm:$0xff]
        %v2836 = vld [vmem:[%s12 + $0x760] sm:$0xff]
        %v2837 = vld [vmem:[%s12 + $0x768] sm:$0xff]
        %v2838 = vld [vmem:[%s12 + $0x770] sm:$0xff]
        %v2839 = vld [vmem:[%s12 + $0x778] sm:$0xff]
        %v2840 = vld [vmem:[%s12 + $0x780] sm:$0xff]
        %v2841 = vld [vmem:[%s12 + $0x788] sm:$0xff]
        %v2842 = vld [vmem:[%s12 + $0x790] sm:$0xff]
        %v2843 = vld [vmem:[%s12 + $0x798] sm:$0xff]
        %v2844 = vld [vmem:[%s12 + $0x7a0] sm:$0xff]
        %v2845 = vld [vmem:[%s12 + $0x7a8] sm:$0xff]
        %v2846 = vld [vmem:[%s12 + $0x7b0] sm:$0xff]
        %v2847 = vld [vmem:[%s12 + $0x7b8] sm:$0xff]
        %v2848 = vld [vmem:[%s12 + $0x7c0] sm:$0xff]
        %v2849 = vld [vmem:[%s12 + $0x7c8] sm:$0xff]
        %v2850 = vld [vmem:[%s12 + $0x7d0] sm:$0xff]
        %v2851 = vld [vmem:[%s12 + $0x7d8] sm:$0xff]
        %v2852 = vld [vmem:[%s12 + $0x7e0] sm:$0xff]
        %v2853 = vld [vmem:[%s12 + $0x7e8] sm:$0xff]
        %v2854 = vld [vmem:[%s12 + $0x7f0] sm:$0xff]
        %v2855 = vld [vmem:[%s12 + $0x7f8] sm:$0xff]
        %2856 = vmatprep.subr.mxu0 %v2661
        %2857 = vmatpush1.msra.mxu0 %v2660
        %2858 = vmatprep.subr.mxu0 %v2657
        %2859 = vmatpush1.msra.mxu0 %v2656
        %2860 = vmatprep.subr.mxu0 %v2653
        %2861 = vmatpush1.msra.mxu0 %v2652
        %2862 = vmatprep.subr.mxu0 %v2649
        %2863 = vmatpush1.msra.mxu0 %v2648
        %2864 = vmatprep.subr.mxu0 %v2645
        %2865 = vmatpush1.msra.mxu0 %v2644
        %2866 = vmatprep.subr.mxu0 %v2641
        %2867 = vmatpush1.msra.mxu0 %v2640
        %2868 = vmatprep.subr.mxu0 %v2637
        %2869 = vmatpush1.msra.mxu0 %v2636
        %2870 = vmatprep.subr.mxu0 %v2633
        %2871 = vmatpush1.msra.mxu0 %v2632
        %2872 = vmatprep.subr.mxu0 %v2629
        %2873 = vmatpush1.msra.mxu0 %v2628
        %2874 = vmatprep.subr.mxu0 %v2625
        %2875 = vmatpush1.msra.mxu0 %v2624
        %2876 = vmatprep.subr.mxu0 %v2621
        %2877 = vmatpush1.msra.mxu0 %v2620
        %2878 = vmatprep.subr.mxu0 %v2617
        %2879 = vmatpush1.msra.mxu0 %v2616
        %2880 = vmatprep.subr.mxu0 %v2613
        %2881 = vmatpush1.msra.mxu0 %v2612
        %2882 = vmatprep.subr.mxu0 %v2609
        %2883 = vmatpush1.msra.mxu0 %v2608
        %2884 = vmatprep.subr.mxu0 %v2605
        %2885 = vmatpush1.msra.mxu0 %v2604
        %2886 = vmatprep.subr.mxu0 %v2601
        %2887 = vmatpush1.msra.mxu0 %v2600
        %2888 = vmatprep.subr.mxu0 %v2725
        %2889 = vmatpush2.msra.mxu0 %v2724
        %2890 = vmatprep.subr.mxu0 %v2721
        %2891 = vmatpush2.msra.mxu0 %v2720
        %2892 = vmatprep.subr.mxu0 %v2717
        %2893 = vmatpush2.msra.mxu0 %v2716
        %2894 = vmatprep.subr.mxu0 %v2713
        %2895 = vmatpush2.msra.mxu0 %v2712
        %2896 = vmatprep.subr.mxu0 %v2709
        %2897 = vmatpush2.msra.mxu0 %v2708
        %2898 = vmatprep.subr.mxu0 %v2705
        %2899 = vmatpush2.msra.mxu0 %v2704
        %2900 = vmatprep.subr.mxu0 %v2701
        %2901 = vmatpush2.msra.mxu0 %v2700
        %2902 = vmatprep.subr.mxu0 %v2697
        %2903 = vmatpush2.msra.mxu0 %v2696
        %2904 = vmatprep.subr.mxu0 %v2693
        %2905 = vmatpush2.msra.mxu0 %v2692
        %2906 = vmatprep.subr.mxu0 %v2689
        %2907 = vmatpush2.msra.mxu0 %v2688
        %2908 = vmatprep.subr.mxu0 %v2685
        %2909 = vmatpush2.msra.mxu0 %v2684
        %2910 = vmatprep.subr.mxu0 %v2681
        %2911 = vmatpush2.msra.mxu0 %v2680
        %2912 = vmatprep.subr.mxu0 %v2677
        %2913 = vmatpush2.msra.mxu0 %v2676
        %2914 = vmatprep.subr.mxu0 %v2673
        %2915 = vmatpush2.msra.mxu0 %v2672
        %2916 = vmatprep.subr.mxu0 %v2669
        %2917 = vmatpush2.msra.mxu0 %v2668
        %2918 = vmatprep.subr.mxu0 %v2665
        %2919 = vmatpush2.msra.mxu0 %v2664
        %2920 = vmatprep.mubr.f32.mxu0 %v1656
        %2921 = vmatmul.mubr.f32.gmra.mxu0 %v1654
        %v2922 = vpop.f32.mrf.mxu0
        %v2923 = vadd.f32 0.0, %v2922
        %v2924 = vpop.f32.mrf.mxu0
        %v2925 = vadd.f32 0.0, %v2924
        %2926 = vdwg.mxu0
        %2927 = vmatprep.subr.mxu0 %v2789
        %2928 = vmatpush1.msra.mxu0 %v2788
        %2929 = vmatprep.subr.mxu0 %v2785
        %2930 = vmatpush1.msra.mxu0 %v2784
        %2931 = vmatprep.subr.mxu0 %v2781
        %2932 = vmatpush1.msra.mxu0 %v2780
        %2933 = vmatprep.subr.mxu0 %v2777
        %2934 = vmatpush1.msra.mxu0 %v2776
        %2935 = vmatprep.subr.mxu0 %v2773
        %2936 = vmatpush1.msra.mxu0 %v2772
        %2937 = vmatprep.subr.mxu0 %v2769
        %2938 = vmatpush1.msra.mxu0 %v2768
        %2939 = vmatprep.subr.mxu0 %v2765
        %2940 = vmatpush1.msra.mxu0 %v2764
        %2941 = vmatprep.subr.mxu0 %v2761
        %2942 = vmatpush1.msra.mxu0 %v2760
        %2943 = vmatprep.subr.mxu0 %v2757
        %2944 = vmatpush1.msra.mxu0 %v2756
        %2945 = vmatprep.subr.mxu0 %v2753
        %2946 = vmatpush1.msra.mxu0 %v2752
        %2947 = vmatprep.subr.mxu0 %v2749
        %2948 = vmatpush1.msra.mxu0 %v2748
        %2949 = vmatprep.subr.mxu0 %v2745
        %2950 = vmatpush1.msra.mxu0 %v2744
        %2951 = vmatprep.subr.mxu0 %v2741
        %2952 = vmatpush1.msra.mxu0 %v2740
        %2953 = vmatprep.subr.mxu0 %v2737
        %2954 = vmatpush1.msra.mxu0 %v2736
        %2955 = vmatprep.subr.mxu0 %v2733
        %2956 = vmatpush1.msra.mxu0 %v2732
        %2957 = vmatprep.subr.mxu0 %v2729
        %2958 = vmatpush1.msra.mxu0 %v2728
        %2959 = vmatprep.subr.mxu0 %v2853
        %2960 = vmatpush2.msra.mxu0 %v2852
        %2961 = vmatprep.subr.mxu0 %v2849
        %2962 = vmatpush2.msra.mxu0 %v2848
        %2963 = vmatprep.subr.mxu0 %v2845
        %2964 = vmatpush2.msra.mxu0 %v2844
        %2965 = vmatprep.subr.mxu0 %v2841
        %2966 = vmatpush2.msra.mxu0 %v2840
        %2967 = vmatprep.subr.mxu0 %v2837
        %2968 = vmatpush2.msra.mxu0 %v2836
        %2969 = vmatprep.subr.mxu0 %v2833
        %2970 = vmatpush2.msra.mxu0 %v2832
        %2971 = vmatprep.subr.mxu0 %v2829
        %2972 = vmatpush2.msra.mxu0 %v2828
        %2973 = vmatprep.subr.mxu0 %v2825
        %2974 = vmatpush2.msra.mxu0 %v2824
        %2975 = vmatprep.subr.mxu0 %v2821
        %2976 = vmatpush2.msra.mxu0 %v2820
        %2977 = vmatprep.subr.mxu0 %v2817
        %2978 = vmatpush2.msra.mxu0 %v2816
        %2979 = vmatprep.subr.mxu0 %v2813
        %2980 = vmatpush2.msra.mxu0 %v2812
        %2981 = vmatprep.subr.mxu0 %v2809
        %2982 = vmatpush2.msra.mxu0 %v2808
        %2983 = vmatprep.subr.mxu0 %v2805
        %2984 = vmatpush2.msra.mxu0 %v2804
        %2985 = vmatprep.subr.mxu0 %v2801
        %2986 = vmatpush2.msra.mxu0 %v2800
        %2987 = vmatprep.subr.mxu0 %v2797
        %2988 = vmatpush2.msra.mxu0 %v2796
        %2989 = vmatprep.subr.mxu0 %v2793
        %2990 = vmatpush2.msra.mxu0 %v2792
        %2991 = vmatprep.mubr.f32.mxu0 %v1727
        %2992 = vmatmul.mubr.f32.gmra.mxu0 %v1725
        %v2993 = vpop.f32.mrf.mxu0
        %v2994 = vadd.f32 %v2923, %v2993
        %v2995 = vpop.f32.mrf.mxu0
        %v2996 = vadd.f32 %v2925, %v2995
        %2997 = vdwg.mxu0
        %2998 = vmatprep.subr.mxu0 %v2663
        %2999 = vmatpush1.msra.mxu0 %v2662
        %3000 = vmatprep.subr.mxu0 %v2659
        %3001 = vmatpush1.msra.mxu0 %v2658
        %3002 = vmatprep.subr.mxu0 %v2655
        %3003 = vmatpush1.msra.mxu0 %v2654
        %3004 = vmatprep.subr.mxu0 %v2651
        %3005 = vmatpush1.msra.mxu0 %v2650
        %3006 = vmatprep.subr.mxu0 %v2647
        %3007 = vmatpush1.msra.mxu0 %v2646
        %3008 = vmatprep.subr.mxu0 %v2643
        %3009 = vmatpush1.msra.mxu0 %v2642
        %3010 = vmatprep.subr.mxu0 %v2639
        %3011 = vmatpush1.msra.mxu0 %v2638
        %3012 = vmatprep.subr.mxu0 %v2635
        %3013 = vmatpush1.msra.mxu0 %v2634
        %3014 = vmatprep.subr.mxu0 %v2631
        %3015 = vmatpush1.msra.mxu0 %v2630
        %3016 = vmatprep.subr.mxu0 %v2627
        %3017 = vmatpush1.msra.mxu0 %v2626
        %3018 = vmatprep.subr.mxu0 %v2623
        %3019 = vmatpush1.msra.mxu0 %v2622
        %3020 = vmatprep.subr.mxu0 %v2619
        %3021 = vmatpush1.msra.mxu0 %v2618
        %3022 = vmatprep.subr.mxu0 %v2615
        %3023 = vmatpush1.msra.mxu0 %v2614
        %3024 = vmatprep.subr.mxu0 %v2611
        %3025 = vmatpush1.msra.mxu0 %v2610
        %3026 = vmatprep.subr.mxu0 %v2607
        %3027 = vmatpush1.msra.mxu0 %v2606
        %3028 = vmatprep.subr.mxu0 %v2603
        %3029 = vmatpush1.msra.mxu0 %v2602
        %3030 = vmatprep.subr.mxu0 %v2727
        %3031 = vmatpush2.msra.mxu0 %v2726
        %3032 = vmatprep.subr.mxu0 %v2723
        %3033 = vmatpush2.msra.mxu0 %v2722
        %3034 = vmatprep.subr.mxu0 %v2719
        %3035 = vmatpush2.msra.mxu0 %v2718
        %3036 = vmatprep.subr.mxu0 %v2715
        %3037 = vmatpush2.msra.mxu0 %v2714
        %3038 = vmatprep.subr.mxu0 %v2711
        %3039 = vmatpush2.msra.mxu0 %v2710
        %3040 = vmatprep.subr.mxu0 %v2707
        %3041 = vmatpush2.msra.mxu0 %v2706
        %3042 = vmatprep.subr.mxu0 %v2703
        %3043 = vmatpush2.msra.mxu0 %v2702
        %3044 = vmatprep.subr.mxu0 %v2699
        %3045 = vmatpush2.msra.mxu0 %v2698
        %3046 = vmatprep.subr.mxu0 %v2695
        %3047 = vmatpush2.msra.mxu0 %v2694
        %3048 = vmatprep.subr.mxu0 %v2691
        %3049 = vmatpush2.msra.mxu0 %v2690
        %3050 = vmatprep.subr.mxu0 %v2687
        %3051 = vmatpush2.msra.mxu0 %v2686
        %3052 = vmatprep.subr.mxu0 %v2683
        %3053 = vmatpush2.msra.mxu0 %v2682
        %3054 = vmatprep.subr.mxu0 %v2679
        %3055 = vmatpush2.msra.mxu0 %v2678
        %3056 = vmatprep.subr.mxu0 %v2675
        %3057 = vmatpush2.msra.mxu0 %v2674
        %3058 = vmatprep.subr.mxu0 %v2671
        %3059 = vmatpush2.msra.mxu0 %v2670
        %3060 = vmatprep.subr.mxu0 %v2667
        %3061 = vmatpush2.msra.mxu0 %v2666
        %3062 = vmatprep.mubr.f32.mxu0 %v1656
        %3063 = vmatmul.mubr.f32.gmra.mxu0 %v1654
        %v3064 = vpop.f32.mrf.mxu0
        %v3065 = vadd.f32 0.0, %v3064
        %v3066 = vpop.f32.mrf.mxu0
        %v3067 = vadd.f32 0.0, %v3066
        %3068 = vdwg.mxu0
        %3069 = vmatprep.subr.mxu0 %v2791
        %3070 = vmatpush1.msra.mxu0 %v2790
        %3071 = vmatprep.subr.mxu0 %v2787
        %3072 = vmatpush1.msra.mxu0 %v2786
        %3073 = vmatprep.subr.mxu0 %v2783
        %3074 = vmatpush1.msra.mxu0 %v2782
        %3075 = vmatprep.subr.mxu0 %v2779
        %3076 = vmatpush1.msra.mxu0 %v2778
        %3077 = vmatprep.subr.mxu0 %v2775
        %3078 = vmatpush1.msra.mxu0 %v2774
        %3079 = vmatprep.subr.mxu0 %v2771
        %3080 = vmatpush1.msra.mxu0 %v2770
        %3081 = vmatprep.subr.mxu0 %v2767
        %3082 = vmatpush1.msra.mxu0 %v2766
        %3083 = vmatprep.subr.mxu0 %v2763
        %3084 = vmatpush1.msra.mxu0 %v2762
        %3085 = vmatprep.subr.mxu0 %v2759
        %3086 = vmatpush1.msra.mxu0 %v2758
        %3087 = vmatprep.subr.mxu0 %v2755
        %3088 = vmatpush1.msra.mxu0 %v2754
        %3089 = vmatprep.subr.mxu0 %v2751
        %3090 = vmatpush1.msra.mxu0 %v2750
        %3091 = vmatprep.subr.mxu0 %v2747
        %3092 = vmatpush1.msra.mxu0 %v2746
        %3093 = vmatprep.subr.mxu0 %v2743
        %3094 = vmatpush1.msra.mxu0 %v2742
        %3095 = vmatprep.subr.mxu0 %v2739
        %3096 = vmatpush1.msra.mxu0 %v2738
        %3097 = vmatprep.subr.mxu0 %v2735
        %3098 = vmatpush1.msra.mxu0 %v2734
        %3099 = vmatprep.subr.mxu0 %v2731
        %3100 = vmatpush1.msra.mxu0 %v2730
        %3101 = vmatprep.subr.mxu0 %v2855
        %3102 = vmatpush2.msra.mxu0 %v2854
        %3103 = vmatprep.subr.mxu0 %v2851
        %3104 = vmatpush2.msra.mxu0 %v2850
        %3105 = vmatprep.subr.mxu0 %v2847
        %3106 = vmatpush2.msra.mxu0 %v2846
        %3107 = vmatprep.subr.mxu0 %v2843
        %3108 = vmatpush2.msra.mxu0 %v2842
        %3109 = vmatprep.subr.mxu0 %v2839
        %3110 = vmatpush2.msra.mxu0 %v2838
        %3111 = vmatprep.subr.mxu0 %v2835
        %3112 = vmatpush2.msra.mxu0 %v2834
        %3113 = vmatprep.subr.mxu0 %v2831
        %3114 = vmatpush2.msra.mxu0 %v2830
        %3115 = vmatprep.subr.mxu0 %v2827
        %3116 = vmatpush2.msra.mxu0 %v2826
        %3117 = vmatprep.subr.mxu0 %v2823
        %3118 = vmatpush2.msra.mxu0 %v2822
        %3119 = vmatprep.subr.mxu0 %v2819
        %3120 = vmatpush2.msra.mxu0 %v2818
        %3121 = vmatprep.subr.mxu0 %v2815
        %3122 = vmatpush2.msra.mxu0 %v2814
        %3123 = vmatprep.subr.mxu0 %v2811
        %3124 = vmatpush2.msra.mxu0 %v2810
        %3125 = vmatprep.subr.mxu0 %v2807
        %3126 = vmatpush2.msra.mxu0 %v2806
        %3127 = vmatprep.subr.mxu0 %v2803
        %3128 = vmatpush2.msra.mxu0 %v2802
        %3129 = vmatprep.subr.mxu0 %v2799
        %3130 = vmatpush2.msra.mxu0 %v2798
        %3131 = vmatprep.subr.mxu0 %v2795
        %3132 = vmatpush2.msra.mxu0 %v2794
        %3133 = vmatprep.mubr.f32.mxu0 %v1727
        %3134 = vmatmul.mubr.f32.gmra.mxu0 %v1725
        %v3135 = vpop.f32.mrf.mxu0
        %v3136 = vadd.f32 %v3065, %v3135
        %v3137 = vpop.f32.mrf.mxu0
        %v3138 = vadd.f32 %v3067, %v3137
        %3139 = vdwg.mxu0
        %v3140 = vld [vmem:[%s13] sm:$0xff]
        %v3141 = vld [vmem:[%s13 + $0x8] sm:$0xff]
        %v3142 = vld [vmem:[%s13 + $0x10] sm:$0xff]
        %v3143 = vld [vmem:[%s13 + $0x18] sm:$0xff]
        %v3144 = vld [vmem:[%s13 + $0x20] sm:$0xff]
        %v3145 = vld [vmem:[%s13 + $0x28] sm:$0xff]
        %v3146 = vld [vmem:[%s13 + $0x30] sm:$0xff]
        %v3147 = vld [vmem:[%s13 + $0x38] sm:$0xff]
        %v3148 = vld [vmem:[%s13 + $0x40] sm:$0xff]
        %v3149 = vld [vmem:[%s13 + $0x48] sm:$0xff]
        %v3150 = vld [vmem:[%s13 + $0x50] sm:$0xff]
        %v3151 = vld [vmem:[%s13 + $0x58] sm:$0xff]
        %v3152 = vld [vmem:[%s13 + $0x60] sm:$0xff]
        %v3153 = vld [vmem:[%s13 + $0x68] sm:$0xff]
        %v3154 = vld [vmem:[%s13 + $0x70] sm:$0xff]
        %v3155 = vld [vmem:[%s13 + $0x78] sm:$0xff]
        %v3156 = vld [vmem:[%s13 + $0x80] sm:$0xff]
        %v3157 = vld [vmem:[%s13 + $0x88] sm:$0xff]
        %v3158 = vld [vmem:[%s13 + $0x90] sm:$0xff]
        %v3159 = vld [vmem:[%s13 + $0x98] sm:$0xff]
        %v3160 = vld [vmem:[%s13 + $0xa0] sm:$0xff]
        %v3161 = vld [vmem:[%s13 + $0xa8] sm:$0xff]
        %v3162 = vld [vmem:[%s13 + $0xb0] sm:$0xff]
        %v3163 = vld [vmem:[%s13 + $0xb8] sm:$0xff]
        %v3164 = vld [vmem:[%s13 + $0xc0] sm:$0xff]
        %v3165 = vld [vmem:[%s13 + $0xc8] sm:$0xff]
        %v3166 = vld [vmem:[%s13 + $0xd0] sm:$0xff]
        %v3167 = vld [vmem:[%s13 + $0xd8] sm:$0xff]
        %v3168 = vld [vmem:[%s13 + $0xe0] sm:$0xff]
        %v3169 = vld [vmem:[%s13 + $0xe8] sm:$0xff]
        %v3170 = vld [vmem:[%s13 + $0xf0] sm:$0xff]
        %v3171 = vld [vmem:[%s13 + $0xf8] sm:$0xff]
        %vm3172 = vcmask 523264
        %v3174 = vsel %vm3172, %v2599, 0
        %3176 = vmatprep.subr.mxu0 0.0
        %3177 = vmatpush1.msra.mxu0 0.0
        %3178 = vmatprep.subr.mxu0 0.0
        %3179 = vmatpush1.msra.mxu0 0.0
        %3180 = vmatprep.subr.mxu0 0.0
        %3181 = vmatpush1.msra.mxu0 0.0
        %3182 = vmatprep.subr.mxu0 0.0
        %3183 = vmatpush1.msra.mxu0 0.0
        %3184 = vmatprep.subr.mxu0 0.0
        %3185 = vmatpush1.msra.mxu0 0.0
        %3186 = vmatprep.subr.mxu0 0.0
        %3187 = vmatpush1.msra.mxu0 0.0
        %3188 = vmatprep.subr.mxu0 0.0
        %3189 = vmatpush1.msra.mxu0 0.0
        %3190 = vmatprep.subr.mxu0 0.0
        %3191 = vmatpush1.msra.mxu0 0.0
        %3192 = vmatprep.subr.mxu0 %v3169
        %3193 = vmatpush1.msra.mxu0 %v3168
        %3194 = vmatprep.subr.mxu0 %v3165
        %3195 = vmatpush1.msra.mxu0 %v3164
        %3196 = vmatprep.subr.mxu0 %v3161
        %3197 = vmatpush1.msra.mxu0 %v3160
        %3198 = vmatprep.subr.mxu0 %v3157
        %3199 = vmatpush1.msra.mxu0 %v3156
        %3200 = vmatprep.subr.mxu0 %v3153
        %3201 = vmatpush1.msra.mxu0 %v3152
        %3202 = vmatprep.subr.mxu0 %v3149
        %3203 = vmatpush1.msra.mxu0 %v3148
        %3204 = vmatprep.subr.mxu0 %v3145
        %3205 = vmatpush1.msra.mxu0 %v3144
        %3206 = vmatprep.subr.mxu0 %v3141
        %3207 = vmatpush1.msra.mxu0 %v3140
        %3208 = vmatprep.subr.mxu0 0.0
        %3209 = vmatpush2.msra.mxu0 0.0
        %3210 = vmatprep.subr.mxu0 0.0
        %3211 = vmatpush2.msra.mxu0 0.0
        %3212 = vmatprep.subr.mxu0 0.0
        %3213 = vmatpush2.msra.mxu0 0.0
        %3214 = vmatprep.subr.mxu0 0.0
        %3215 = vmatpush2.msra.mxu0 0.0
        %3216 = vmatprep.subr.mxu0 0.0
        %3217 = vmatpush2.msra.mxu0 0.0
        %3218 = vmatprep.subr.mxu0 0.0
        %3219 = vmatpush2.msra.mxu0 0.0
        %3220 = vmatprep.subr.mxu0 0.0
        %3221 = vmatpush2.msra.mxu0 0.0
        %3222 = vmatprep.subr.mxu0 0.0
        %3223 = vmatpush2.msra.mxu0 0.0
        %3224 = vmatprep.subr.mxu0 0.0
        %3225 = vmatpush2.msra.mxu0 0.0
        %3226 = vmatprep.subr.mxu0 0.0
        %3227 = vmatpush2.msra.mxu0 0.0
        %3228 = vmatprep.subr.mxu0 0.0
        %3229 = vmatpush2.msra.mxu0 0.0
        %3230 = vmatprep.subr.mxu0 0.0
        %3231 = vmatpush2.msra.mxu0 0.0
        %3232 = vmatprep.subr.mxu0 0.0
        %3233 = vmatpush2.msra.mxu0 0.0
        %3234 = vmatprep.subr.mxu0 0.0
        %3235 = vmatpush2.msra.mxu0 0.0
        %3236 = vmatprep.subr.mxu0 0.0
        %3237 = vmatpush2.msra.mxu0 0.0
        %3238 = vmatprep.subr.mxu0 0.0
        %3239 = vmatpush2.msra.mxu0 0.0
        %3240 = vmatprep.mubr.f32.mxu0 0.0
        %3241 = vmatmul.mubr.f32.gmra.mxu0 %v3174
        %v3242 = vpop.f32.mrf.mxu0
        %v3243 = vadd.f32 0.0, %v3242
        %v3244 = vpop.f32.mrf.mxu0
        %v3245 = vadd.f32 0.0, %v3244
        %3246 = vdwg.mxu0
        %3247 = vmatprep.subr.mxu0 0.0
        %3248 = vmatpush1.msra.mxu0 0.0
        %3249 = vmatprep.subr.mxu0 0.0
        %3250 = vmatpush1.msra.mxu0 0.0
        %3251 = vmatprep.subr.mxu0 0.0
        %3252 = vmatpush1.msra.mxu0 0.0
        %3253 = vmatprep.subr.mxu0 0.0
        %3254 = vmatpush1.msra.mxu0 0.0
        %3255 = vmatprep.subr.mxu0 0.0
        %3256 = vmatpush1.msra.mxu0 0.0
        %3257 = vmatprep.subr.mxu0 0.0
        %3258 = vmatpush1.msra.mxu0 0.0
        %3259 = vmatprep.subr.mxu0 0.0
        %3260 = vmatpush1.msra.mxu0 0.0
        %3261 = vmatprep.subr.mxu0 0.0
        %3262 = vmatpush1.msra.mxu0 0.0
        %3263 = vmatprep.subr.mxu0 %v3171
        %3264 = vmatpush1.msra.mxu0 %v3170
        %3265 = vmatprep.subr.mxu0 %v3167
        %3266 = vmatpush1.msra.mxu0 %v3166
        %3267 = vmatprep.subr.mxu0 %v3163
        %3268 = vmatpush1.msra.mxu0 %v3162
        %3269 = vmatprep.subr.mxu0 %v3159
        %3270 = vmatpush1.msra.mxu0 %v3158
        %3271 = vmatprep.subr.mxu0 %v3155
        %3272 = vmatpush1.msra.mxu0 %v3154
        %3273 = vmatprep.subr.mxu0 %v3151
        %3274 = vmatpush1.msra.mxu0 %v3150
        %3275 = vmatprep.subr.mxu0 %v3147
        %3276 = vmatpush1.msra.mxu0 %v3146
        %3277 = vmatprep.subr.mxu0 %v3143
        %3278 = vmatpush1.msra.mxu0 %v3142
        %3279 = vmatprep.subr.mxu0 0.0
        %3280 = vmatpush2.msra.mxu0 0.0
        %3281 = vmatprep.subr.mxu0 0.0
        %3282 = vmatpush2.msra.mxu0 0.0
        %3283 = vmatprep.subr.mxu0 0.0
        %3284 = vmatpush2.msra.mxu0 0.0
        %3285 = vmatprep.subr.mxu0 0.0
        %3286 = vmatpush2.msra.mxu0 0.0
        %3287 = vmatprep.subr.mxu0 0.0
        %3288 = vmatpush2.msra.mxu0 0.0
        %3289 = vmatprep.subr.mxu0 0.0
        %3290 = vmatpush2.msra.mxu0 0.0
        %3291 = vmatprep.subr.mxu0 0.0
        %3292 = vmatpush2.msra.mxu0 0.0
        %3293 = vmatprep.subr.mxu0 0.0
        %3294 = vmatpush2.msra.mxu0 0.0
        %3295 = vmatprep.subr.mxu0 0.0
        %3296 = vmatpush2.msra.mxu0 0.0
        %3297 = vmatprep.subr.mxu0 0.0
        %3298 = vmatpush2.msra.mxu0 0.0
        %3299 = vmatprep.subr.mxu0 0.0
        %3300 = vmatpush2.msra.mxu0 0.0
        %3301 = vmatprep.subr.mxu0 0.0
        %3302 = vmatpush2.msra.mxu0 0.0
        %3303 = vmatprep.subr.mxu0 0.0
        %3304 = vmatpush2.msra.mxu0 0.0
        %3305 = vmatprep.subr.mxu0 0.0
        %3306 = vmatpush2.msra.mxu0 0.0
        %3307 = vmatprep.subr.mxu0 0.0
        %3308 = vmatpush2.msra.mxu0 0.0
        %3309 = vmatprep.subr.mxu0 0.0
        %3310 = vmatpush2.msra.mxu0 0.0
        %3311 = vmatprep.mubr.f32.mxu0 0.0
        %3312 = vmatmul.mubr.f32.gmra.mxu0 %v3174
        %v3313 = vpop.f32.mrf.mxu0
        %v3314 = vadd.f32 0.0, %v3313
        %v3315 = vpop.f32.mrf.mxu0
        %v3316 = vadd.f32 0.0, %v3315
        %3317 = vdwg.mxu0
        %v3318 = vlaneseq
        %v3319 = vshrl.u32 %v3318, 7
        %v3320 = vsub.s32 0, %v3319
        %v3321 = vrot.slane %v2994, %v3320
        %v3322 = vlaneseq
        %v3323 = vshrl.u32 %v3322, 7
        %v3324 = vsub.s32 0, %v3323
        %v3325 = vrot.slane %v2996, %v3324
        %v3326 = vlaneseq
        %v3327 = vshrl.u32 %v3326, 7
        %v3328 = vsub.s32 0, %v3327
        %v3329 = vrot.slane %v3136, %v3328
        %v3330 = vlaneseq
        %v3331 = vshrl.u32 %v3330, 7
        %v3332 = vsub.s32 0, %v3331
        %v3333 = vrot.slane %v3138, %v3332
        %v3334 = vadd.f32 %v3321, %v3243
        %v3335 = vadd.f32 %v3325, %v3245
        %v3336 = vadd.f32 %v3329, %v3314
        %v3337 = vadd.f32 %v3333, %v3316
        %v3338 = vld [vmem:[%s14] sm:$0xf]
        %v3340 = vlaneseq
        %v3341 = vshrl.u32 %v3340, 7
        %v3342 = vsub.s32 0, %v3341
        %v3343 = vrot.slane %v3338, %v3342
        %v3344 = vlaneseq
        %v3345 = vshrl.u32 %v3344, 7
        %v3346 = vsub.s32 1, %v3345
        %v3347 = vrot.slane %v3338, %v3346
        %v3348 = vlaneseq
        %v3349 = vshrl.u32 %v3348, 7
        %v3350 = vsub.s32 2, %v3349
        %v3351 = vrot.slane %v3338, %v3350
        %v3352 = vlaneseq
        %v3353 = vshrl.u32 %v3352, 7
        %v3354 = vsub.s32 3, %v3353
        %v3355 = vrot.slane %v3338, %v3354
        %v3360 = vadd.f32 %v3334, %v3343
        %v3361 = vadd.f32 %v3335, %v3347
        %v3362 = vadd.f32 %v3336, %v3351
        %v3363 = vadd.f32 %v3337, %v3355
        %v3364 = vld [vmem:[%s15] sm:$0xf]
        %v3366 = vlaneseq
        %v3367 = vshrl.u32 %v3366, 7
        %v3368 = vsub.s32 0, %v3367
        %v3369 = vrot.slane %v3364, %v3368
        %v3370 = vlaneseq
        %v3371 = vshrl.u32 %v3370, 7
        %v3372 = vsub.s32 1, %v3371
        %v3373 = vrot.slane %v3364, %v3372
        %v3374 = vlaneseq
        %v3375 = vshrl.u32 %v3374, 7
        %v3376 = vsub.s32 2, %v3375
        %v3377 = vrot.slane %v3364, %v3376
        %v3378 = vlaneseq
        %v3379 = vshrl.u32 %v3378, 7
        %v3380 = vsub.s32 3, %v3379
        %v3381 = vrot.slane %v3364, %v3380
        %v3386 = vmul.f32 %v3360, %v3369
        %v3387 = vmul.f32 %v3361, %v3373
        %v3388 = vmul.f32 %v3362, %v3377
        %v3389 = vmul.f32 %v3363, %v3381
        %v3390 = vld [vmem:[%s16] sm:$0xf]
        %v3392 = vlaneseq
        %v3393 = vshrl.u32 %v3392, 7
        %v3394 = vsub.s32 0, %v3393
        %v3395 = vrot.slane %v3390, %v3394
        %v3396 = vlaneseq
        %v3397 = vshrl.u32 %v3396, 7
        %v3398 = vsub.s32 1, %v3397
        %v3399 = vrot.slane %v3390, %v3398
        %v3400 = vlaneseq
        %v3401 = vshrl.u32 %v3400, 7
        %v3402 = vsub.s32 2, %v3401
        %v3403 = vrot.slane %v3390, %v3402
        %v3404 = vlaneseq
        %v3405 = vshrl.u32 %v3404, 7
        %v3406 = vsub.s32 3, %v3405
        %v3407 = vrot.slane %v3390, %v3406
        %v3412 = vadd.f32 %v3386, %v3395
        %v3413 = vadd.f32 %v3387, %v3399
        %v3414 = vadd.f32 %v3388, %v3403
        %v3415 = vadd.f32 %v3389, %v3407
        %v3416 = vmax.f32 %v3412, 0.0
        %v3417 = vmax.f32 %v3413, 0.0
        %v3418 = vmax.f32 %v3414, 0.0
        %v3419 = vmax.f32 %v3415, 0.0
        %v3420 = vld [vmem:[%s17] sm:$0xff]
        %v3421 = vld [vmem:[%s17 + $0x8] sm:$0xff]
        %v3422 = vld [vmem:[%s17 + $0x10] sm:$0xff]
        %v3423 = vld [vmem:[%s17 + $0x18] sm:$0xff]
        %v3424 = vld [vmem:[%s17 + $0x20] sm:$0xff]
        %v3425 = vld [vmem:[%s17 + $0x28] sm:$0xff]
        %v3426 = vld [vmem:[%s17 + $0x30] sm:$0xff]
        %v3427 = vld [vmem:[%s17 + $0x38] sm:$0xff]
        %v3428 = vld [vmem:[%s17 + $0x40] sm:$0xff]
        %v3429 = vld [vmem:[%s17 + $0x48] sm:$0xff]
        %v3430 = vld [vmem:[%s17 + $0x50] sm:$0xff]
        %v3431 = vld [vmem:[%s17 + $0x58] sm:$0xff]
        %v3432 = vld [vmem:[%s17 + $0x60] sm:$0xff]
        %v3433 = vld [vmem:[%s17 + $0x68] sm:$0xff]
        %v3434 = vld [vmem:[%s17 + $0x70] sm:$0xff]
        %v3435 = vld [vmem:[%s17 + $0x78] sm:$0xff]
        %v3436 = vld [vmem:[%s17 + $0x80] sm:$0xff]
        %v3437 = vld [vmem:[%s17 + $0x88] sm:$0xff]
        %v3438 = vld [vmem:[%s17 + $0x90] sm:$0xff]
        %v3439 = vld [vmem:[%s17 + $0x98] sm:$0xff]
        %v3440 = vld [vmem:[%s17 + $0xa0] sm:$0xff]
        %v3441 = vld [vmem:[%s17 + $0xa8] sm:$0xff]
        %v3442 = vld [vmem:[%s17 + $0xb0] sm:$0xff]
        %v3443 = vld [vmem:[%s17 + $0xb8] sm:$0xff]
        %v3444 = vld [vmem:[%s17 + $0xc0] sm:$0xff]
        %v3445 = vld [vmem:[%s17 + $0xc8] sm:$0xff]
        %v3446 = vld [vmem:[%s17 + $0xd0] sm:$0xff]
        %v3447 = vld [vmem:[%s17 + $0xd8] sm:$0xff]
        %v3448 = vld [vmem:[%s17 + $0xe0] sm:$0xff]
        %v3449 = vld [vmem:[%s17 + $0xe8] sm:$0xff]
        %v3450 = vld [vmem:[%s17 + $0xf0] sm:$0xff]
        %v3451 = vld [vmem:[%s17 + $0xf8] sm:$0xff]
        %v3452 = vld [vmem:[%s17 + $0x100] sm:$0xff]
        %v3453 = vld [vmem:[%s17 + $0x108] sm:$0xff]
        %v3454 = vld [vmem:[%s17 + $0x110] sm:$0xff]
        %v3455 = vld [vmem:[%s17 + $0x118] sm:$0xff]
        %v3456 = vld [vmem:[%s17 + $0x120] sm:$0xff]
        %v3457 = vld [vmem:[%s17 + $0x128] sm:$0xff]
        %v3458 = vld [vmem:[%s17 + $0x130] sm:$0xff]
        %v3459 = vld [vmem:[%s17 + $0x138] sm:$0xff]
        %v3460 = vld [vmem:[%s17 + $0x140] sm:$0xff]
        %v3461 = vld [vmem:[%s17 + $0x148] sm:$0xff]
        %v3462 = vld [vmem:[%s17 + $0x150] sm:$0xff]
        %v3463 = vld [vmem:[%s17 + $0x158] sm:$0xff]
        %v3464 = vld [vmem:[%s17 + $0x160] sm:$0xff]
        %v3465 = vld [vmem:[%s17 + $0x168] sm:$0xff]
        %v3466 = vld [vmem:[%s17 + $0x170] sm:$0xff]
        %v3467 = vld [vmem:[%s17 + $0x178] sm:$0xff]
        %v3468 = vld [vmem:[%s17 + $0x180] sm:$0xff]
        %v3469 = vld [vmem:[%s17 + $0x188] sm:$0xff]
        %v3470 = vld [vmem:[%s17 + $0x190] sm:$0xff]
        %v3471 = vld [vmem:[%s17 + $0x198] sm:$0xff]
        %v3472 = vld [vmem:[%s17 + $0x1a0] sm:$0xff]
        %v3473 = vld [vmem:[%s17 + $0x1a8] sm:$0xff]
        %v3474 = vld [vmem:[%s17 + $0x1b0] sm:$0xff]
        %v3475 = vld [vmem:[%s17 + $0x1b8] sm:$0xff]
        %v3476 = vld [vmem:[%s17 + $0x1c0] sm:$0xff]
        %v3477 = vld [vmem:[%s17 + $0x1c8] sm:$0xff]
        %v3478 = vld [vmem:[%s17 + $0x1d0] sm:$0xff]
        %v3479 = vld [vmem:[%s17 + $0x1d8] sm:$0xff]
        %v3480 = vld [vmem:[%s17 + $0x1e0] sm:$0xff]
        %v3481 = vld [vmem:[%s17 + $0x1e8] sm:$0xff]
        %v3482 = vld [vmem:[%s17 + $0x1f0] sm:$0xff]
        %v3483 = vld [vmem:[%s17 + $0x1f8] sm:$0xff]
        %v3484 = vld [vmem:[%s18] sm:$0x1]
        %v3486 = vlaneseq
        %v3487 = vshrl.u32 %v3486, 7
        %v3488 = vsub.s32 0, %v3487
        %v3489 = vrot.slane %v3484, %v3488
        %3491 = vmatprep.subr.mxu0 0.0
        %3492 = vmatpush1.msra.mxu0 %v3435
        %3493 = vmatprep.subr.mxu0 0.0
        %3494 = vmatpush1.msra.mxu0 %v3434
        %3495 = vmatprep.subr.mxu0 0.0
        %3496 = vmatpush1.msra.mxu0 %v3433
        %3497 = vmatprep.subr.mxu0 0.0
        %3498 = vmatpush1.msra.mxu0 %v3432
        %3499 = vmatprep.subr.mxu0 0.0
        %3500 = vmatpush1.msra.mxu0 %v3431
        %3501 = vmatprep.subr.mxu0 0.0
        %3502 = vmatpush1.msra.mxu0 %v3430
        %3503 = vmatprep.subr.mxu0 0.0
        %3504 = vmatpush1.msra.mxu0 %v3429
        %3505 = vmatprep.subr.mxu0 0.0
        %3506 = vmatpush1.msra.mxu0 %v3428
        %3507 = vmatprep.subr.mxu0 0.0
        %3508 = vmatpush1.msra.mxu0 %v3427
        %3509 = vmatprep.subr.mxu0 0.0
        %3510 = vmatpush1.msra.mxu0 %v3426
        %3511 = vmatprep.subr.mxu0 0.0
        %3512 = vmatpush1.msra.mxu0 %v3425
        %3513 = vmatprep.subr.mxu0 0.0
        %3514 = vmatpush1.msra.mxu0 %v3424
        %3515 = vmatprep.subr.mxu0 0.0
        %3516 = vmatpush1.msra.mxu0 %v3423
        %3517 = vmatprep.subr.mxu0 0.0
        %3518 = vmatpush1.msra.mxu0 %v3422
        %3519 = vmatprep.subr.mxu0 0.0
        %3520 = vmatpush1.msra.mxu0 %v3421
        %3521 = vmatprep.subr.mxu0 0.0
        %3522 = vmatpush1.msra.mxu0 %v3420
        %3523 = vmatprep.subr.mxu0 0.0
        %3524 = vmatpush2.msra.mxu0 %v3451
        %3525 = vmatprep.subr.mxu0 0.0
        %3526 = vmatpush2.msra.mxu0 %v3450
        %3527 = vmatprep.subr.mxu0 0.0
        %3528 = vmatpush2.msra.mxu0 %v3449
        %3529 = vmatprep.subr.mxu0 0.0
        %3530 = vmatpush2.msra.mxu0 %v3448
        %3531 = vmatprep.subr.mxu0 0.0
        %3532 = vmatpush2.msra.mxu0 %v3447
        %3533 = vmatprep.subr.mxu0 0.0
        %3534 = vmatpush2.msra.mxu0 %v3446
        %3535 = vmatprep.subr.mxu0 0.0
        %3536 = vmatpush2.msra.mxu0 %v3445
        %3537 = vmatprep.subr.mxu0 0.0
        %3538 = vmatpush2.msra.mxu0 %v3444
        %3539 = vmatprep.subr.mxu0 0.0
        %3540 = vmatpush2.msra.mxu0 %v3443
        %3541 = vmatprep.subr.mxu0 0.0
        %3542 = vmatpush2.msra.mxu0 %v3442
        %3543 = vmatprep.subr.mxu0 0.0
        %3544 = vmatpush2.msra.mxu0 %v3441
        %3545 = vmatprep.subr.mxu0 0.0
        %3546 = vmatpush2.msra.mxu0 %v3440
        %3547 = vmatprep.subr.mxu0 0.0
        %3548 = vmatpush2.msra.mxu0 %v3439
        %3549 = vmatprep.subr.mxu0 0.0
        %3550 = vmatpush2.msra.mxu0 %v3438
        %3551 = vmatprep.subr.mxu0 0.0
        %3552 = vmatpush2.msra.mxu0 %v3437
        %3553 = vmatprep.subr.mxu0 0.0
        %3554 = vmatpush2.msra.mxu0 %v3436
        %3555 = vmatprep.mubr.f32.mxu0 %v3417
        %3556 = vmatmul.mubr.f32.gmra.mxu0 %v3416
        %v3557 = vpop.f32.mrf.mxu0
        %v3558 = vadd.f32 %v3489, %v3557
        %v3559 = vpop.f32.mrf.mxu0
        %3560 = vdwg.mxu0
        %3561 = vmatprep.subr.mxu0 0.0
        %3562 = vmatpush1.msra.mxu0 %v3467
        %3563 = vmatprep.subr.mxu0 0.0
        %3564 = vmatpush1.msra.mxu0 %v3466
        %3565 = vmatprep.subr.mxu0 0.0
        %3566 = vmatpush1.msra.mxu0 %v3465
        %3567 = vmatprep.subr.mxu0 0.0
        %3568 = vmatpush1.msra.mxu0 %v3464
        %3569 = vmatprep.subr.mxu0 0.0
        %3570 = vmatpush1.msra.mxu0 %v3463
        %3571 = vmatprep.subr.mxu0 0.0
        %3572 = vmatpush1.msra.mxu0 %v3462
        %3573 = vmatprep.subr.mxu0 0.0
        %3574 = vmatpush1.msra.mxu0 %v3461
        %3575 = vmatprep.subr.mxu0 0.0
        %3576 = vmatpush1.msra.mxu0 %v3460
        %3577 = vmatprep.subr.mxu0 0.0
        %3578 = vmatpush1.msra.mxu0 %v3459
        %3579 = vmatprep.subr.mxu0 0.0
        %3580 = vmatpush1.msra.mxu0 %v3458
        %3581 = vmatprep.subr.mxu0 0.0
        %3582 = vmatpush1.msra.mxu0 %v3457
        %3583 = vmatprep.subr.mxu0 0.0
        %3584 = vmatpush1.msra.mxu0 %v3456
        %3585 = vmatprep.subr.mxu0 0.0
        %3586 = vmatpush1.msra.mxu0 %v3455
        %3587 = vmatprep.subr.mxu0 0.0
        %3588 = vmatpush1.msra.mxu0 %v3454
        %3589 = vmatprep.subr.mxu0 0.0
        %3590 = vmatpush1.msra.mxu0 %v3453
        %3591 = vmatprep.subr.mxu0 0.0
        %3592 = vmatpush1.msra.mxu0 %v3452
        %3593 = vmatprep.subr.mxu0 0.0
        %3594 = vmatpush2.msra.mxu0 %v3483
        %3595 = vmatprep.subr.mxu0 0.0
        %3596 = vmatpush2.msra.mxu0 %v3482
        %3597 = vmatprep.subr.mxu0 0.0
        %3598 = vmatpush2.msra.mxu0 %v3481
        %3599 = vmatprep.subr.mxu0 0.0
        %3600 = vmatpush2.msra.mxu0 %v3480
        %3601 = vmatprep.subr.mxu0 0.0
        %3602 = vmatpush2.msra.mxu0 %v3479
        %3603 = vmatprep.subr.mxu0 0.0
        %3604 = vmatpush2.msra.mxu0 %v3478
        %3605 = vmatprep.subr.mxu0 0.0
        %3606 = vmatpush2.msra.mxu0 %v3477
        %3607 = vmatprep.subr.mxu0 0.0
        %3608 = vmatpush2.msra.mxu0 %v3476
        %3609 = vmatprep.subr.mxu0 0.0
        %3610 = vmatpush2.msra.mxu0 %v3475
        %3611 = vmatprep.subr.mxu0 0.0
        %3612 = vmatpush2.msra.mxu0 %v3474
        %3613 = vmatprep.subr.mxu0 0.0
        %3614 = vmatpush2.msra.mxu0 %v3473
        %3615 = vmatprep.subr.mxu0 0.0
        %3616 = vmatpush2.msra.mxu0 %v3472
        %3617 = vmatprep.subr.mxu0 0.0
        %3618 = vmatpush2.msra.mxu0 %v3471
        %3619 = vmatprep.subr.mxu0 0.0
        %3620 = vmatpush2.msra.mxu0 %v3470
        %3621 = vmatprep.subr.mxu0 0.0
        %3622 = vmatpush2.msra.mxu0 %v3469
        %3623 = vmatprep.subr.mxu0 0.0
        %3624 = vmatpush2.msra.mxu0 %v3468
        %3625 = vmatprep.mubr.f32.mxu0 %v3419
        %3626 = vmatmul.mubr.f32.gmra.mxu0 %v3418
        %v3627 = vpop.f32.mrf.mxu0
        %v3628 = vadd.f32 %v3558, %v3627
        %v3629 = vpop.f32.mrf.mxu0
        %3630 = vdwg.mxu0
        %vm3631 = vcmask 61440
        %3632 = vst.msk [vmem:[%s715] sm:$0x1f] %vm3631, %v3628
        %v3633 = vsel %vm3631, %v3628, -inf
        %3634 = vmax.xlane.f32.xlu0 %v3633
        %v3635 = vpop.xlane.xlu0 %3634
        %v3636 = vsub.f32 %v3628, %v3635
        %v3637 = vmul.f32 %v3636, 1.442695
        %v3638 = vpow.pop %v3637
        %v3639 = vsel %vm3631, %v3638, 0.0
        %3640 = vadd.xlane.f32.xlu0 %v3639
        %v3641 = vpop.xlane.xlu0 %3640
        %v3642 = vrcp.pop %v3641
        %v3643 = vmul.f32 %v3638, %v3642
        %v3644 = vld [vmem:[%s19] sm:$0xff]
        %v3645 = vld [vmem:[%s19 + $0x8] sm:$0xff]
        %v3646 = vld [vmem:[%s19 + $0x10] sm:$0xff]
        %v3647 = vld [vmem:[%s19 + $0x18] sm:$0xff]
        %v3649 = vsel %vm1583, %v3643, 0
        %3651 = vmatprep.subr.mxu0 0.0
        %3652 = vmatpush1.msra.mxu0 0.0
        %3653 = vmatprep.subr.mxu0 0.0
        %3654 = vmatpush1.msra.mxu0 0.0
        %3655 = vmatprep.subr.mxu0 0.0
        %3656 = vmatpush1.msra.mxu0 0.0
        %3657 = vmatprep.subr.mxu0 0.0
        %3658 = vmatpush1.msra.mxu0 0.0
        %3659 = vmatprep.subr.mxu0 0.0
        %3660 = vmatpush1.msra.mxu0 0.0
        %3661 = vmatprep.subr.mxu0 0.0
        %3662 = vmatpush1.msra.mxu0 0.0
        %3663 = vmatprep.subr.mxu0 0.0
        %3664 = vmatpush1.msra.mxu0 0.0
        %3665 = vmatprep.subr.mxu0 0.0
        %3666 = vmatpush1.msra.mxu0 0.0
        %3667 = vmatprep.subr.mxu0 0.0
        %3668 = vmatpush1.msra.mxu0 0.0
        %3669 = vmatprep.subr.mxu0 0.0
        %3670 = vmatpush1.msra.mxu0 0.0
        %3671 = vmatprep.subr.mxu0 0.0
        %3672 = vmatpush1.msra.mxu0 0.0
        %3673 = vmatprep.subr.mxu0 0.0
        %3674 = vmatpush1.msra.mxu0 0.0
        %3675 = vmatprep.subr.mxu0 0.0
        %3676 = vmatpush1.msra.mxu0 0.0
        %3677 = vmatprep.subr.mxu0 0.0
        %3678 = vmatpush1.msra.mxu0 0.0
        %3679 = vmatprep.subr.mxu0 0.0
        %3680 = vmatpush1.msra.mxu0 0.0
        %3681 = vmatprep.subr.mxu0 %v3645
        %3682 = vmatpush1.msra.mxu0 %v3644
        %3683 = vmatprep.subr.mxu0 0.0
        %3684 = vmatpush2.msra.mxu0 0.0
        %3685 = vmatprep.subr.mxu0 0.0
        %3686 = vmatpush2.msra.mxu0 0.0
        %3687 = vmatprep.subr.mxu0 0.0
        %3688 = vmatpush2.msra.mxu0 0.0
        %3689 = vmatprep.subr.mxu0 0.0
        %3690 = vmatpush2.msra.mxu0 0.0
        %3691 = vmatprep.subr.mxu0 0.0
        %3692 = vmatpush2.msra.mxu0 0.0
        %3693 = vmatprep.subr.mxu0 0.0
        %3694 = vmatpush2.msra.mxu0 0.0
        %3695 = vmatprep.subr.mxu0 0.0
        %3696 = vmatpush2.msra.mxu0 0.0
        %3697 = vmatprep.subr.mxu0 0.0
        %3698 = vmatpush2.msra.mxu0 0.0
        %3699 = vmatprep.subr.mxu0 0.0
        %3700 = vmatpush2.msra.mxu0 0.0
        %3701 = vmatprep.subr.mxu0 0.0
        %3702 = vmatpush2.msra.mxu0 0.0
        %3703 = vmatprep.subr.mxu0 0.0
        %3704 = vmatpush2.msra.mxu0 0.0
        %3705 = vmatprep.subr.mxu0 0.0
        %3706 = vmatpush2.msra.mxu0 0.0
        %3707 = vmatprep.subr.mxu0 0.0
        %3708 = vmatpush2.msra.mxu0 0.0
        %3709 = vmatprep.subr.mxu0 0.0
        %3710 = vmatpush2.msra.mxu0 0.0
        %3711 = vmatprep.subr.mxu0 0.0
        %3712 = vmatpush2.msra.mxu0 0.0
        %3713 = vmatprep.subr.mxu0 0.0
        %3714 = vmatpush2.msra.mxu0 0.0
        %3715 = vmatprep.mubr.f32.mxu0 0.0
        %3716 = vmatmul.mubr.f32.gmra.mxu0 %v3649
        %v3717 = vpop.f32.mrf.mxu0
        %v3718 = vadd.f32 0.0, %v3717
        %v3719 = vpop.f32.mrf.mxu0
        %v3720 = vadd.f32 0.0, %v3719
        %3721 = vdwg.mxu0
        %3722 = vmatprep.subr.mxu0 0.0
        %3723 = vmatpush1.msra.mxu0 0.0
        %3724 = vmatprep.subr.mxu0 0.0
        %3725 = vmatpush1.msra.mxu0 0.0
        %3726 = vmatprep.subr.mxu0 0.0
        %3727 = vmatpush1.msra.mxu0 0.0
        %3728 = vmatprep.subr.mxu0 0.0
        %3729 = vmatpush1.msra.mxu0 0.0
        %3730 = vmatprep.subr.mxu0 0.0
        %3731 = vmatpush1.msra.mxu0 0.0
        %3732 = vmatprep.subr.mxu0 0.0
        %3733 = vmatpush1.msra.mxu0 0.0
        %3734 = vmatprep.subr.mxu0 0.0
        %3735 = vmatpush1.msra.mxu0 0.0
        %3736 = vmatprep.subr.mxu0 0.0
        %3737 = vmatpush1.msra.mxu0 0.0
        %3738 = vmatprep.subr.mxu0 0.0
        %3739 = vmatpush1.msra.mxu0 0.0
        %3740 = vmatprep.subr.mxu0 0.0
        %3741 = vmatpush1.msra.mxu0 0.0
        %3742 = vmatprep.subr.mxu0 0.0
        %3743 = vmatpush1.msra.mxu0 0.0
        %3744 = vmatprep.subr.mxu0 0.0
        %3745 = vmatpush1.msra.mxu0 0.0
        %3746 = vmatprep.subr.mxu0 0.0
        %3747 = vmatpush1.msra.mxu0 0.0
        %3748 = vmatprep.subr.mxu0 0.0
        %3749 = vmatpush1.msra.mxu0 0.0
        %3750 = vmatprep.subr.mxu0 0.0
        %3751 = vmatpush1.msra.mxu0 0.0
        %3752 = vmatprep.subr.mxu0 %v3647
        %3753 = vmatpush1.msra.mxu0 %v3646
        %3754 = vmatprep.subr.mxu0 0.0
        %3755 = vmatpush2.msra.mxu0 0.0
        %3756 = vmatprep.subr.mxu0 0.0
        %3757 = vmatpush2.msra.mxu0 0.0
        %3758 = vmatprep.subr.mxu0 0.0
        %3759 = vmatpush2.msra.mxu0 0.0
        %3760 = vmatprep.subr.mxu0 0.0
        %3761 = vmatpush2.msra.mxu0 0.0
        %3762 = vmatprep.subr.mxu0 0.0
        %3763 = vmatpush2.msra.mxu0 0.0
        %3764 = vmatprep.subr.mxu0 0.0
        %3765 = vmatpush2.msra.mxu0 0.0
        %3766 = vmatprep.subr.mxu0 0.0
        %3767 = vmatpush2.msra.mxu0 0.0
        %3768 = vmatprep.subr.mxu0 0.0
        %3769 = vmatpush2.msra.mxu0 0.0
        %3770 = vmatprep.subr.mxu0 0.0
        %3771 = vmatpush2.msra.mxu0 0.0
        %3772 = vmatprep.subr.mxu0 0.0
        %3773 = vmatpush2.msra.mxu0 0.0
        %3774 = vmatprep.subr.mxu0 0.0
        %3775 = vmatpush2.msra.mxu0 0.0
        %3776 = vmatprep.subr.mxu0 0.0
        %3777 = vmatpush2.msra.mxu0 0.0
        %3778 = vmatprep.subr.mxu0 0.0
        %3779 = vmatpush2.msra.mxu0 0.0
        %3780 = vmatprep.subr.mxu0 0.0
        %3781 = vmatpush2.msra.mxu0 0.0
        %3782 = vmatprep.subr.mxu0 0.0
        %3783 = vmatpush2.msra.mxu0 0.0
        %3784 = vmatprep.subr.mxu0 0.0
        %3785 = vmatpush2.msra.mxu0 0.0
        %3786 = vmatprep.mubr.f32.mxu0 0.0
        %3787 = vmatmul.mubr.f32.gmra.mxu0 %v3649
        %v3788 = vpop.f32.mrf.mxu0
        %v3789 = vadd.f32 0.0, %v3788
        %v3790 = vpop.f32.mrf.mxu0
        %v3791 = vadd.f32 0.0, %v3790
        %3792 = vdwg.mxu0
        %3793 = vst [vmem:[%s720] sm:$0x1f] %v3718
        %3794 = vst [vmem:[%s720 + $0x8] sm:$0x1f] %v3720
        %3795 = vst [vmem:[%s720 + $0x10] sm:$0x1f] %v3789
        %3796 = vst [vmem:[%s720 + $0x18] sm:$0x1f] %v3791
        %s3797 = sand.u32 %s475, 1
        %s3798 = scalar_lea.sflag [#allocation3], %s3797
        %s3799 = sand.u32 %s475, 1
        %s3800 = scalar_lea.vmem [#allocation2], %s3799
        %p3801 = scmp.lt.s32.totalorder %s37, 1
        %s3802 = scalar_select %p3801, %s37, 1
        %s3803 = smul.addr %s3802, 8
        %s3804 = scalar_lea.vmem %s21, %s3803
        %p3805 = scmp.lt.s32.totalorder %s37, 1
        %s3806 = scalar_select %p3805, %s37, 1
        %s3807 = smul.addr %s3806, 4
        %s3808 = smul.addr %s3807, 8
        %s3809 = scalar_lea.vmem %s22, %s3808
        // Predicated region
        $region101: #{tpu_custom_call.1} parent=99 // pred_check
          %p3810 = pneg %p485
        $region102: #{tpu_custom_call.1} parent=99 // pred_check_branch
          %3812 = sbr.rel (%p3810) target = $region104
        $region103: #{tpu_custom_call.1} parent=99 // pred_region
          %s3814 = ssub.s32 16, 16
          %3815 = vsyncadd %s3798, %s3814
          %s3816 = smul.addr %s37, 16
          %s3817 = scalar_lea.hbm %s20, %s3816
          %s3819 = sshll.u32 %s3800, 4
          %s3820 = int_to_ptr.vmem [resolvable:$true] %s3819
          %3822 = dma.vmem_to_hbm [thread:$0]  %s3820, 16, %s3817, %s3798
        $region104: #{tpu_custom_call.1} parent=99 // pred_fallthru
          _
        // Predicated region
        $region105: #{tpu_custom_call.1} parent=99 // pred_check
          %p3823 = pneg %p511
        $region106: #{tpu_custom_call.1} parent=99 // pred_check_branch
          %3825 = sbr.rel (%p3823) target = $region108
        $region107: #{tpu_custom_call.1} parent=99 // pred_region
          _
        $region108: #{tpu_custom_call.1} parent=99 // pred_fallthru
          _
        // Predicated region
        $region109: #{tpu_custom_call.1} parent=99 // pred_check
          %p3826 = pneg %p537
        $region110: #{tpu_custom_call.1} parent=99 // pred_check_branch
          %3828 = sbr.rel (%p3826) target = $region112
        $region111: #{tpu_custom_call.1} parent=99 // pred_region
          _
        $region112: #{tpu_custom_call.1} parent=99 // pred_fallthru
          _
      $region100: #{tpu_custom_call.1} parent=5 // pred_fallthru
        _
      %p3829 = scmp.le.s32.totalorder 2, %s32
      // Predicated region
      $region113: #{tpu_custom_call.1} parent=5 // pred_check
        %p3830 = pneg %p3829
      $region114: #{tpu_custom_call.1} parent=5 // pred_check_branch
        %3832 = sbr.rel (%p3830) target = $region116
      $region115: #{tpu_custom_call.1} parent=5 // pred_region
        %s3833 = ssub.s32 %s32, 2
        // Predicated region
        $region117: #{tpu_custom_call.1} parent=115 // pred_check
          %p3834 = pneg %p491
        $region118: #{tpu_custom_call.1} parent=115 // pred_check_branch
          %3836 = sbr.rel (%p3834) target = $region120
        $region119: #{tpu_custom_call.1} parent=115 // pred_region
          %s3837 = sand.u32 %s476, 1
          %s3838 = scalar_lea.sflag [#allocation3], %s3837
          %s3839 = sand.u32 %s476, 1
          %s3840 = scalar_lea.vmem [#allocation2], %s3839
          %3841 = dma.done %s3838, 16
        $region120: #{tpu_custom_call.1} parent=115 // pred_fallthru
          _
        // Predicated region
        $region121: #{tpu_custom_call.1} parent=115 // pred_check
          %p3842 = pneg %p517
        $region122: #{tpu_custom_call.1} parent=115 // pred_check_branch
          %3844 = sbr.rel (%p3842) target = $region124
        $region123: #{tpu_custom_call.1} parent=115 // pred_region
          %p3845 = scmp.lt.s32.totalorder %s38, 1
          %s3846 = scalar_select %p3845, %s38, 1
          %s3847 = smul.addr %s3846, 8
          %s3848 = scalar_lea.vmem %s21, %s3847
        $region124: #{tpu_custom_call.1} parent=115 // pred_fallthru
          _
        // Predicated region
        $region125: #{tpu_custom_call.1} parent=115 // pred_check
          %p3849 = pneg %p543
        $region126: #{tpu_custom_call.1} parent=115 // pred_check_branch
          %3851 = sbr.rel (%p3849) target = $region128
        $region127: #{tpu_custom_call.1} parent=115 // pred_region
          %p3852 = scmp.lt.s32.totalorder %s38, 1
          %s3853 = scalar_select %p3852, %s38, 1
          %s3854 = smul.addr %s3853, 4
          %s3855 = smul.addr %s3854, 8
          %s3856 = scalar_lea.vmem %s22, %s3855
        $region128: #{tpu_custom_call.1} parent=115 // pred_fallthru
          _
      $region116: #{tpu_custom_call.1} parent=5 // pred_fallthru
        _
    $region6: #{tpu_custom_call.1} parent=1 // loop_footer
      %s36 = sadd.s32 1, %s32
    $region7: #{tpu_custom_call.1} parent=1 // loop_footer_branch
      %31 = sbr.rel target = $region3
    $region8: #{tpu_custom_call.1} parent=1 // loop_exit
      _
    %3857 = vsyncpa [#allocation3], 1
    %s3858 = scalar_lea.sflag [#allocation3], 1
    %3859 = vsyncpa %s3858, 1

</llo_original>
